<compile_context>
chip_gen: v6e
topology: v6e:2x2x1
jax: 0.10.0
libtpu: 0.0.40
codegen_flags: <defaults>
</compile_context>

<pallas_src>
import jax
import jax.numpy as jnp
from jax.experimental import pallas as pl
from jax.experimental.pallas import tpu as pltpu

NUM_CLASSES = 36                      # NIST36 -> train_y.shape[1]
_VMEM_LIMIT_BYTES = 32 * 1024 * 1024  # explicit scoped-VMEM budget (safe on v5e/v6e/v7x)
_MAX_TILE_ROWS = 512                  # row-tile cap: good HBM-roofline point, VMEM-safe


def _round_up(x, m):
    return (x + m - 1) // m * m


def _tile_rows(m):
    # tile rows in multiples of 8 (sublane), capped so 2x double-buffered blocks stay tiny
    return min(_MAX_TILE_ROWS, _round_up(m, 8))


def _compiler_params():
    return pltpu.CompilerParams(
        dimension_semantics=("parallel",),      # shard the row axis across TCs (v7x)
        vmem_limit_bytes=_VMEM_LIMIT_BYTES,
    )


# ----------------------------- Pallas kernels ------------------------------

def _conv_relu_pool_kernel(p_ref, w_ref, b_ref, o_ref):
    """Fused 5x5 'valid' conv + bias + ReLU + 2x2/2 max-pool on one row tile.

    p_ref: (TM, 36*C)    stride-2 6x6-window im2col patches (one row per pooled pixel)
    w_ref: (4, 36*C, OC) per-pooling-quadrant scattered conv weights
    b_ref: (1, OC)
    o_ref: (TM, OC)      pooled activations
    """
    p = p_ref[...]
    b = b_ref[...]

    def quad(idx):
        acc = jnp.dot(p, w_ref[idx], preferred_element_type=jnp.float32)
        return jnp.maximum(acc + b, 0.0)

    y = jnp.maximum(jnp.maximum(quad(0), quad(1)), jnp.maximum(quad(2), quad(3)))
    o_ref[...] = y.astype(o_ref.dtype)


def _fc_stack_kernel(x_ref, w1_ref, b1_ref, w2_ref, b2_ref, w3_ref, b3_ref, o_ref):
    """Fused fc1+ReLU -> fc2+ReLU -> fc3 on a row tile. All widths pre-padded to 128."""
    h = jnp.dot(x_ref[...], w1_ref[...], preferred_element_type=jnp.float32) + b1_ref[...]
    h = jnp.maximum(h, 0.0)
    h = jnp.dot(h, w2_ref[...], preferred_element_type=jnp.float32) + b2_ref[...]
    h = jnp.maximum(h, 0.0)
    o = jnp.dot(h, w3_ref[...], preferred_element_type=jnp.float32) + b3_ref[...]
    o_ref[...] = o.astype(o_ref.dtype)


# ----------------------------- Pallas wrappers -----------------------------

def _im2col_pooled(x):
    """x: NHWC -> stride-2 6x6-window patches, one row per pooled output pixel.

    Patch column layout: (i, j, c) with i, j in [0, 6), c fastest -> (i*6 + j)*C + c.
    (Plain-JAX glue; XLA fuses the 36 strided slices into the concatenate.)"""
    N, H, W, C = x.shape
    Hp, Wp = (H - 4) // 2, (W - 4) // 2     # = ((H - 5 + 1) // 2, ...)
    cols = []
    for i in range(6):
        for j in range(6):
            cols.append(x[:, i:i + 2 * Hp - 1:2, j:j + 2 * Wp - 1:2, :])
    patches = jnp.concatenate(cols, axis=-1)            # (N, Hp, Wp, 36*C)
    return patches.reshape(N * Hp * Wp, 36 * C), Hp, Wp


def pallas_conv_relu_pool(x, w4, b):
    """Fused valid 5x5 conv + bias + ReLU + 2x2 max-pool.
    x: NHWC float32, w4: (4, 36*C, OC) prepared quadrant weights, b: (1, OC)."""
    N = x.shape[0]
    oc = w4.shape[-1]
    patches, Hp, Wp = _im2col_pooled(x)
    M, K = patches.shape
    TM = _tile_rows(M)
    Mp = _round_up(M, TM)
    if Mp != M:
        patches = jnp.pad(patches, ((0, Mp - M), (0, 0)))

    out = pl.pallas_call(
        _conv_relu_pool_kernel,
        out_shape=jax.ShapeDtypeStruct((Mp, oc), jnp.float32),
        grid=(Mp // TM,),
        in_specs=[
            pl.BlockSpec((TM, K), lambda i: (i, 0)),        # patches: tiled over rows
            pl.BlockSpec((4, K, oc), lambda i: (0, 0, 0)),  # weights: VMEM-resident
            pl.BlockSpec((1, oc), lambda i: (0, 0)),        # bias: VMEM-resident
        ],
        out_specs=pl.BlockSpec((TM, oc), lambda i: (i, 0)),
        compiler_params=_compiler_params(),
    )(patches, w4, b)
    return out[:M].reshape(N, Hp, Wp, oc)


def pallas_fc_stack(x, kp):
    """Single fused kernel for fc1/fc2/fc3.  x: (M, 400) float32; kp holds 128-padded
    weights so every matmul, intermediate and store is lane-dense."""
    M, K = x.shape
    TM = _tile_rows(M)
    Mp = _round_up(M, TM)
    if Mp != M:
        x = jnp.pad(x, ((0, Mp - M), (0, 0)))
    w1, b1 = kp["fc1_w"], kp["fc1_b"]
    w2, b2 = kp["fc2_w"], kp["fc2_b"]
    w3, b3 = kp["fc3_w"], kp["fc3_b"]
    H1, H2, OP = w1.shape[1], w2.shape[1], w3.shape[1]

    out = pl.pallas_call(
        _fc_stack_kernel,
        out_shape=jax.ShapeDtypeStruct((Mp, OP), jnp.float32),
        grid=(Mp // TM,),
        in_specs=[
            pl.BlockSpec((TM, K), lambda i: (i, 0)),    # activations: tiled over rows
            pl.BlockSpec((K, H1), lambda i: (0, 0)),    # all weights/biases resident
            pl.BlockSpec((1, H1), lambda i: (0, 0)),
            pl.BlockSpec((H1, H2), lambda i: (0, 0)),
            pl.BlockSpec((1, H2), lambda i: (0, 0)),
            pl.BlockSpec((H2, OP), lambda i: (0, 0)),
            pl.BlockSpec((1, OP), lambda i: (0, 0)),
        ],
        out_specs=pl.BlockSpec((TM, OP), lambda i: (i, 0)),
        compiler_params=_compiler_params(),
    )(x, w1, b1, w2, b2, w3, b3)
    return out[:M, :NUM_CLASSES]


# ------------------------------- Parameters --------------------------------

def init_params(key):
    """PyTorch-style init; conv weights in (OC, C, kh, kw), FC weights as (in, out)."""
    ks = jax.random.split(key, 10)

    def u(k, shape, fan_in):
        bound = 1.0 / jnp.sqrt(fan_in)
        return jax.random.uniform(k, shape, jnp.float32, -bound, bound)

    return {
        "conv1_w": u(ks[0], (6, 1, 5, 5), 1 * 5 * 5),
        "conv1_b": u(ks[1], (6,), 1 * 5 * 5),
        "conv2_w": u(ks[2], (16, 6, 5, 5), 6 * 5 * 5),
        "conv2_b": u(ks[3], (16,), 6 * 5 * 5),
        "fc1_w": u(ks[4], (400, 120), 400),
        "fc1_b": u(ks[5], (120,), 400),
        "fc2_w": u(ks[6], (120, 84), 120),
        "fc2_b": u(ks[7], (84,), 120),
        "fc3_w": u(ks[8], (84, NUM_CLASSES), 84),
        "fc3_b": u(ks[9], (NUM_CLASSES,), 84),
    }


def _quadrant_conv_weights(w):
    """(OC, C, 5, 5) torch conv weight -> (4, 36*C, OC) quadrant-scattered matrices
    matching the stride-2 6x6-window patch layout of _im2col_pooled: quadrant (dy,dx)
    reproduces the conv output at pooled offset (2p+dy, 2q+dx)."""
    oc, c, k, _ = w.shape
    assert k == 5, "kernel is specialized for 5x5 conv + 2x2 pool"
    wt = jnp.transpose(w, (2, 3, 1, 0)).astype(jnp.float32)            # (5, 5, C, OC)
    quads = []
    for dy in (0, 1):
        for dx in (0, 1):
            wq = jnp.pad(wt, ((dy, 1 - dy), (dx, 1 - dx), (0, 0), (0, 0)))  # (6,6,C,OC)
            quads.append(wq.reshape(36 * c, oc))
    return jnp.stack(quads, axis=0)                                    # (4, 36*C, OC)


def _pad2d(a, rows, cols):
    a = jnp.asarray(a, jnp.float32)
    return jnp.pad(a, ((0, rows - a.shape[0]), (0, cols - a.shape[1])))


def prepare_params(p):
    """One-time re-layout of parameters into kernel-ready form (hoisted out of the
    forward pass): quadrant conv weights, (1, OC) biases, and lane-dense 128-padded
    FC weights (zero padding keeps the math identical; pads are sliced off)."""
    h1 = _round_up(120, 128)
    h2 = _round_up(84, 128)
    op = _round_up(NUM_CLASSES, 128)
    return {
        "conv1_w4": _quadrant_conv_weights(p["conv1_w"]),
        "conv1_b": p["conv1_b"].reshape(1, -1).astype(jnp.float32),
        "conv2_w4": _quadrant_conv_weights(p["conv2_w"]),
        "conv2_b": p["conv2_b"].reshape(1, -1).astype(jnp.float32),
        "fc1_w": _pad2d(p["fc1_w"], 400, h1),
        "fc1_b": _pad2d(p["fc1_b"].reshape(1, -1), 1, h1),
        "fc2_w": _pad2d(p["fc2_w"], h1, h2),
        "fc2_b": _pad2d(p["fc2_b"].reshape(1, -1), 1, h2),
        "fc3_w": _pad2d(p["fc3_w"], h2, op),
        "fc3_b": _pad2d(p["fc3_b"].reshape(1, -1), 1, op),
    }


# ------------------------------- The network -------------------------------

def net_forward(x_nchw, kp):
    """Forward pass of Net.  x_nchw: (N, 1, 32, 32) float32 (PyTorch NCHW layout)."""
    x = jnp.transpose(x_nchw, (0, 2, 3, 1)).astype(jnp.float32)      # NHWC (N,32,32,1)
    x = pallas_conv_relu_pool(x, kp["conv1_w4"], kp["conv1_b"])      # (N,14,14,6)
    x = pallas_conv_relu_pool(x, kp["conv2_w4"], kp["conv2_b"])      # (N,5,5,16)
    # flatten in NCHW order to match PyTorch x.view(N, -1)
    x = jnp.transpose(x, (0, 3, 1, 2)).reshape(x.shape[0], -1)       # (N, 400)
    return pallas_fc_stack(x, kp)                                    # (N, 36)


def _ref_forward(x_nchw, p):
    """Independent pure-JAX reference for a correctness check."""
    hp = jax.lax.Precision.HIGHEST

    def conv_relu(x, w, b):
        y = jax.lax.conv_general_dilated(
            x, w, window_strides=(1, 1), padding="VALID",
            dimension_numbers=("NCHW", "OIHW", "NCHW"), precision=hp)
        return jax.nn.relu(y + b.reshape(1, -1, 1, 1))

    def pool(x):
        n, c, h, w = x.shape
        return x.reshape(n, c, h // 2, 2, w // 2, 2).max(axis=(3, 5))

    x = pool(conv_relu(x_nchw.astype(jnp.float32), p["conv1_w"], p["conv1_b"]))
    x = pool(conv_relu(x, p["conv2_w"], p["conv2_b"]))
    x = x.reshape(x.shape[0], -1)
    x = jax.nn.relu(jnp.dot(x, p["fc1_w"], precision=hp) + p["fc1_b"])
    x = jax.nn.relu(jnp.dot(x, p["fc2_w"], precision=hp) + p["fc2_b"])
    return jnp.dot(x, p["fc3_w"], precision=hp) + p["fc3_b"]


if __name__ == "__main__":
    key = jax.random.PRNGKey(0)
    k_x, k_p = jax.random.split(key)
    # spatial 32x32 with 1 input channel is fixed by the module (16*5*5 = 400 flatten)
    x = jax.random.normal(k_x, (2, 1, 32, 32), jnp.float32)
    raw_params = init_params(k_p)
    kernel_params = prepare_params(raw_params)       # one-time weight re-layout

    out = jax.block_until_ready(jax.jit(net_forward)(x, kernel_params))
    assert out.shape == (2, NUM_CLASSES) and out.dtype == jnp.float32

    ref = jax.block_until_ready(jax.jit(_ref_forward)(x, raw_params))
    err = float(jnp.max(jnp.abs(out - ref)))
    assert err < 5e-2, f"Pallas output mismatch vs reference (max abs err {err})"
    print("KERNEL_OK")
</pallas_src>

<mosaic_0001>
module attributes {stable_mosaic.version = 11 : i64} {
  func.func @_conv_relu_pool_kernel(%arg0: i32, %arg1: memref<392x36xf32, #tpu.memory_space<vmem>>, %arg2: memref<4x36x6xf32, #tpu.memory_space<vmem>>, %arg3: memref<1x6xf32, #tpu.memory_space<vmem>>, %arg4: memref<392x6xf32, #tpu.memory_space<vmem>>) attributes {dimension_semantics = [#tpu.dimension_semantics<parallel>], iteration_bounds = array<i64: 1>, scalar_prefetch = 0 : i64, scratch_operands = 0 : i64, tpu.core_type = #tpu.core_type<tc>, window_params = [{transform_indices = @transform_0, window_bounds = array<i64: 392, 36>}, {pipeline_mode = #tpu.pipeline_mode<synchronous>, transform_indices = @transform_1, window_bounds = array<i64: 4, 36, 6>}, {pipeline_mode = #tpu.pipeline_mode<synchronous>, transform_indices = @transform_2, window_bounds = array<i64: 1, 6>}, {transform_indices = @transform_3, window_bounds = array<i64: 392, 6>}]} {
    %c0 = arith.constant 0 : index
    %c0_0 = arith.constant 0 : index
    %0 = vector.load %arg1[%c0, %c0_0] : memref<392x36xf32, #tpu.memory_space<vmem>>, vector<392x36xf32>
    %c0_1 = arith.constant 0 : index
    %c0_2 = arith.constant 0 : index
    %1 = vector.load %arg3[%c0_1, %c0_2] : memref<1x6xf32, #tpu.memory_space<vmem>>, vector<1x6xf32>
    %c0_3 = arith.constant 0 : index
    %c0_4 = arith.constant 0 : index
    %c0_5 = arith.constant 0 : index
    %2 = vector.load %arg2[%c0_3, %c0_4, %c0_5] : memref<4x36x6xf32, #tpu.memory_space<vmem>>, vector<1x36x6xf32>
    %3 = vector.shape_cast %2 : vector<1x36x6xf32> to vector<36x6xf32>
    %cst = arith.constant dense<0.000000e+00> : vector<392x6xf32>
    %4 = tpu.matmul %0, %3, %cst {dimension_numbers = #tpu.dot_dimension_numbers<[1], [0], [0], [1], [0, 0, 1, 1], [], []>} : vector<392x36xf32>, vector<36x6xf32>, vector<392x6xf32> -> vector<392x6xf32>
    %5 = vector.broadcast %1 : vector<1x6xf32> to vector<392x6xf32>
    %6 = arith.addf %4, %5 : vector<392x6xf32>
    %cst_6 = arith.constant 0.000000e+00 : f32
    %7 = vector.broadcast %cst_6 : f32 to vector<392x6xf32>
    %8 = arith.maximumf %6, %7 : vector<392x6xf32>
    %c1 = arith.constant 1 : index
    %c0_7 = arith.constant 0 : index
    %c0_8 = arith.constant 0 : index
    %9 = vector.load %arg2[%c1, %c0_7, %c0_8] : memref<4x36x6xf32, #tpu.memory_space<vmem>>, vector<1x36x6xf32>
    %10 = vector.shape_cast %9 : vector<1x36x6xf32> to vector<36x6xf32>
    %cst_9 = arith.constant dense<0.000000e+00> : vector<392x6xf32>
    %11 = tpu.matmul %0, %10, %cst_9 {dimension_numbers = #tpu.dot_dimension_numbers<[1], [0], [0], [1], [0, 0, 1, 1], [], []>} : vector<392x36xf32>, vector<36x6xf32>, vector<392x6xf32> -> vector<392x6xf32>
    %12 = vector.broadcast %1 : vector<1x6xf32> to vector<392x6xf32>
    %13 = arith.addf %11, %12 : vector<392x6xf32>
    %cst_10 = arith.constant 0.000000e+00 : f32
    %14 = vector.broadcast %cst_10 : f32 to vector<392x6xf32>
    %15 = arith.maximumf %13, %14 : vector<392x6xf32>
    %16 = arith.maximumf %8, %15 : vector<392x6xf32>
    %c2 = arith.constant 2 : index
    %c0_11 = arith.constant 0 : index
    %c0_12 = arith.constant 0 : index
    %17 = vector.load %arg2[%c2, %c0_11, %c0_12] : memref<4x36x6xf32, #tpu.memory_space<vmem>>, vector<1x36x6xf32>
    %18 = vector.shape_cast %17 : vector<1x36x6xf32> to vector<36x6xf32>
    %cst_13 = arith.constant dense<0.000000e+00> : vector<392x6xf32>
    %19 = tpu.matmul %0, %18, %cst_13 {dimension_numbers = #tpu.dot_dimension_numbers<[1], [0], [0], [1], [0, 0, 1, 1], [], []>} : vector<392x36xf32>, vector<36x6xf32>, vector<392x6xf32> -> vector<392x6xf32>
    %20 = vector.broadcast %1 : vector<1x6xf32> to vector<392x6xf32>
    %21 = arith.addf %19, %20 : vector<392x6xf32>
    %cst_14 = arith.constant 0.000000e+00 : f32
    %22 = vector.broadcast %cst_14 : f32 to vector<392x6xf32>
    %23 = arith.maximumf %21, %22 : vector<392x6xf32>
    %c3 = arith.constant 3 : index
    %c0_15 = arith.constant 0 : index
    %c0_16 = arith.constant 0 : index
    %24 = vector.load %arg2[%c3, %c0_15, %c0_16] : memref<4x36x6xf32, #tpu.memory_space<vmem>>, vector<1x36x6xf32>
    %25 = vector.shape_cast %24 : vector<1x36x6xf32> to vector<36x6xf32>
    %cst_17 = arith.constant dense<0.000000e+00> : vector<392x6xf32>
    %26 = tpu.matmul %0, %25, %cst_17 {dimension_numbers = #tpu.dot_dimension_numbers<[1], [0], [0], [1], [0, 0, 1, 1], [], []>} : vector<392x36xf32>, vector<36x6xf32>, vector<392x6xf32> -> vector<392x6xf32>
    %27 = vector.broadcast %1 : vector<1x6xf32> to vector<392x6xf32>
    %28 = arith.addf %26, %27 : vector<392x6xf32>
    %cst_18 = arith.constant 0.000000e+00 : f32
    %29 = vector.broadcast %cst_18 : f32 to vector<392x6xf32>
    %30 = arith.maximumf %28, %29 : vector<392x6xf32>
    %31 = arith.maximumf %23, %30 : vector<392x6xf32>
    %32 = arith.maximumf %16, %31 : vector<392x6xf32>
    %c0_19 = arith.constant 0 : index
    %c0_20 = arith.constant 0 : index
    %33 = vector.load %arg4[%c0_19, %c0_20] : memref<392x6xf32, #tpu.memory_space<vmem>>, vector<392x6xf32>
    tpu.vector_store %arg4[%c0_19, %c0_20], %32 {strides = array<i32>} : memref<392x6xf32, #tpu.memory_space<vmem>>, vector<392x6xf32>,
    return
  }
  func.func @transform_0(%arg0: i32) -> (i32, i32) {
    %c0_i32 = arith.constant 0 : i32
    %c0_i32_0 = arith.constant 0 : i32
    return %arg0, %c0_i32 : i32, i32
  }
  func.func @transform_1(%arg0: i32) -> (i32, i32, i32) {
    %c0_i32 = arith.constant 0 : i32
    %c0_i32_0 = arith.constant 0 : i32
    %c0_i32_1 = arith.constant 0 : i32
    %c0_i32_2 = arith.constant 0 : i32
    return %c0_i32, %c0_i32_0, %c0_i32_1 : i32, i32, i32
  }
  func.func @transform_2(%arg0: i32) -> (i32, i32) {
    %c0_i32 = arith.constant 0 : i32
    %c0_i32_0 = arith.constant 0 : i32
    %c0_i32_1 = arith.constant 0 : i32
    return %c0_i32, %c0_i32_0 : i32, i32
  }
  func.func @transform_3(%arg0: i32) -> (i32, i32) {
    %c0_i32 = arith.constant 0 : i32
    %c0_i32_0 = arith.constant 0 : i32
    return %arg0, %c0_i32 : i32, i32
  }
}

module attributes {stable_mosaic.version = 11 : i64} {
  func.func @_conv_relu_pool_kernel(%arg0: i32, %arg1: memref<56x216xf32, #tpu.memory_space<vmem>>, %arg2: memref<4x216x16xf32, #tpu.memory_space<vmem>>, %arg3: memref<1x16xf32, #tpu.memory_space<vmem>>, %arg4: memref<56x16xf32, #tpu.memory_space<vmem>>) attributes {dimension_semantics = [#tpu.dimension_semantics<parallel>], iteration_bounds = array<i64: 1>, scalar_prefetch = 0 : i64, scratch_operands = 0 : i64, tpu.core_type = #tpu.core_type<tc>, window_params = [{transform_indices = @transform_0, window_bounds = array<i64: 56, 216>}, {pipeline_mode = #tpu.pipeline_mode<synchronous>, transform_indices = @transform_1, window_bounds = array<i64: 4, 216, 16>}, {pipeline_mode = #tpu.pipeline_mode<synchronous>, transform_indices = @transform_2, window_bounds = array<i64: 1, 16>}, {transform_indices = @transform_3, window_bounds = array<i64: 56, 16>}]} {
    %c0 = arith.constant 0 : index
    %c0_0 = arith.constant 0 : index
    %0 = vector.load %arg1[%c0, %c0_0] : memref<56x216xf32, #tpu.memory_space<vmem>>, vector<56x216xf32>
    %c0_1 = arith.constant 0 : index
    %c0_2 = arith.constant 0 : index
    %1 = vector.load %arg3[%c0_1, %c0_2] : memref<1x16xf32, #tpu.memory_space<vmem>>, vector<1x16xf32>
    %c0_3 = arith.constant 0 : index
    %c0_4 = arith.constant 0 : index
    %c0_5 = arith.constant 0 : index
    %2 = vector.load %arg2[%c0_3, %c0_4, %c0_5] : memref<4x216x16xf32, #tpu.memory_space<vmem>>, vector<1x216x16xf32>
    %3 = vector.shape_cast %2 : vector<1x216x16xf32> to vector<216x16xf32>
    %cst = arith.constant dense<0.000000e+00> : vector<56x16xf32>
    %4 = tpu.matmul %0, %3, %cst {dimension_numbers = #tpu.dot_dimension_numbers<[1], [0], [0], [1], [0, 0, 1, 1], [], []>} : vector<56x216xf32>, vector<216x16xf32>, vector<56x16xf32> -> vector<56x16xf32>
    %5 = vector.broadcast %1 : vector<1x16xf32> to vector<56x16xf32>
    %6 = arith.addf %4, %5 : vector<56x16xf32>
    %cst_6 = arith.constant 0.000000e+00 : f32
    %7 = vector.broadcast %cst_6 : f32 to vector<56x16xf32>
    %8 = arith.maximumf %6, %7 : vector<56x16xf32>
    %c1 = arith.constant 1 : index
    %c0_7 = arith.constant 0 : index
    %c0_8 = arith.constant 0 : index
    %9 = vector.load %arg2[%c1, %c0_7, %c0_8] : memref<4x216x16xf32, #tpu.memory_space<vmem>>, vector<1x216x16xf32>
    %10 = vector.shape_cast %9 : vector<1x216x16xf32> to vector<216x16xf32>
    %cst_9 = arith.constant dense<0.000000e+00> : vector<56x16xf32>
    %11 = tpu.matmul %0, %10, %cst_9 {dimension_numbers = #tpu.dot_dimension_numbers<[1], [0], [0], [1], [0, 0, 1, 1], [], []>} : vector<56x216xf32>, vector<216x16xf32>, vector<56x16xf32> -> vector<56x16xf32>
    %12 = vector.broadcast %1 : vector<1x16xf32> to vector<56x16xf32>
    %13 = arith.addf %11, %12 : vector<56x16xf32>
    %cst_10 = arith.constant 0.000000e+00 : f32
    %14 = vector.broadcast %cst_10 : f32 to vector<56x16xf32>
    %15 = arith.maximumf %13, %14 : vector<56x16xf32>
    %16 = arith.maximumf %8, %15 : vector<56x16xf32>
    %c2 = arith.constant 2 : index
    %c0_11 = arith.constant 0 : index
    %c0_12 = arith.constant 0 : index
    %17 = vector.load %arg2[%c2, %c0_11, %c0_12] : memref<4x216x16xf32, #tpu.memory_space<vmem>>, vector<1x216x16xf32>
    %18 = vector.shape_cast %17 : vector<1x216x16xf32> to vector<216x16xf32>
    %cst_13 = arith.constant dense<0.000000e+00> : vector<56x16xf32>
    %19 = tpu.matmul %0, %18, %cst_13 {dimension_numbers = #tpu.dot_dimension_numbers<[1], [0], [0], [1], [0, 0, 1, 1], [], []>} : vector<56x216xf32>, vector<216x16xf32>, vector<56x16xf32> -> vector<56x16xf32>
    %20 = vector.broadcast %1 : vector<1x16xf32> to vector<56x16xf32>
    %21 = arith.addf %19, %20 : vector<56x16xf32>
    %cst_14 = arith.constant 0.000000e+00 : f32
    %22 = vector.broadcast %cst_14 : f32 to vector<56x16xf32>
    %23 = arith.maximumf %21, %22 : vector<56x16xf32>
    %c3 = arith.constant 3 : index
    %c0_15 = arith.constant 0 : index
    %c0_16 = arith.constant 0 : index
    %24 = vector.load %arg2[%c3, %c0_15, %c0_16] : memref<4x216x16xf32, #tpu.memory_space<vmem>>, vector<1x216x16xf32>
    %25 = vector.shape_cast %24 : vector<1x216x16xf32> to vector<216x16xf32>
    %cst_17 = arith.constant dense<0.000000e+00> : vector<56x16xf32>
    %26 = tpu.matmul %0, %25, %cst_17 {dimension_numbers = #tpu.dot_dimension_numbers<[1], [0], [0], [1], [0, 0, 1, 1], [], []>} : vector<56x216xf32>, vector<216x16xf32>, vector<56x16xf32> -> vector<56x16xf32>
    %27 = vector.broadcast %1 : vector<1x16xf32> to vector<56x16xf32>
    %28 = arith.addf %26, %27 : vector<56x16xf32>
    %cst_18 = arith.constant 0.000000e+00 : f32
    %29 = vector.broadcast %cst_18 : f32 to vector<56x16xf32>
    %30 = arith.maximumf %28, %29 : vector<56x16xf32>
    %31 = arith.maximumf %23, %30 : vector<56x16xf32>
    %32 = arith.maximumf %16, %31 : vector<56x16xf32>
    %c0_19 = arith.constant 0 : index
    %c0_20 = arith.constant 0 : index
    %33 = vector.load %arg4[%c0_19, %c0_20] : memref<56x16xf32, #tpu.memory_space<vmem>>, vector<56x16xf32>
    tpu.vector_store %arg4[%c0_19, %c0_20], %32 {strides = array<i32>} : memref<56x16xf32, #tpu.memory_space<vmem>>, vector<56x16xf32>,
    return
  }
  func.func @transform_0(%arg0: i32) -> (i32, i32) {
    %c0_i32 = arith.constant 0 : i32
    %c0_i32_0 = arith.constant 0 : i32
    return %arg0, %c0_i32 : i32, i32
  }
  func.func @transform_1(%arg0: i32) -> (i32, i32, i32) {
    %c0_i32 = arith.constant 0 : i32
    %c0_i32_0 = arith.constant 0 : i32
    %c0_i32_1 = arith.constant 0 : i32
    %c0_i32_2 = arith.constant 0 : i32
    return %c0_i32, %c0_i32_0, %c0_i32_1 : i32, i32, i32
  }
  func.func @transform_2(%arg0: i32) -> (i32, i32) {
    %c0_i32 = arith.constant 0 : i32
    %c0_i32_0 = arith.constant 0 : i32
    %c0_i32_1 = arith.constant 0 : i32
    return %c0_i32, %c0_i32_0 : i32, i32
  }
  func.func @transform_3(%arg0: i32) -> (i32, i32) {
    %c0_i32 = arith.constant 0 : i32
    %c0_i32_0 = arith.constant 0 : i32
    return %arg0, %c0_i32 : i32, i32
  }
}

module attributes {stable_mosaic.version = 11 : i64} {
  func.func @_fc_stack_kernel(%arg0: i32, %arg1: memref<8x400xf32, #tpu.memory_space<vmem>>, %arg2: memref<400x128xf32, #tpu.memory_space<vmem>>, %arg3: memref<1x128xf32, #tpu.memory_space<vmem>>, %arg4: memref<128x128xf32, #tpu.memory_space<vmem>>, %arg5: memref<1x128xf32, #tpu.memory_space<vmem>>, %arg6: memref<128x128xf32, #tpu.memory_space<vmem>>, %arg7: memref<1x128xf32, #tpu.memory_space<vmem>>, %arg8: memref<8x128xf32, #tpu.memory_space<vmem>>) attributes {dimension_semantics = [#tpu.dimension_semantics<parallel>], iteration_bounds = array<i64: 1>, scalar_prefetch = 0 : i64, scratch_operands = 0 : i64, tpu.core_type = #tpu.core_type<tc>, window_params = [{transform_indices = @transform_0, window_bounds = array<i64: 8, 400>}, {pipeline_mode = #tpu.pipeline_mode<synchronous>, transform_indices = @transform_1, window_bounds = array<i64: 400, 128>}, {pipeline_mode = #tpu.pipeline_mode<synchronous>, transform_indices = @transform_2, window_bounds = array<i64: 1, 128>}, {pipeline_mode = #tpu.pipeline_mode<synchronous>, transform_indices = @transform_3, window_bounds = array<i64: 128, 128>}, {pipeline_mode = #tpu.pipeline_mode<synchronous>, transform_indices = @transform_4, window_bounds = array<i64: 1, 128>}, {pipeline_mode = #tpu.pipeline_mode<synchronous>, transform_indices = @transform_5, window_bounds = array<i64: 128, 128>}, {pipeline_mode = #tpu.pipeline_mode<synchronous>, transform_indices = @transform_6, window_bounds = array<i64: 1, 128>}, {transform_indices = @transform_7, window_bounds = array<i64: 8, 128>}]} {
    %c0 = arith.constant 0 : index
    %c0_0 = arith.constant 0 : index
    %0 = vector.load %arg1[%c0, %c0_0] : memref<8x400xf32, #tpu.memory_space<vmem>>, vector<8x400xf32>
    %c0_1 = arith.constant 0 : index
    %c0_2 = arith.constant 0 : index
    %1 = vector.load %arg2[%c0_1, %c0_2] : memref<400x128xf32, #tpu.memory_space<vmem>>, vector<400x128xf32>
    %cst = arith.constant dense<0.000000e+00> : vector<8x128xf32>
    %2 = tpu.matmul %0, %1, %cst {dimension_numbers = #tpu.dot_dimension_numbers<[1], [0], [0], [1], [0, 0, 1, 1], [], []>} : vector<8x400xf32>, vector<400x128xf32>, vector<8x128xf32> -> vector<8x128xf32>
    %c0_3 = arith.constant 0 : index
    %c0_4 = arith.constant 0 : index
    %3 = vector.load %arg3[%c0_3, %c0_4] : memref<1x128xf32, #tpu.memory_space<vmem>>, vector<1x128xf32>
    %4 = vector.broadcast %3 : vector<1x128xf32> to vector<8x128xf32>
    %5 = arith.addf %2, %4 : vector<8x128xf32>
    %cst_5 = arith.constant 0.000000e+00 : f32
    %6 = vector.broadcast %cst_5 : f32 to vector<8x128xf32>
    %7 = arith.maximumf %5, %6 : vector<8x128xf32>
    %c0_6 = arith.constant 0 : index
    %c0_7 = arith.constant 0 : index
    %8 = vector.load %arg4[%c0_6, %c0_7] : memref<128x128xf32, #tpu.memory_space<vmem>>, vector<128x128xf32>
    %cst_8 = arith.constant dense<0.000000e+00> : vector<8x128xf32>
    %9 = tpu.matmul %7, %8, %cst_8 {dimension_numbers = #tpu.dot_dimension_numbers<[1], [0], [0], [1], [0, 0, 1, 1], [], []>} : vector<8x128xf32>, vector<128x128xf32>, vector<8x128xf32> -> vector<8x128xf32>
    %c0_9 = arith.constant 0 : index
    %c0_10 = arith.constant 0 : index
    %10 = vector.load %arg5[%c0_9, %c0_10] : memref<1x128xf32, #tpu.memory_space<vmem>>, vector<1x128xf32>
    %11 = vector.broadcast %10 : vector<1x128xf32> to vector<8x128xf32>
    %12 = arith.addf %9, %11 : vector<8x128xf32>
    %cst_11 = arith.constant 0.000000e+00 : f32
    %13 = vector.broadcast %cst_11 : f32 to vector<8x128xf32>
    %14 = arith.maximumf %12, %13 : vector<8x128xf32>
    %c0_12 = arith.constant 0 : index
    %c0_13 = arith.constant 0 : index
    %15 = vector.load %arg6[%c0_12, %c0_13] : memref<128x128xf32, #tpu.memory_space<vmem>>, vector<128x128xf32>
    %cst_14 = arith.constant dense<0.000000e+00> : vector<8x128xf32>
    %16 = tpu.matmul %14, %15, %cst_14 {dimension_numbers = #tpu.dot_dimension_numbers<[1], [0], [0], [1], [0, 0, 1, 1], [], []>} : vector<8x128xf32>, vector<128x128xf32>, vector<8x128xf32> -> vector<8x128xf32>
    %c0_15 = arith.constant 0 : index
    %c0_16 = arith.constant 0 : index
    %17 = vector.load %arg7[%c0_15, %c0_16] : memref<1x128xf32, #tpu.memory_space<vmem>>, vector<1x128xf32>
    %18 = vector.broadcast %17 : vector<1x128xf32> to vector<8x128xf32>
    %19 = arith.addf %16, %18 : vector<8x128xf32>
    %c0_17 = arith.constant 0 : index
    %c0_18 = arith.constant 0 : index
    %20 = vector.load %arg8[%c0_17, %c0_18] : memref<8x128xf32, #tpu.memory_space<vmem>>, vector<8x128xf32>
    tpu.vector_store %arg8[%c0_17, %c0_18], %19 {strides = array<i32>} : memref<8x128xf32, #tpu.memory_space<vmem>>, vector<8x128xf32>,
    return
  }
  func.func @transform_0(%arg0: i32) -> (i32, i32) {
    %c0_i32 = arith.constant 0 : i32
    %c0_i32_0 = arith.constant 0 : i32
    return %arg0, %c0_i32 : i32, i32
  }
  func.func @transform_1(%arg0: i32) -> (i32, i32) {
    %c0_i32 = arith.constant 0 : i32
    %c0_i32_0 = arith.constant 0 : i32
    %c0_i32_1 = arith.constant 0 : i32
    return %c0_i32, %c0_i32_0 : i32, i32
  }
  func.func @transform_2(%arg0: i32) -> (i32, i32) {
    %c0_i32 = arith.constant 0 : i32
    %c0_i32_0 = arith.constant 0 : i32
    %c0_i32_1 = arith.constant 0 : i32
    return %c0_i32, %c0_i32_0 : i32, i32
  }
  func.func @transform_3(%arg0: i32) -> (i32, i32) {
    %c0_i32 = arith.constant 0 : i32
    %c0_i32_0 = arith.constant 0 : i32
    %c0_i32_1 = arith.constant 0 : i32
    return %c0_i32, %c0_i32_0 : i32, i32
  }
  func.func @transform_4(%arg0: i32) -> (i32, i32) {
    %c0_i32 = arith.constant 0 : i32
    %c0_i32_0 = arith.constant 0 : i32
    %c0_i32_1 = arith.constant 0 : i32
    return %c0_i32, %c0_i32_0 : i32, i32
  }
  func.func @transform_5(%arg0: i32) -> (i32, i32) {
    %c0_i32 = arith.constant 0 : i32
    %c0_i32_0 = arith.constant 0 : i32
    %c0_i32_1 = arith.constant 0 : i32
    return %c0_i32, %c0_i32_0 : i32, i32
  }
  func.func @transform_6(%arg0: i32) -> (i32, i32) {
    %c0_i32 = arith.constant 0 : i32
    %c0_i32_0 = arith.constant 0 : i32
    %c0_i32_1 = arith.constant 0 : i32
    return %c0_i32, %c0_i32_0 : i32, i32
  }
  func.func @transform_7(%arg0: i32) -> (i32, i32) {
    %c0_i32 = arith.constant 0 : i32
    %c0_i32_0 = arith.constant 0 : i32
    return %arg0, %c0_i32 : i32, i32
  }
}

</mosaic_0001>

<llo_original>
// kernel: net_forward.3
$region0: #{net_forward.3}
  #allocation0 [shape = 'u32[]', space=smem, size = 0x4, offset = 0x4, fixed_abs, tag = 'smem constant byte address 0x4 - core index']
  #allocation1 [shape = 'u32[144,128]{1,0:T(1,128)}', space=vmem, size = 0x12000, scoped, tag = 'internal scratch']
  %s0 = inlined_call_operand.vmem [shape: f32[392,36], index: 0, kind: input, shape index: {}]
  %s1 = inlined_call_operand.vmem [shape: f32[4,36,6], index: 1, kind: input, shape index: {}]
  %s2 = inlined_call_operand.vmem [shape: f32[1,6], index: 2, kind: input, shape index: {}]
  %s3 = inlined_call_operand.vmem [shape: f32[392,6], index: 3, kind: output, shape index: {}]
  %s4 = sld [smem:[#allocation0]]
  $region22: #{net_forward.3} parent=0
    _
  %s6 = ssub.s32 1, %s4
  %s7 = scalar_select 0, %s6, %s4
  // Predicated region
  $region2: #{net_forward.3} parent=0 // pred_check
    _
  $region3: #{net_forward.3} parent=0 // pred_check_branch
    %9 = sbr.rel (0) target = $region5
  $region4: #{net_forward.3} parent=0 // pred_region
    _
  $region5: #{net_forward.3} parent=0 // pred_fallthru
    _
  // Predicated region
  $region6: #{net_forward.3} parent=0 // pred_check
    _
  $region7: #{net_forward.3} parent=0 // pred_check_branch
    %11 = sbr.rel (0) target = $region9
  $region8: #{net_forward.3} parent=0 // pred_region
    _
  $region9: #{net_forward.3} parent=0 // pred_fallthru
    _
  // Predicated region
  $region10: #{net_forward.3} parent=0 // pred_check
    _
  $region11: #{net_forward.3} parent=0 // pred_check_branch
    %13 = sbr.rel (0) target = $region13
  $region12: #{net_forward.3} parent=0 // pred_region
    _
  $region13: #{net_forward.3} parent=0 // pred_fallthru
    _
  %v14 = vld [vmem:[%s0] sm:$0xff]
  %v15 = vld [vmem:[%s0 + $0x8] sm:$0xff]
  %v16 = vld [vmem:[%s0 + $0x10] sm:$0xff]
  %v17 = vld [vmem:[%s0 + $0x18] sm:$0xff]
  %v18 = vld [vmem:[%s0 + $0x20] sm:$0xff]
  %v19 = vld [vmem:[%s0 + $0x28] sm:$0xff]
  %v20 = vld [vmem:[%s0 + $0x30] sm:$0xff]
  %v21 = vld [vmem:[%s0 + $0x38] sm:$0xff]
  %v22 = vld [vmem:[%s0 + $0x40] sm:$0xff]
  %v23 = vld [vmem:[%s0 + $0x48] sm:$0xff]
  %v24 = vld [vmem:[%s0 + $0x50] sm:$0xff]
  %v25 = vld [vmem:[%s0 + $0x58] sm:$0xff]
  %v26 = vld [vmem:[%s0 + $0x60] sm:$0xff]
  %v27 = vld [vmem:[%s0 + $0x68] sm:$0xff]
  %v28 = vld [vmem:[%s0 + $0x70] sm:$0xff]
  %v29 = vld [vmem:[%s0 + $0x78] sm:$0xff]
  %v30 = vld [vmem:[%s0 + $0x80] sm:$0xff]
  %v31 = vld [vmem:[%s0 + $0x88] sm:$0xff]
  %v32 = vld [vmem:[%s0 + $0x90] sm:$0xff]
  %v33 = vld [vmem:[%s0 + $0x98] sm:$0xff]
  %v34 = vld [vmem:[%s0 + $0xa0] sm:$0xff]
  %v35 = vld [vmem:[%s0 + $0xa8] sm:$0xff]
  %v36 = vld [vmem:[%s0 + $0xb0] sm:$0xff]
  %v37 = vld [vmem:[%s0 + $0xb8] sm:$0xff]
  %v38 = vld [vmem:[%s0 + $0xc0] sm:$0xff]
  %v39 = vld [vmem:[%s0 + $0xc8] sm:$0xff]
  %v40 = vld [vmem:[%s0 + $0xd0] sm:$0xff]
  %v41 = vld [vmem:[%s0 + $0xd8] sm:$0xff]
  %v42 = vld [vmem:[%s0 + $0xe0] sm:$0xff]
  %v43 = vld [vmem:[%s0 + $0xe8] sm:$0xff]
  %v44 = vld [vmem:[%s0 + $0xf0] sm:$0xff]
  %v45 = vld [vmem:[%s0 + $0xf8] sm:$0xff]
  %v46 = vld [vmem:[%s0 + $0x100] sm:$0xff]
  %v47 = vld [vmem:[%s0 + $0x108] sm:$0xff]
  %v48 = vld [vmem:[%s0 + $0x110] sm:$0xff]
  %v49 = vld [vmem:[%s0 + $0x118] sm:$0xff]
  %v50 = vld [vmem:[%s0 + $0x120] sm:$0xff]
  %v51 = vld [vmem:[%s0 + $0x128] sm:$0xff]
  %v52 = vld [vmem:[%s0 + $0x130] sm:$0xff]
  %v53 = vld [vmem:[%s0 + $0x138] sm:$0xff]
  %v54 = vld [vmem:[%s0 + $0x140] sm:$0xff]
  %v55 = vld [vmem:[%s0 + $0x148] sm:$0xff]
  %v56 = vld [vmem:[%s0 + $0x150] sm:$0xff]
  %v57 = vld [vmem:[%s0 + $0x158] sm:$0xff]
  %v58 = vld [vmem:[%s0 + $0x160] sm:$0xff]
  %v59 = vld [vmem:[%s0 + $0x168] sm:$0xff]
  %v60 = vld [vmem:[%s0 + $0x170] sm:$0xff]
  %v61 = vld [vmem:[%s0 + $0x178] sm:$0xff]
  %v62 = vld [vmem:[%s0 + $0x180] sm:$0xff]
  %v63 = vld [vmem:[%s2] sm:$0x1]
  %v64 = vld [vmem:[%s1] sm:$0xff]
  %v65 = vld [vmem:[%s1 + $0x8] sm:$0xff]
  %v66 = vld [vmem:[%s1 + $0x10] sm:$0xff]
  %v67 = vld [vmem:[%s1 + $0x18] sm:$0xff]
  %v68 = vld [vmem:[%s1 + $0x20] sm:$0xf]
  %v70 = vlaneseq
  %v71 = vshrl.u32 %v70, 7
  %v72 = vsub.s32 0, %v71
  %v73 = vrot.slane %v63, %v72
  %vm75 = vcmask 293888
  %v77 = vsel %vm75, %v14, 0
  %v80 = vsel %vm75, %v15, 0
  %v83 = vsel %vm75, %v16, 0
  %v86 = vsel %vm75, %v17, 0
  %v89 = vsel %vm75, %v18, 0
  %v92 = vsel %vm75, %v19, 0
  %v95 = vsel %vm75, %v20, 0
  %v98 = vsel %vm75, %v21, 0
  %v101 = vsel %vm75, %v22, 0
  %v104 = vsel %vm75, %v23, 0
  %v107 = vsel %vm75, %v24, 0
  %v110 = vsel %vm75, %v25, 0
  %v113 = vsel %vm75, %v26, 0
  %v116 = vsel %vm75, %v27, 0
  %v119 = vsel %vm75, %v28, 0
  %v122 = vsel %vm75, %v29, 0
  %v125 = vsel %vm75, %v30, 0
  %v128 = vsel %vm75, %v31, 0
  %v131 = vsel %vm75, %v32, 0
  %v134 = vsel %vm75, %v33, 0
  %v137 = vsel %vm75, %v34, 0
  %v140 = vsel %vm75, %v35, 0
  %v143 = vsel %vm75, %v36, 0
  %v146 = vsel %vm75, %v37, 0
  %v149 = vsel %vm75, %v38, 0
  %v152 = vsel %vm75, %v39, 0
  %v155 = vsel %vm75, %v40, 0
  %v158 = vsel %vm75, %v41, 0
  %v161 = vsel %vm75, %v42, 0
  %v164 = vsel %vm75, %v43, 0
  %v167 = vsel %vm75, %v44, 0
  %v170 = vsel %vm75, %v45, 0
  %v173 = vsel %vm75, %v46, 0
  %v176 = vsel %vm75, %v47, 0
  %v179 = vsel %vm75, %v48, 0
  %v182 = vsel %vm75, %v49, 0
  %v185 = vsel %vm75, %v50, 0
  %v188 = vsel %vm75, %v51, 0
  %v191 = vsel %vm75, %v52, 0
  %v194 = vsel %vm75, %v53, 0
  %v197 = vsel %vm75, %v54, 0
  %v200 = vsel %vm75, %v55, 0
  %v203 = vsel %vm75, %v56, 0
  %v206 = vsel %vm75, %v57, 0
  %v209 = vsel %vm75, %v58, 0
  %v212 = vsel %vm75, %v59, 0
  %v215 = vsel %vm75, %v60, 0
  %v218 = vsel %vm75, %v61, 0
  %v221 = vsel %vm75, %v62, 0
  %vm223 = vcmask 1043456
  %v225 = vsel %vm223, %v68, 0
  %227 = vmatprep.subr.mxu0 0.0
  %228 = vmatpush1.msra.mxu0 0.0
  %229 = vmatprep.subr.mxu0 0.0
  %230 = vmatpush1.msra.mxu0 0.0
  %231 = vmatprep.subr.mxu0 0.0
  %232 = vmatpush1.msra.mxu0 0.0
  %233 = vmatprep.subr.mxu0 0.0
  %234 = vmatpush1.msra.mxu0 0.0
  %235 = vmatprep.subr.mxu0 0.0
  %236 = vmatpush1.msra.mxu0 0.0
  %237 = vmatprep.subr.mxu0 0.0
  %238 = vmatpush1.msra.mxu0 0.0
  %239 = vmatprep.subr.mxu0 0.0
  %240 = vmatpush1.msra.mxu0 0.0
  %241 = vmatprep.subr.mxu0 0.0
  %242 = vmatpush1.msra.mxu0 0.0
  %243 = vmatprep.subr.mxu0 0.0
  %244 = vmatpush1.msra.mxu0 0.0
  %245 = vmatprep.subr.mxu0 0.0
  %246 = vmatpush1.msra.mxu0 0.0
  %247 = vmatprep.subr.mxu0 0.0
  %248 = vmatpush1.msra.mxu0 0.0
  %249 = vmatprep.subr.mxu0 0.0
  %250 = vmatpush1.msra.mxu0 %v225
  %251 = vmatprep.subr.mxu0 0.0
  %252 = vmatpush1.msra.mxu0 %v67
  %253 = vmatprep.subr.mxu0 0.0
  %254 = vmatpush1.msra.mxu0 %v66
  %255 = vmatprep.subr.mxu0 0.0
  %256 = vmatpush1.msra.mxu0 %v65
  %257 = vmatprep.subr.mxu0 0.0
  %258 = vmatpush1.msra.mxu0 %v64
  %259 = vmatprep.subr.mxu0 0.0
  %260 = vmatpush2.msra.mxu0 0.0
  %261 = vmatprep.subr.mxu0 0.0
  %262 = vmatpush2.msra.mxu0 0.0
  %263 = vmatprep.subr.mxu0 0.0
  %264 = vmatpush2.msra.mxu0 0.0
  %265 = vmatprep.subr.mxu0 0.0
  %266 = vmatpush2.msra.mxu0 0.0
  %267 = vmatprep.subr.mxu0 0.0
  %268 = vmatpush2.msra.mxu0 0.0
  %269 = vmatprep.subr.mxu0 0.0
  %270 = vmatpush2.msra.mxu0 0.0
  %271 = vmatprep.subr.mxu0 0.0
  %272 = vmatpush2.msra.mxu0 0.0
  %273 = vmatprep.subr.mxu0 0.0
  %274 = vmatpush2.msra.mxu0 0.0
  %275 = vmatprep.subr.mxu0 0.0
  %276 = vmatpush2.msra.mxu0 0.0
  %277 = vmatprep.subr.mxu0 0.0
  %278 = vmatpush2.msra.mxu0 0.0
  %279 = vmatprep.subr.mxu0 0.0
  %280 = vmatpush2.msra.mxu0 0.0
  %281 = vmatprep.subr.mxu0 0.0
  %282 = vmatpush2.msra.mxu0 0.0
  %283 = vmatprep.subr.mxu0 0.0
  %284 = vmatpush2.msra.mxu0 0.0
  %285 = vmatprep.subr.mxu0 0.0
  %286 = vmatpush2.msra.mxu0 0.0
  %287 = vmatprep.subr.mxu0 0.0
  %288 = vmatpush2.msra.mxu0 0.0
  %289 = vmatprep.subr.mxu0 0.0
  %290 = vmatpush2.msra.mxu0 0.0
  %291 = vmatprep.mubr.f32.mxu0 0.0
  %292 = vmatmul.mubr.f32.gmra.mxu0 %v77
  %v293 = vpop.f32.mrf.mxu0
  %v294 = vadd.f32 %v73, %v293
  %v295 = vpop.f32.mrf.mxu0
  %296 = vmatprep.mubr.f32.mxu0 0.0
  %297 = vmatmul.mubr.f32.gmra.mxu0 %v80
  %v298 = vpop.f32.mrf.mxu0
  %v299 = vadd.f32 %v73, %v298
  %v300 = vpop.f32.mrf.mxu0
  %301 = vmatprep.mubr.f32.mxu0 0.0
  %302 = vmatmul.mubr.f32.gmra.mxu0 %v83
  %v303 = vpop.f32.mrf.mxu0
  %v304 = vadd.f32 %v73, %v303
  %v305 = vpop.f32.mrf.mxu0
  %306 = vmatprep.mubr.f32.mxu0 0.0
  %307 = vmatmul.mubr.f32.gmra.mxu0 %v86
  %v308 = vpop.f32.mrf.mxu0
  %v309 = vadd.f32 %v73, %v308
  %v310 = vpop.f32.mrf.mxu0
  %311 = vmatprep.mubr.f32.mxu0 0.0
  %312 = vmatmul.mubr.f32.gmra.mxu0 %v89
  %v313 = vpop.f32.mrf.mxu0
  %v314 = vadd.f32 %v73, %v313
  %v315 = vpop.f32.mrf.mxu0
  %316 = vmatprep.mubr.f32.mxu0 0.0
  %317 = vmatmul.mubr.f32.gmra.mxu0 %v92
  %v318 = vpop.f32.mrf.mxu0
  %v319 = vadd.f32 %v73, %v318
  %v320 = vpop.f32.mrf.mxu0
  %321 = vmatprep.mubr.f32.mxu0 0.0
  %322 = vmatmul.mubr.f32.gmra.mxu0 %v95
  %v323 = vpop.f32.mrf.mxu0
  %v324 = vadd.f32 %v73, %v323
  %v325 = vpop.f32.mrf.mxu0
  %326 = vmatprep.mubr.f32.mxu0 0.0
  %327 = vmatmul.mubr.f32.gmra.mxu0 %v98
  %v328 = vpop.f32.mrf.mxu0
  %v329 = vadd.f32 %v73, %v328
  %v330 = vpop.f32.mrf.mxu0
  %331 = vmatprep.mubr.f32.mxu0 0.0
  %332 = vmatmul.mubr.f32.gmra.mxu0 %v101
  %v333 = vpop.f32.mrf.mxu0
  %v334 = vadd.f32 %v73, %v333
  %v335 = vpop.f32.mrf.mxu0
  %336 = vmatprep.mubr.f32.mxu0 0.0
  %337 = vmatmul.mubr.f32.gmra.mxu0 %v104
  %v338 = vpop.f32.mrf.mxu0
  %v339 = vadd.f32 %v73, %v338
  %v340 = vpop.f32.mrf.mxu0
  %341 = vmatprep.mubr.f32.mxu0 0.0
  %342 = vmatmul.mubr.f32.gmra.mxu0 %v107
  %v343 = vpop.f32.mrf.mxu0
  %v344 = vadd.f32 %v73, %v343
  %v345 = vpop.f32.mrf.mxu0
  %346 = vmatprep.mubr.f32.mxu0 0.0
  %347 = vmatmul.mubr.f32.gmra.mxu0 %v110
  %v348 = vpop.f32.mrf.mxu0
  %v349 = vadd.f32 %v73, %v348
  %v350 = vpop.f32.mrf.mxu0
  %351 = vmatprep.mubr.f32.mxu0 0.0
  %352 = vmatmul.mubr.f32.gmra.mxu0 %v113
  %v353 = vpop.f32.mrf.mxu0
  %v354 = vadd.f32 %v73, %v353
  %v355 = vpop.f32.mrf.mxu0
  %356 = vmatprep.mubr.f32.mxu0 0.0
  %357 = vmatmul.mubr.f32.gmra.mxu0 %v116
  %v358 = vpop.f32.mrf.mxu0
  %v359 = vadd.f32 %v73, %v358
  %v360 = vpop.f32.mrf.mxu0
  %361 = vmatprep.mubr.f32.mxu0 0.0
  %362 = vmatmul.mubr.f32.gmra.mxu0 %v119
  %v363 = vpop.f32.mrf.mxu0
  %v364 = vadd.f32 %v73, %v363
  %v365 = vpop.f32.mrf.mxu0
  %366 = vmatprep.mubr.f32.mxu0 0.0
  %367 = vmatmul.mubr.f32.gmra.mxu0 %v122
  %v368 = vpop.f32.mrf.mxu0
  %v369 = vadd.f32 %v73, %v368
  %v370 = vpop.f32.mrf.mxu0
  %371 = vmatprep.mubr.f32.mxu0 0.0
  %372 = vmatmul.mubr.f32.gmra.mxu0 %v125
  %v373 = vpop.f32.mrf.mxu0
  %v374 = vadd.f32 %v73, %v373
  %v375 = vpop.f32.mrf.mxu0
  %376 = vmatprep.mubr.f32.mxu0 0.0
  %377 = vmatmul.mubr.f32.gmra.mxu0 %v128
  %v378 = vpop.f32.mrf.mxu0
  %v379 = vadd.f32 %v73, %v378
  %v380 = vpop.f32.mrf.mxu0
  %381 = vmatprep.mubr.f32.mxu0 0.0
  %382 = vmatmul.mubr.f32.gmra.mxu0 %v131
  %v383 = vpop.f32.mrf.mxu0
  %v384 = vadd.f32 %v73, %v383
  %v385 = vpop.f32.mrf.mxu0
  %386 = vmatprep.mubr.f32.mxu0 0.0
  %387 = vmatmul.mubr.f32.gmra.mxu0 %v134
  %v388 = vpop.f32.mrf.mxu0
  %v389 = vadd.f32 %v73, %v388
  %v390 = vpop.f32.mrf.mxu0
  %391 = vmatprep.mubr.f32.mxu0 0.0
  %392 = vmatmul.mubr.f32.gmra.mxu0 %v137
  %v393 = vpop.f32.mrf.mxu0
  %v394 = vadd.f32 %v73, %v393
  %v395 = vpop.f32.mrf.mxu0
  %396 = vmatprep.mubr.f32.mxu0 0.0
  %397 = vmatmul.mubr.f32.gmra.mxu0 %v140
  %v398 = vpop.f32.mrf.mxu0
  %v399 = vadd.f32 %v73, %v398
  %v400 = vpop.f32.mrf.mxu0
  %401 = vmatprep.mubr.f32.mxu0 0.0
  %402 = vmatmul.mubr.f32.gmra.mxu0 %v143
  %v403 = vpop.f32.mrf.mxu0
  %v404 = vadd.f32 %v73, %v403
  %v405 = vpop.f32.mrf.mxu0
  %406 = vmatprep.mubr.f32.mxu0 0.0
  %407 = vmatmul.mubr.f32.gmra.mxu0 %v146
  %v408 = vpop.f32.mrf.mxu0
  %v409 = vadd.f32 %v73, %v408
  %v410 = vpop.f32.mrf.mxu0
  %411 = vmatprep.mubr.f32.mxu0 0.0
  %412 = vmatmul.mubr.f32.gmra.mxu0 %v149
  %v413 = vpop.f32.mrf.mxu0
  %v414 = vadd.f32 %v73, %v413
  %v415 = vpop.f32.mrf.mxu0
  %416 = vmatprep.mubr.f32.mxu0 0.0
  %417 = vmatmul.mubr.f32.gmra.mxu0 %v152
  %v418 = vpop.f32.mrf.mxu0
  %v419 = vadd.f32 %v73, %v418
  %v420 = vpop.f32.mrf.mxu0
  %421 = vmatprep.mubr.f32.mxu0 0.0
  %422 = vmatmul.mubr.f32.gmra.mxu0 %v155
  %v423 = vpop.f32.mrf.mxu0
  %v424 = vadd.f32 %v73, %v423
  %v425 = vpop.f32.mrf.mxu0
  %426 = vmatprep.mubr.f32.mxu0 0.0
  %427 = vmatmul.mubr.f32.gmra.mxu0 %v158
  %v428 = vpop.f32.mrf.mxu0
  %v429 = vadd.f32 %v73, %v428
  %v430 = vpop.f32.mrf.mxu0
  %431 = vmatprep.mubr.f32.mxu0 0.0
  %432 = vmatmul.mubr.f32.gmra.mxu0 %v161
  %v433 = vpop.f32.mrf.mxu0
  %v434 = vadd.f32 %v73, %v433
  %v435 = vpop.f32.mrf.mxu0
  %436 = vmatprep.mubr.f32.mxu0 0.0
  %437 = vmatmul.mubr.f32.gmra.mxu0 %v164
  %v438 = vpop.f32.mrf.mxu0
  %v439 = vadd.f32 %v73, %v438
  %v440 = vpop.f32.mrf.mxu0
  %441 = vmatprep.mubr.f32.mxu0 0.0
  %442 = vmatmul.mubr.f32.gmra.mxu0 %v167
  %v443 = vpop.f32.mrf.mxu0
  %v444 = vadd.f32 %v73, %v443
  %v445 = vpop.f32.mrf.mxu0
  %446 = vmatprep.mubr.f32.mxu0 0.0
  %447 = vmatmul.mubr.f32.gmra.mxu0 %v170
  %v448 = vpop.f32.mrf.mxu0
  %v449 = vadd.f32 %v73, %v448
  %v450 = vpop.f32.mrf.mxu0
  %451 = vmatprep.mubr.f32.mxu0 0.0
  %452 = vmatmul.mubr.f32.gmra.mxu0 %v173
  %v453 = vpop.f32.mrf.mxu0
  %v454 = vadd.f32 %v73, %v453
  %v455 = vpop.f32.mrf.mxu0
  %456 = vmatprep.mubr.f32.mxu0 0.0
  %457 = vmatmul.mubr.f32.gmra.mxu0 %v176
  %v458 = vpop.f32.mrf.mxu0
  %v459 = vadd.f32 %v73, %v458
  %v460 = vpop.f32.mrf.mxu0
  %461 = vmatprep.mubr.f32.mxu0 0.0
  %462 = vmatmul.mubr.f32.gmra.mxu0 %v179
  %v463 = vpop.f32.mrf.mxu0
  %v464 = vadd.f32 %v73, %v463
  %v465 = vpop.f32.mrf.mxu0
  %466 = vmatprep.mubr.f32.mxu0 0.0
  %467 = vmatmul.mubr.f32.gmra.mxu0 %v182
  %v468 = vpop.f32.mrf.mxu0
  %v469 = vadd.f32 %v73, %v468
  %v470 = vpop.f32.mrf.mxu0
  %471 = vmatprep.mubr.f32.mxu0 0.0
  %472 = vmatmul.mubr.f32.gmra.mxu0 %v185
  %v473 = vpop.f32.mrf.mxu0
  %v474 = vadd.f32 %v73, %v473
  %v475 = vpop.f32.mrf.mxu0
  %476 = vmatprep.mubr.f32.mxu0 0.0
  %477 = vmatmul.mubr.f32.gmra.mxu0 %v188
  %v478 = vpop.f32.mrf.mxu0
  %v479 = vadd.f32 %v73, %v478
  %v480 = vpop.f32.mrf.mxu0
  %481 = vmatprep.mubr.f32.mxu0 0.0
  %482 = vmatmul.mubr.f32.gmra.mxu0 %v191
  %v483 = vpop.f32.mrf.mxu0
  %v484 = vadd.f32 %v73, %v483
  %v485 = vpop.f32.mrf.mxu0
  %486 = vmatprep.mubr.f32.mxu0 0.0
  %487 = vmatmul.mubr.f32.gmra.mxu0 %v194
  %v488 = vpop.f32.mrf.mxu0
  %v489 = vadd.f32 %v73, %v488
  %v490 = vpop.f32.mrf.mxu0
  %491 = vmatprep.mubr.f32.mxu0 0.0
  %492 = vmatmul.mubr.f32.gmra.mxu0 %v197
  %v493 = vpop.f32.mrf.mxu0
  %v494 = vadd.f32 %v73, %v493
  %v495 = vpop.f32.mrf.mxu0
  %496 = vmatprep.mubr.f32.mxu0 0.0
  %497 = vmatmul.mubr.f32.gmra.mxu0 %v200
  %v498 = vpop.f32.mrf.mxu0
  %v499 = vadd.f32 %v73, %v498
  %v500 = vpop.f32.mrf.mxu0
  %501 = vmatprep.mubr.f32.mxu0 0.0
  %502 = vmatmul.mubr.f32.gmra.mxu0 %v203
  %v503 = vpop.f32.mrf.mxu0
  %v504 = vadd.f32 %v73, %v503
  %v505 = vpop.f32.mrf.mxu0
  %506 = vmatprep.mubr.f32.mxu0 0.0
  %507 = vmatmul.mubr.f32.gmra.mxu0 %v206
  %v508 = vpop.f32.mrf.mxu0
  %v509 = vadd.f32 %v73, %v508
  %v510 = vpop.f32.mrf.mxu0
  %511 = vmatprep.mubr.f32.mxu0 0.0
  %512 = vmatmul.mubr.f32.gmra.mxu0 %v209
  %v513 = vpop.f32.mrf.mxu0
  %v514 = vadd.f32 %v73, %v513
  %v515 = vpop.f32.mrf.mxu0
  %516 = vmatprep.mubr.f32.mxu0 0.0
  %517 = vmatmul.mubr.f32.gmra.mxu0 %v212
  %v518 = vpop.f32.mrf.mxu0
  %v519 = vadd.f32 %v73, %v518
  %v520 = vpop.f32.mrf.mxu0
  %521 = vmatprep.mubr.f32.mxu0 0.0
  %522 = vmatmul.mubr.f32.gmra.mxu0 %v215
  %v523 = vpop.f32.mrf.mxu0
  %v524 = vadd.f32 %v73, %v523
  %v525 = vpop.f32.mrf.mxu0
  %526 = vmatprep.mubr.f32.mxu0 0.0
  %527 = vmatmul.mubr.f32.gmra.mxu0 %v218
  %v528 = vpop.f32.mrf.mxu0
  %v529 = vadd.f32 %v73, %v528
  %v530 = vpop.f32.mrf.mxu0
  %531 = vmatprep.mubr.f32.mxu0 0.0
  %532 = vmatmul.mubr.f32.gmra.mxu0 %v221
  %v533 = vpop.f32.mrf.mxu0
  %v534 = vadd.f32 %v73, %v533
  %v535 = vpop.f32.mrf.mxu0
  %536 = vdwg.mxu0
  %v537 = vmax.f32 %v294, 0.0
  %v538 = vmax.f32 %v299, 0.0
  %v539 = vmax.f32 %v304, 0.0
  %v540 = vmax.f32 %v309, 0.0
  %v541 = vmax.f32 %v314, 0.0
  %v542 = vmax.f32 %v319, 0.0
  %v543 = vmax.f32 %v324, 0.0
  %v544 = vmax.f32 %v329, 0.0
  %v545 = vmax.f32 %v334, 0.0
  %v546 = vmax.f32 %v339, 0.0
  %v547 = vmax.f32 %v344, 0.0
  %v548 = vmax.f32 %v349, 0.0
  %v549 = vmax.f32 %v354, 0.0
  %v550 = vmax.f32 %v359, 0.0
  %v551 = vmax.f32 %v364, 0.0
  %v552 = vmax.f32 %v369, 0.0
  %v553 = vmax.f32 %v374, 0.0
  %v554 = vmax.f32 %v379, 0.0
  %v555 = vmax.f32 %v384, 0.0
  %v556 = vmax.f32 %v389, 0.0
  %v557 = vmax.f32 %v394, 0.0
  %v558 = vmax.f32 %v399, 0.0
  %v559 = vmax.f32 %v404, 0.0
  %v560 = vmax.f32 %v409, 0.0
  %v561 = vmax.f32 %v414, 0.0
  %v562 = vmax.f32 %v419, 0.0
  %v563 = vmax.f32 %v424, 0.0
  %v564 = vmax.f32 %v429, 0.0
  %v565 = vmax.f32 %v434, 0.0
  %v566 = vmax.f32 %v439, 0.0
  %v567 = vmax.f32 %v444, 0.0
  %v568 = vmax.f32 %v449, 0.0
  %v569 = vmax.f32 %v454, 0.0
  %v570 = vmax.f32 %v459, 0.0
  %v571 = vmax.f32 %v464, 0.0
  %v572 = vmax.f32 %v469, 0.0
  %v573 = vmax.f32 %v474, 0.0
  %v574 = vmax.f32 %v479, 0.0
  %v575 = vmax.f32 %v484, 0.0
  %v576 = vmax.f32 %v489, 0.0
  %v577 = vmax.f32 %v494, 0.0
  %v578 = vmax.f32 %v499, 0.0
  %v579 = vmax.f32 %v504, 0.0
  %v580 = vmax.f32 %v509, 0.0
  %v581 = vmax.f32 %v514, 0.0
  %v582 = vmax.f32 %v519, 0.0
  %v583 = vmax.f32 %v524, 0.0
  %v584 = vmax.f32 %v529, 0.0
  %v585 = vmax.f32 %v534, 0.0
  %s586 = scalar_lea.vmem %s1, 40
  %v587 = vld [vmem:[%s586] sm:$0xff]
  %v588 = vld [vmem:[%s586 + $0x8] sm:$0xff]
  %v589 = vld [vmem:[%s586 + $0x10] sm:$0xff]
  %v590 = vld [vmem:[%s586 + $0x18] sm:$0xff]
  %v591 = vld [vmem:[%s586 + $0x20] sm:$0xf]
  %v593 = vsel %vm223, %v591, 0
  %595 = vmatprep.subr.mxu0 0.0
  %596 = vmatpush1.msra.mxu0 0.0
  %597 = vmatprep.subr.mxu0 0.0
  %598 = vmatpush1.msra.mxu0 0.0
  %599 = vmatprep.subr.mxu0 0.0
  %600 = vmatpush1.msra.mxu0 0.0
  %601 = vmatprep.subr.mxu0 0.0
  %602 = vmatpush1.msra.mxu0 0.0
  %603 = vmatprep.subr.mxu0 0.0
  %604 = vmatpush1.msra.mxu0 0.0
  %605 = vmatprep.subr.mxu0 0.0
  %606 = vmatpush1.msra.mxu0 0.0
  %607 = vmatprep.subr.mxu0 0.0
  %608 = vmatpush1.msra.mxu0 0.0
  %609 = vmatprep.subr.mxu0 0.0
  %610 = vmatpush1.msra.mxu0 0.0
  %611 = vmatprep.subr.mxu0 0.0
  %612 = vmatpush1.msra.mxu0 0.0
  %613 = vmatprep.subr.mxu0 0.0
  %614 = vmatpush1.msra.mxu0 0.0
  %615 = vmatprep.subr.mxu0 0.0
  %616 = vmatpush1.msra.mxu0 0.0
  %617 = vmatprep.subr.mxu0 0.0
  %618 = vmatpush1.msra.mxu0 %v593
  %619 = vmatprep.subr.mxu0 0.0
  %620 = vmatpush1.msra.mxu0 %v590
  %621 = vmatprep.subr.mxu0 0.0
  %622 = vmatpush1.msra.mxu0 %v589
  %623 = vmatprep.subr.mxu0 0.0
  %624 = vmatpush1.msra.mxu0 %v588
  %625 = vmatprep.subr.mxu0 0.0
  %626 = vmatpush1.msra.mxu0 %v587
  %627 = vmatprep.subr.mxu0 0.0
  %628 = vmatpush2.msra.mxu0 0.0
  %629 = vmatprep.subr.mxu0 0.0
  %630 = vmatpush2.msra.mxu0 0.0
  %631 = vmatprep.subr.mxu0 0.0
  %632 = vmatpush2.msra.mxu0 0.0
  %633 = vmatprep.subr.mxu0 0.0
  %634 = vmatpush2.msra.mxu0 0.0
  %635 = vmatprep.subr.mxu0 0.0
  %636 = vmatpush2.msra.mxu0 0.0
  %637 = vmatprep.subr.mxu0 0.0
  %638 = vmatpush2.msra.mxu0 0.0
  %639 = vmatprep.subr.mxu0 0.0
  %640 = vmatpush2.msra.mxu0 0.0
  %641 = vmatprep.subr.mxu0 0.0
  %642 = vmatpush2.msra.mxu0 0.0
  %643 = vmatprep.subr.mxu0 0.0
  %644 = vmatpush2.msra.mxu0 0.0
  %645 = vmatprep.subr.mxu0 0.0
  %646 = vmatpush2.msra.mxu0 0.0
  %647 = vmatprep.subr.mxu0 0.0
  %648 = vmatpush2.msra.mxu0 0.0
  %649 = vmatprep.subr.mxu0 0.0
  %650 = vmatpush2.msra.mxu0 0.0
  %651 = vmatprep.subr.mxu0 0.0
  %652 = vmatpush2.msra.mxu0 0.0
  %653 = vmatprep.subr.mxu0 0.0
  %654 = vmatpush2.msra.mxu0 0.0
  %655 = vmatprep.subr.mxu0 0.0
  %656 = vmatpush2.msra.mxu0 0.0
  %657 = vmatprep.subr.mxu0 0.0
  %658 = vmatpush2.msra.mxu0 0.0
  %659 = vmatprep.mubr.f32.mxu0 0.0
  %660 = vmatmul.mubr.f32.gmra.mxu0 %v77
  %v661 = vpop.f32.mrf.mxu0
  %v662 = vadd.f32 %v73, %v661
  %v663 = vpop.f32.mrf.mxu0
  %664 = vmatprep.mubr.f32.mxu0 0.0
  %665 = vmatmul.mubr.f32.gmra.mxu0 %v80
  %v666 = vpop.f32.mrf.mxu0
  %v667 = vadd.f32 %v73, %v666
  %v668 = vpop.f32.mrf.mxu0
  %669 = vmatprep.mubr.f32.mxu0 0.0
  %670 = vmatmul.mubr.f32.gmra.mxu0 %v83
  %v671 = vpop.f32.mrf.mxu0
  %v672 = vadd.f32 %v73, %v671
  %v673 = vpop.f32.mrf.mxu0
  %674 = vmatprep.mubr.f32.mxu0 0.0
  %675 = vmatmul.mubr.f32.gmra.mxu0 %v86
  %v676 = vpop.f32.mrf.mxu0
  %v677 = vadd.f32 %v73, %v676
  %v678 = vpop.f32.mrf.mxu0
  %679 = vmatprep.mubr.f32.mxu0 0.0
  %680 = vmatmul.mubr.f32.gmra.mxu0 %v89
  %v681 = vpop.f32.mrf.mxu0
  %v682 = vadd.f32 %v73, %v681
  %v683 = vpop.f32.mrf.mxu0
  %684 = vmatprep.mubr.f32.mxu0 0.0
  %685 = vmatmul.mubr.f32.gmra.mxu0 %v92
  %v686 = vpop.f32.mrf.mxu0
  %v687 = vadd.f32 %v73, %v686
  %v688 = vpop.f32.mrf.mxu0
  %689 = vmatprep.mubr.f32.mxu0 0.0
  %690 = vmatmul.mubr.f32.gmra.mxu0 %v95
  %v691 = vpop.f32.mrf.mxu0
  %v692 = vadd.f32 %v73, %v691
  %v693 = vpop.f32.mrf.mxu0
  %694 = vmatprep.mubr.f32.mxu0 0.0
  %695 = vmatmul.mubr.f32.gmra.mxu0 %v98
  %v696 = vpop.f32.mrf.mxu0
  %v697 = vadd.f32 %v73, %v696
  %v698 = vpop.f32.mrf.mxu0
  %699 = vmatprep.mubr.f32.mxu0 0.0
  %700 = vmatmul.mubr.f32.gmra.mxu0 %v101
  %v701 = vpop.f32.mrf.mxu0
  %v702 = vadd.f32 %v73, %v701
  %v703 = vpop.f32.mrf.mxu0
  %704 = vmatprep.mubr.f32.mxu0 0.0
  %705 = vmatmul.mubr.f32.gmra.mxu0 %v104
  %v706 = vpop.f32.mrf.mxu0
  %v707 = vadd.f32 %v73, %v706
  %v708 = vpop.f32.mrf.mxu0
  %709 = vmatprep.mubr.f32.mxu0 0.0
  %710 = vmatmul.mubr.f32.gmra.mxu0 %v107
  %v711 = vpop.f32.mrf.mxu0
  %v712 = vadd.f32 %v73, %v711
  %v713 = vpop.f32.mrf.mxu0
  %714 = vmatprep.mubr.f32.mxu0 0.0
  %715 = vmatmul.mubr.f32.gmra.mxu0 %v110
  %v716 = vpop.f32.mrf.mxu0
  %v717 = vadd.f32 %v73, %v716
  %v718 = vpop.f32.mrf.mxu0
  %719 = vmatprep.mubr.f32.mxu0 0.0
  %720 = vmatmul.mubr.f32.gmra.mxu0 %v113
  %v721 = vpop.f32.mrf.mxu0
  %v722 = vadd.f32 %v73, %v721
  %v723 = vpop.f32.mrf.mxu0
  %724 = vmatprep.mubr.f32.mxu0 0.0
  %725 = vmatmul.mubr.f32.gmra.mxu0 %v116
  %v726 = vpop.f32.mrf.mxu0
  %v727 = vadd.f32 %v73, %v726
  %v728 = vpop.f32.mrf.mxu0
  %729 = vmatprep.mubr.f32.mxu0 0.0
  %730 = vmatmul.mubr.f32.gmra.mxu0 %v119
  %v731 = vpop.f32.mrf.mxu0
  %v732 = vadd.f32 %v73, %v731
  %v733 = vpop.f32.mrf.mxu0
  %734 = vmatprep.mubr.f32.mxu0 0.0
  %735 = vmatmul.mubr.f32.gmra.mxu0 %v122
  %v736 = vpop.f32.mrf.mxu0
  %v737 = vadd.f32 %v73, %v736
  %v738 = vpop.f32.mrf.mxu0
  %739 = vmatprep.mubr.f32.mxu0 0.0
  %740 = vmatmul.mubr.f32.gmra.mxu0 %v125
  %v741 = vpop.f32.mrf.mxu0
  %v742 = vadd.f32 %v73, %v741
  %v743 = vpop.f32.mrf.mxu0
  %744 = vmatprep.mubr.f32.mxu0 0.0
  %745 = vmatmul.mubr.f32.gmra.mxu0 %v128
  %v746 = vpop.f32.mrf.mxu0
  %v747 = vadd.f32 %v73, %v746
  %v748 = vpop.f32.mrf.mxu0
  %749 = vmatprep.mubr.f32.mxu0 0.0
  %750 = vmatmul.mubr.f32.gmra.mxu0 %v131
  %v751 = vpop.f32.mrf.mxu0
  %v752 = vadd.f32 %v73, %v751
  %v753 = vpop.f32.mrf.mxu0
  %754 = vmatprep.mubr.f32.mxu0 0.0
  %755 = vmatmul.mubr.f32.gmra.mxu0 %v134
  %v756 = vpop.f32.mrf.mxu0
  %v757 = vadd.f32 %v73, %v756
  %v758 = vpop.f32.mrf.mxu0
  %759 = vmatprep.mubr.f32.mxu0 0.0
  %760 = vmatmul.mubr.f32.gmra.mxu0 %v137
  %v761 = vpop.f32.mrf.mxu0
  %v762 = vadd.f32 %v73, %v761
  %v763 = vpop.f32.mrf.mxu0
  %764 = vmatprep.mubr.f32.mxu0 0.0
  %765 = vmatmul.mubr.f32.gmra.mxu0 %v140
  %v766 = vpop.f32.mrf.mxu0
  %v767 = vadd.f32 %v73, %v766
  %v768 = vpop.f32.mrf.mxu0
  %769 = vmatprep.mubr.f32.mxu0 0.0
  %770 = vmatmul.mubr.f32.gmra.mxu0 %v143
  %v771 = vpop.f32.mrf.mxu0
  %v772 = vadd.f32 %v73, %v771
  %v773 = vpop.f32.mrf.mxu0
  %774 = vmatprep.mubr.f32.mxu0 0.0
  %775 = vmatmul.mubr.f32.gmra.mxu0 %v146
  %v776 = vpop.f32.mrf.mxu0
  %v777 = vadd.f32 %v73, %v776
  %v778 = vpop.f32.mrf.mxu0
  %779 = vmatprep.mubr.f32.mxu0 0.0
  %780 = vmatmul.mubr.f32.gmra.mxu0 %v149
  %v781 = vpop.f32.mrf.mxu0
  %v782 = vadd.f32 %v73, %v781
  %v783 = vpop.f32.mrf.mxu0
  %784 = vmatprep.mubr.f32.mxu0 0.0
  %785 = vmatmul.mubr.f32.gmra.mxu0 %v152
  %v786 = vpop.f32.mrf.mxu0
  %v787 = vadd.f32 %v73, %v786
  %v788 = vpop.f32.mrf.mxu0
  %789 = vmatprep.mubr.f32.mxu0 0.0
  %790 = vmatmul.mubr.f32.gmra.mxu0 %v155
  %v791 = vpop.f32.mrf.mxu0
  %v792 = vadd.f32 %v73, %v791
  %v793 = vpop.f32.mrf.mxu0
  %794 = vmatprep.mubr.f32.mxu0 0.0
  %795 = vmatmul.mubr.f32.gmra.mxu0 %v158
  %v796 = vpop.f32.mrf.mxu0
  %v797 = vadd.f32 %v73, %v796
  %v798 = vpop.f32.mrf.mxu0
  %799 = vmatprep.mubr.f32.mxu0 0.0
  %800 = vmatmul.mubr.f32.gmra.mxu0 %v161
  %v801 = vpop.f32.mrf.mxu0
  %v802 = vadd.f32 %v73, %v801
  %v803 = vpop.f32.mrf.mxu0
  %804 = vmatprep.mubr.f32.mxu0 0.0
  %805 = vmatmul.mubr.f32.gmra.mxu0 %v164
  %v806 = vpop.f32.mrf.mxu0
  %v807 = vadd.f32 %v73, %v806
  %v808 = vpop.f32.mrf.mxu0
  %809 = vmatprep.mubr.f32.mxu0 0.0
  %810 = vmatmul.mubr.f32.gmra.mxu0 %v167
  %v811 = vpop.f32.mrf.mxu0
  %v812 = vadd.f32 %v73, %v811
  %v813 = vpop.f32.mrf.mxu0
  %814 = vmatprep.mubr.f32.mxu0 0.0
  %815 = vmatmul.mubr.f32.gmra.mxu0 %v170
  %v816 = vpop.f32.mrf.mxu0
  %v817 = vadd.f32 %v73, %v816
  %v818 = vpop.f32.mrf.mxu0
  %819 = vmatprep.mubr.f32.mxu0 0.0
  %820 = vmatmul.mubr.f32.gmra.mxu0 %v173
  %v821 = vpop.f32.mrf.mxu0
  %v822 = vadd.f32 %v73, %v821
  %v823 = vpop.f32.mrf.mxu0
  %824 = vmatprep.mubr.f32.mxu0 0.0
  %825 = vmatmul.mubr.f32.gmra.mxu0 %v176
  %v826 = vpop.f32.mrf.mxu0
  %v827 = vadd.f32 %v73, %v826
  %v828 = vpop.f32.mrf.mxu0
  %829 = vmatprep.mubr.f32.mxu0 0.0
  %830 = vmatmul.mubr.f32.gmra.mxu0 %v179
  %v831 = vpop.f32.mrf.mxu0
  %v832 = vadd.f32 %v73, %v831
  %v833 = vpop.f32.mrf.mxu0
  %834 = vmatprep.mubr.f32.mxu0 0.0
  %835 = vmatmul.mubr.f32.gmra.mxu0 %v182
  %v836 = vpop.f32.mrf.mxu0
  %v837 = vadd.f32 %v73, %v836
  %v838 = vpop.f32.mrf.mxu0
  %839 = vmatprep.mubr.f32.mxu0 0.0
  %840 = vmatmul.mubr.f32.gmra.mxu0 %v185
  %v841 = vpop.f32.mrf.mxu0
  %v842 = vadd.f32 %v73, %v841
  %v843 = vpop.f32.mrf.mxu0
  %844 = vmatprep.mubr.f32.mxu0 0.0
  %845 = vmatmul.mubr.f32.gmra.mxu0 %v188
  %v846 = vpop.f32.mrf.mxu0
  %v847 = vadd.f32 %v73, %v846
  %v848 = vpop.f32.mrf.mxu0
  %849 = vmatprep.mubr.f32.mxu0 0.0
  %850 = vmatmul.mubr.f32.gmra.mxu0 %v191
  %v851 = vpop.f32.mrf.mxu0
  %v852 = vadd.f32 %v73, %v851
  %v853 = vpop.f32.mrf.mxu0
  %854 = vmatprep.mubr.f32.mxu0 0.0
  %855 = vmatmul.mubr.f32.gmra.mxu0 %v194
  %v856 = vpop.f32.mrf.mxu0
  %v857 = vadd.f32 %v73, %v856
  %v858 = vpop.f32.mrf.mxu0
  %859 = vmatprep.mubr.f32.mxu0 0.0
  %860 = vmatmul.mubr.f32.gmra.mxu0 %v197
  %v861 = vpop.f32.mrf.mxu0
  %v862 = vadd.f32 %v73, %v861
  %v863 = vpop.f32.mrf.mxu0
  %864 = vmatprep.mubr.f32.mxu0 0.0
  %865 = vmatmul.mubr.f32.gmra.mxu0 %v200
  %v866 = vpop.f32.mrf.mxu0
  %v867 = vadd.f32 %v73, %v866
  %v868 = vpop.f32.mrf.mxu0
  %869 = vmatprep.mubr.f32.mxu0 0.0
  %870 = vmatmul.mubr.f32.gmra.mxu0 %v203
  %v871 = vpop.f32.mrf.mxu0
  %v872 = vadd.f32 %v73, %v871
  %v873 = vpop.f32.mrf.mxu0
  %874 = vmatprep.mubr.f32.mxu0 0.0
  %875 = vmatmul.mubr.f32.gmra.mxu0 %v206
  %v876 = vpop.f32.mrf.mxu0
  %v877 = vadd.f32 %v73, %v876
  %v878 = vpop.f32.mrf.mxu0
  %879 = vmatprep.mubr.f32.mxu0 0.0
  %880 = vmatmul.mubr.f32.gmra.mxu0 %v209
  %v881 = vpop.f32.mrf.mxu0
  %v882 = vadd.f32 %v73, %v881
  %v883 = vpop.f32.mrf.mxu0
  %884 = vmatprep.mubr.f32.mxu0 0.0
  %885 = vmatmul.mubr.f32.gmra.mxu0 %v212
  %v886 = vpop.f32.mrf.mxu0
  %v887 = vadd.f32 %v73, %v886
  %v888 = vpop.f32.mrf.mxu0
  %889 = vmatprep.mubr.f32.mxu0 0.0
  %890 = vmatmul.mubr.f32.gmra.mxu0 %v215
  %v891 = vpop.f32.mrf.mxu0
  %v892 = vadd.f32 %v73, %v891
  %v893 = vpop.f32.mrf.mxu0
  %894 = vmatprep.mubr.f32.mxu0 0.0
  %895 = vmatmul.mubr.f32.gmra.mxu0 %v218
  %v896 = vpop.f32.mrf.mxu0
  %v897 = vadd.f32 %v73, %v896
  %v898 = vpop.f32.mrf.mxu0
  %899 = vmatprep.mubr.f32.mxu0 0.0
  %900 = vmatmul.mubr.f32.gmra.mxu0 %v221
  %v901 = vpop.f32.mrf.mxu0
  %v902 = vadd.f32 %v73, %v901
  %v903 = vpop.f32.mrf.mxu0
  %904 = vdwg.mxu0
  %v905 = vmax.f32 %v662, 0.0
  %v906 = vmax.f32 %v667, 0.0
  %v907 = vmax.f32 %v672, 0.0
  %v908 = vmax.f32 %v677, 0.0
  %v909 = vmax.f32 %v682, 0.0
  %v910 = vmax.f32 %v687, 0.0
  %v911 = vmax.f32 %v692, 0.0
  %v912 = vmax.f32 %v697, 0.0
  %v913 = vmax.f32 %v702, 0.0
  %v914 = vmax.f32 %v707, 0.0
  %v915 = vmax.f32 %v712, 0.0
  %v916 = vmax.f32 %v717, 0.0
  %v917 = vmax.f32 %v722, 0.0
  %v918 = vmax.f32 %v727, 0.0
  %v919 = vmax.f32 %v732, 0.0
  %v920 = vmax.f32 %v737, 0.0
  %v921 = vmax.f32 %v742, 0.0
  %v922 = vmax.f32 %v747, 0.0
  %v923 = vmax.f32 %v752, 0.0
  %v924 = vmax.f32 %v757, 0.0
  %v925 = vmax.f32 %v762, 0.0
  %v926 = vmax.f32 %v767, 0.0
  %v927 = vmax.f32 %v772, 0.0
  %v928 = vmax.f32 %v777, 0.0
  %v929 = vmax.f32 %v782, 0.0
  %v930 = vmax.f32 %v787, 0.0
  %v931 = vmax.f32 %v792, 0.0
  %v932 = vmax.f32 %v797, 0.0
  %v933 = vmax.f32 %v802, 0.0
  %v934 = vmax.f32 %v807, 0.0
  %v935 = vmax.f32 %v812, 0.0
  %v936 = vmax.f32 %v817, 0.0
  %v937 = vmax.f32 %v822, 0.0
  %v938 = vmax.f32 %v827, 0.0
  %v939 = vmax.f32 %v832, 0.0
  %v940 = vmax.f32 %v837, 0.0
  %v941 = vmax.f32 %v842, 0.0
  %v942 = vmax.f32 %v847, 0.0
  %v943 = vmax.f32 %v852, 0.0
  %v944 = vmax.f32 %v857, 0.0
  %v945 = vmax.f32 %v862, 0.0
  %v946 = vmax.f32 %v867, 0.0
  %v947 = vmax.f32 %v872, 0.0
  %v948 = vmax.f32 %v877, 0.0
  %v949 = vmax.f32 %v882, 0.0
  %v950 = vmax.f32 %v887, 0.0
  %v951 = vmax.f32 %v892, 0.0
  %v952 = vmax.f32 %v897, 0.0
  %v953 = vmax.f32 %v902, 0.0
  %v954 = vmax.f32 %v537, %v905
  %v955 = vmax.f32 %v538, %v906
  %v956 = vmax.f32 %v539, %v907
  %v957 = vmax.f32 %v540, %v908
  %v958 = vmax.f32 %v541, %v909
  %v959 = vmax.f32 %v542, %v910
  %v960 = vmax.f32 %v543, %v911
  %v961 = vmax.f32 %v544, %v912
  %v962 = vmax.f32 %v545, %v913
  %v963 = vmax.f32 %v546, %v914
  %v964 = vmax.f32 %v547, %v915
  %v965 = vmax.f32 %v548, %v916
  %v966 = vmax.f32 %v549, %v917
  %v967 = vmax.f32 %v550, %v918
  %v968 = vmax.f32 %v551, %v919
  %v969 = vmax.f32 %v552, %v920
  %v970 = vmax.f32 %v553, %v921
  %v971 = vmax.f32 %v554, %v922
  %v972 = vmax.f32 %v555, %v923
  %v973 = vmax.f32 %v556, %v924
  %v974 = vmax.f32 %v557, %v925
  %v975 = vmax.f32 %v558, %v926
  %v976 = vmax.f32 %v559, %v927
  %v977 = vmax.f32 %v560, %v928
  %v978 = vmax.f32 %v561, %v929
  %v979 = vmax.f32 %v562, %v930
  %v980 = vmax.f32 %v563, %v931
  %v981 = vmax.f32 %v564, %v932
  %v982 = vmax.f32 %v565, %v933
  %v983 = vmax.f32 %v566, %v934
  %v984 = vmax.f32 %v567, %v935
  %v985 = vmax.f32 %v568, %v936
  %v986 = vmax.f32 %v569, %v937
  %v987 = vmax.f32 %v570, %v938
  %v988 = vmax.f32 %v571, %v939
  %v989 = vmax.f32 %v572, %v940
  %v990 = vmax.f32 %v573, %v941
  %v991 = vmax.f32 %v574, %v942
  %v992 = vmax.f32 %v575, %v943
  %v993 = vmax.f32 %v576, %v944
  %v994 = vmax.f32 %v577, %v945
  %v995 = vmax.f32 %v578, %v946
  %v996 = vmax.f32 %v579, %v947
  %v997 = vmax.f32 %v580, %v948
  %v998 = vmax.f32 %v581, %v949
  %v999 = vmax.f32 %v582, %v950
  %v1000 = vmax.f32 %v583, %v951
  %v1001 = vmax.f32 %v584, %v952
  %v1002 = vmax.f32 %v585, %v953
  %s1003 = scalar_lea.vmem %s1, 80
  %v1004 = vld [vmem:[%s1003] sm:$0xff]
  %v1005 = vld [vmem:[%s1003 + $0x8] sm:$0xff]
  %v1006 = vld [vmem:[%s1003 + $0x10] sm:$0xff]
  %v1007 = vld [vmem:[%s1003 + $0x18] sm:$0xff]
  %v1008 = vld [vmem:[%s1003 + $0x20] sm:$0xf]
  %v1010 = vsel %vm223, %v1008, 0
  %1012 = vmatprep.subr.mxu0 0.0
  %1013 = vmatpush1.msra.mxu0 0.0
  %1014 = vmatprep.subr.mxu0 0.0
  %1015 = vmatpush1.msra.mxu0 0.0
  %1016 = vmatprep.subr.mxu0 0.0
  %1017 = vmatpush1.msra.mxu0 0.0
  %1018 = vmatprep.subr.mxu0 0.0
  %1019 = vmatpush1.msra.mxu0 0.0
  %1020 = vmatprep.subr.mxu0 0.0
  %1021 = vmatpush1.msra.mxu0 0.0
  %1022 = vmatprep.subr.mxu0 0.0
  %1023 = vmatpush1.msra.mxu0 0.0
  %1024 = vmatprep.subr.mxu0 0.0
  %1025 = vmatpush1.msra.mxu0 0.0
  %1026 = vmatprep.subr.mxu0 0.0
  %1027 = vmatpush1.msra.mxu0 0.0
  %1028 = vmatprep.subr.mxu0 0.0
  %1029 = vmatpush1.msra.mxu0 0.0
  %1030 = vmatprep.subr.mxu0 0.0
  %1031 = vmatpush1.msra.mxu0 0.0
  %1032 = vmatprep.subr.mxu0 0.0
  %1033 = vmatpush1.msra.mxu0 0.0
  %1034 = vmatprep.subr.mxu0 0.0
  %1035 = vmatpush1.msra.mxu0 %v1010
  %1036 = vmatprep.subr.mxu0 0.0
  %1037 = vmatpush1.msra.mxu0 %v1007
  %1038 = vmatprep.subr.mxu0 0.0
  %1039 = vmatpush1.msra.mxu0 %v1006
  %1040 = vmatprep.subr.mxu0 0.0
  %1041 = vmatpush1.msra.mxu0 %v1005
  %1042 = vmatprep.subr.mxu0 0.0
  %1043 = vmatpush1.msra.mxu0 %v1004
  %1044 = vmatprep.subr.mxu0 0.0
  %1045 = vmatpush2.msra.mxu0 0.0
  %1046 = vmatprep.subr.mxu0 0.0
  %1047 = vmatpush2.msra.mxu0 0.0
  %1048 = vmatprep.subr.mxu0 0.0
  %1049 = vmatpush2.msra.mxu0 0.0
  %1050 = vmatprep.subr.mxu0 0.0
  %1051 = vmatpush2.msra.mxu0 0.0
  %1052 = vmatprep.subr.mxu0 0.0
  %1053 = vmatpush2.msra.mxu0 0.0
  %1054 = vmatprep.subr.mxu0 0.0
  %1055 = vmatpush2.msra.mxu0 0.0
  %1056 = vmatprep.subr.mxu0 0.0
  %1057 = vmatpush2.msra.mxu0 0.0
  %1058 = vmatprep.subr.mxu0 0.0
  %1059 = vmatpush2.msra.mxu0 0.0
  %1060 = vmatprep.subr.mxu0 0.0
  %1061 = vmatpush2.msra.mxu0 0.0
  %1062 = vmatprep.subr.mxu0 0.0
  %1063 = vmatpush2.msra.mxu0 0.0
  %1064 = vmatprep.subr.mxu0 0.0
  %1065 = vmatpush2.msra.mxu0 0.0
  %1066 = vmatprep.subr.mxu0 0.0
  %1067 = vmatpush2.msra.mxu0 0.0
  %1068 = vmatprep.subr.mxu0 0.0
  %1069 = vmatpush2.msra.mxu0 0.0
  %1070 = vmatprep.subr.mxu0 0.0
  %1071 = vmatpush2.msra.mxu0 0.0
  %1072 = vmatprep.subr.mxu0 0.0
  %1073 = vmatpush2.msra.mxu0 0.0
  %1074 = vmatprep.subr.mxu0 0.0
  %1075 = vmatpush2.msra.mxu0 0.0
  %1076 = vmatprep.mubr.f32.mxu0 0.0
  %1077 = vmatmul.mubr.f32.gmra.mxu0 %v77
  %v1078 = vpop.f32.mrf.mxu0
  %v1079 = vadd.f32 %v73, %v1078
  %v1080 = vpop.f32.mrf.mxu0
  %1081 = vmatprep.mubr.f32.mxu0 0.0
  %1082 = vmatmul.mubr.f32.gmra.mxu0 %v80
  %v1083 = vpop.f32.mrf.mxu0
  %v1084 = vadd.f32 %v73, %v1083
  %v1085 = vpop.f32.mrf.mxu0
  %1086 = vmatprep.mubr.f32.mxu0 0.0
  %1087 = vmatmul.mubr.f32.gmra.mxu0 %v83
  %v1088 = vpop.f32.mrf.mxu0
  %v1089 = vadd.f32 %v73, %v1088
  %v1090 = vpop.f32.mrf.mxu0
  %1091 = vmatprep.mubr.f32.mxu0 0.0
  %1092 = vmatmul.mubr.f32.gmra.mxu0 %v86
  %v1093 = vpop.f32.mrf.mxu0
  %v1094 = vadd.f32 %v73, %v1093
  %v1095 = vpop.f32.mrf.mxu0
  %1096 = vmatprep.mubr.f32.mxu0 0.0
  %1097 = vmatmul.mubr.f32.gmra.mxu0 %v89
  %v1098 = vpop.f32.mrf.mxu0
  %v1099 = vadd.f32 %v73, %v1098
  %v1100 = vpop.f32.mrf.mxu0
  %1101 = vmatprep.mubr.f32.mxu0 0.0
  %1102 = vmatmul.mubr.f32.gmra.mxu0 %v92
  %v1103 = vpop.f32.mrf.mxu0
  %v1104 = vadd.f32 %v73, %v1103
  %v1105 = vpop.f32.mrf.mxu0
  %1106 = vmatprep.mubr.f32.mxu0 0.0
  %1107 = vmatmul.mubr.f32.gmra.mxu0 %v95
  %v1108 = vpop.f32.mrf.mxu0
  %v1109 = vadd.f32 %v73, %v1108
  %v1110 = vpop.f32.mrf.mxu0
  %1111 = vmatprep.mubr.f32.mxu0 0.0
  %1112 = vmatmul.mubr.f32.gmra.mxu0 %v98
  %v1113 = vpop.f32.mrf.mxu0
  %v1114 = vadd.f32 %v73, %v1113
  %v1115 = vpop.f32.mrf.mxu0
  %1116 = vmatprep.mubr.f32.mxu0 0.0
  %1117 = vmatmul.mubr.f32.gmra.mxu0 %v101
  %v1118 = vpop.f32.mrf.mxu0
  %v1119 = vadd.f32 %v73, %v1118
  %v1120 = vpop.f32.mrf.mxu0
  %1121 = vmatprep.mubr.f32.mxu0 0.0
  %1122 = vmatmul.mubr.f32.gmra.mxu0 %v104
  %v1123 = vpop.f32.mrf.mxu0
  %v1124 = vadd.f32 %v73, %v1123
  %v1125 = vpop.f32.mrf.mxu0
  %1126 = vmatprep.mubr.f32.mxu0 0.0
  %1127 = vmatmul.mubr.f32.gmra.mxu0 %v107
  %v1128 = vpop.f32.mrf.mxu0
  %v1129 = vadd.f32 %v73, %v1128
  %v1130 = vpop.f32.mrf.mxu0
  %1131 = vmatprep.mubr.f32.mxu0 0.0
  %1132 = vmatmul.mubr.f32.gmra.mxu0 %v110
  %v1133 = vpop.f32.mrf.mxu0
  %v1134 = vadd.f32 %v73, %v1133
  %v1135 = vpop.f32.mrf.mxu0
  %1136 = vmatprep.mubr.f32.mxu0 0.0
  %1137 = vmatmul.mubr.f32.gmra.mxu0 %v113
  %v1138 = vpop.f32.mrf.mxu0
  %v1139 = vadd.f32 %v73, %v1138
  %v1140 = vpop.f32.mrf.mxu0
  %1141 = vmatprep.mubr.f32.mxu0 0.0
  %1142 = vmatmul.mubr.f32.gmra.mxu0 %v116
  %v1143 = vpop.f32.mrf.mxu0
  %v1144 = vadd.f32 %v73, %v1143
  %v1145 = vpop.f32.mrf.mxu0
  %1146 = vmatprep.mubr.f32.mxu0 0.0
  %1147 = vmatmul.mubr.f32.gmra.mxu0 %v119
  %v1148 = vpop.f32.mrf.mxu0
  %v1149 = vadd.f32 %v73, %v1148
  %v1150 = vpop.f32.mrf.mxu0
  %1151 = vmatprep.mubr.f32.mxu0 0.0
  %1152 = vmatmul.mubr.f32.gmra.mxu0 %v122
  %v1153 = vpop.f32.mrf.mxu0
  %v1154 = vadd.f32 %v73, %v1153
  %v1155 = vpop.f32.mrf.mxu0
  %1156 = vmatprep.mubr.f32.mxu0 0.0
  %1157 = vmatmul.mubr.f32.gmra.mxu0 %v125
  %v1158 = vpop.f32.mrf.mxu0
  %v1159 = vadd.f32 %v73, %v1158
  %v1160 = vpop.f32.mrf.mxu0
  %1161 = vmatprep.mubr.f32.mxu0 0.0
  %1162 = vmatmul.mubr.f32.gmra.mxu0 %v128
  %v1163 = vpop.f32.mrf.mxu0
  %v1164 = vadd.f32 %v73, %v1163
  %v1165 = vpop.f32.mrf.mxu0
  %1166 = vmatprep.mubr.f32.mxu0 0.0
  %1167 = vmatmul.mubr.f32.gmra.mxu0 %v131
  %v1168 = vpop.f32.mrf.mxu0
  %v1169 = vadd.f32 %v73, %v1168
  %v1170 = vpop.f32.mrf.mxu0
  %1171 = vmatprep.mubr.f32.mxu0 0.0
  %1172 = vmatmul.mubr.f32.gmra.mxu0 %v134
  %v1173 = vpop.f32.mrf.mxu0
  %v1174 = vadd.f32 %v73, %v1173
  %v1175 = vpop.f32.mrf.mxu0
  %1176 = vmatprep.mubr.f32.mxu0 0.0
  %1177 = vmatmul.mubr.f32.gmra.mxu0 %v137
  %v1178 = vpop.f32.mrf.mxu0
  %v1179 = vadd.f32 %v73, %v1178
  %v1180 = vpop.f32.mrf.mxu0
  %1181 = vmatprep.mubr.f32.mxu0 0.0
  %1182 = vmatmul.mubr.f32.gmra.mxu0 %v140
  %v1183 = vpop.f32.mrf.mxu0
  %v1184 = vadd.f32 %v73, %v1183
  %v1185 = vpop.f32.mrf.mxu0
  %1186 = vmatprep.mubr.f32.mxu0 0.0
  %1187 = vmatmul.mubr.f32.gmra.mxu0 %v143
  %v1188 = vpop.f32.mrf.mxu0
  %v1189 = vadd.f32 %v73, %v1188
  %v1190 = vpop.f32.mrf.mxu0
  %1191 = vmatprep.mubr.f32.mxu0 0.0
  %1192 = vmatmul.mubr.f32.gmra.mxu0 %v146
  %v1193 = vpop.f32.mrf.mxu0
  %v1194 = vadd.f32 %v73, %v1193
  %v1195 = vpop.f32.mrf.mxu0
  %1196 = vmatprep.mubr.f32.mxu0 0.0
  %1197 = vmatmul.mubr.f32.gmra.mxu0 %v149
  %v1198 = vpop.f32.mrf.mxu0
  %v1199 = vadd.f32 %v73, %v1198
  %v1200 = vpop.f32.mrf.mxu0
  %1201 = vmatprep.mubr.f32.mxu0 0.0
  %1202 = vmatmul.mubr.f32.gmra.mxu0 %v152
  %v1203 = vpop.f32.mrf.mxu0
  %v1204 = vadd.f32 %v73, %v1203
  %v1205 = vpop.f32.mrf.mxu0
  %1206 = vmatprep.mubr.f32.mxu0 0.0
  %1207 = vmatmul.mubr.f32.gmra.mxu0 %v155
  %v1208 = vpop.f32.mrf.mxu0
  %v1209 = vadd.f32 %v73, %v1208
  %v1210 = vpop.f32.mrf.mxu0
  %1211 = vmatprep.mubr.f32.mxu0 0.0
  %1212 = vmatmul.mubr.f32.gmra.mxu0 %v158
  %v1213 = vpop.f32.mrf.mxu0
  %v1214 = vadd.f32 %v73, %v1213
  %v1215 = vpop.f32.mrf.mxu0
  %1216 = vmatprep.mubr.f32.mxu0 0.0
  %1217 = vmatmul.mubr.f32.gmra.mxu0 %v161
  %v1218 = vpop.f32.mrf.mxu0
  %v1219 = vadd.f32 %v73, %v1218
  %v1220 = vpop.f32.mrf.mxu0
  %1221 = vmatprep.mubr.f32.mxu0 0.0
  %1222 = vmatmul.mubr.f32.gmra.mxu0 %v164
  %v1223 = vpop.f32.mrf.mxu0
  %v1224 = vadd.f32 %v73, %v1223
  %v1225 = vpop.f32.mrf.mxu0
  %1226 = vmatprep.mubr.f32.mxu0 0.0
  %1227 = vmatmul.mubr.f32.gmra.mxu0 %v167
  %v1228 = vpop.f32.mrf.mxu0
  %v1229 = vadd.f32 %v73, %v1228
  %v1230 = vpop.f32.mrf.mxu0
  %1231 = vmatprep.mubr.f32.mxu0 0.0
  %1232 = vmatmul.mubr.f32.gmra.mxu0 %v170
  %v1233 = vpop.f32.mrf.mxu0
  %v1234 = vadd.f32 %v73, %v1233
  %v1235 = vpop.f32.mrf.mxu0
  %1236 = vmatprep.mubr.f32.mxu0 0.0
  %1237 = vmatmul.mubr.f32.gmra.mxu0 %v173
  %v1238 = vpop.f32.mrf.mxu0
  %v1239 = vadd.f32 %v73, %v1238
  %v1240 = vpop.f32.mrf.mxu0
  %1241 = vmatprep.mubr.f32.mxu0 0.0
  %1242 = vmatmul.mubr.f32.gmra.mxu0 %v176
  %v1243 = vpop.f32.mrf.mxu0
  %v1244 = vadd.f32 %v73, %v1243
  %v1245 = vpop.f32.mrf.mxu0
  %1246 = vmatprep.mubr.f32.mxu0 0.0
  %1247 = vmatmul.mubr.f32.gmra.mxu0 %v179
  %v1248 = vpop.f32.mrf.mxu0
  %v1249 = vadd.f32 %v73, %v1248
  %v1250 = vpop.f32.mrf.mxu0
  %1251 = vmatprep.mubr.f32.mxu0 0.0
  %1252 = vmatmul.mubr.f32.gmra.mxu0 %v182
  %v1253 = vpop.f32.mrf.mxu0
  %v1254 = vadd.f32 %v73, %v1253
  %v1255 = vpop.f32.mrf.mxu0
  %1256 = vmatprep.mubr.f32.mxu0 0.0
  %1257 = vmatmul.mubr.f32.gmra.mxu0 %v185
  %v1258 = vpop.f32.mrf.mxu0
  %v1259 = vadd.f32 %v73, %v1258
  %v1260 = vpop.f32.mrf.mxu0
  %1261 = vmatprep.mubr.f32.mxu0 0.0
  %1262 = vmatmul.mubr.f32.gmra.mxu0 %v188
  %v1263 = vpop.f32.mrf.mxu0
  %v1264 = vadd.f32 %v73, %v1263
  %v1265 = vpop.f32.mrf.mxu0
  %1266 = vmatprep.mubr.f32.mxu0 0.0
  %1267 = vmatmul.mubr.f32.gmra.mxu0 %v191
  %v1268 = vpop.f32.mrf.mxu0
  %v1269 = vadd.f32 %v73, %v1268
  %v1270 = vpop.f32.mrf.mxu0
  %1271 = vmatprep.mubr.f32.mxu0 0.0
  %1272 = vmatmul.mubr.f32.gmra.mxu0 %v194
  %v1273 = vpop.f32.mrf.mxu0
  %v1274 = vadd.f32 %v73, %v1273
  %v1275 = vpop.f32.mrf.mxu0
  %1276 = vmatprep.mubr.f32.mxu0 0.0
  %1277 = vmatmul.mubr.f32.gmra.mxu0 %v197
  %v1278 = vpop.f32.mrf.mxu0
  %v1279 = vadd.f32 %v73, %v1278
  %v1280 = vpop.f32.mrf.mxu0
  %1281 = vmatprep.mubr.f32.mxu0 0.0
  %1282 = vmatmul.mubr.f32.gmra.mxu0 %v200
  %v1283 = vpop.f32.mrf.mxu0
  %v1284 = vadd.f32 %v73, %v1283
  %v1285 = vpop.f32.mrf.mxu0
  %1286 = vmatprep.mubr.f32.mxu0 0.0
  %1287 = vmatmul.mubr.f32.gmra.mxu0 %v203
  %v1288 = vpop.f32.mrf.mxu0
  %v1289 = vadd.f32 %v73, %v1288
  %v1290 = vpop.f32.mrf.mxu0
  %1291 = vmatprep.mubr.f32.mxu0 0.0
  %1292 = vmatmul.mubr.f32.gmra.mxu0 %v206
  %v1293 = vpop.f32.mrf.mxu0
  %v1294 = vadd.f32 %v73, %v1293
  %v1295 = vpop.f32.mrf.mxu0
  %1296 = vmatprep.mubr.f32.mxu0 0.0
  %1297 = vmatmul.mubr.f32.gmra.mxu0 %v209
  %v1298 = vpop.f32.mrf.mxu0
  %v1299 = vadd.f32 %v73, %v1298
  %v1300 = vpop.f32.mrf.mxu0
  %1301 = vmatprep.mubr.f32.mxu0 0.0
  %1302 = vmatmul.mubr.f32.gmra.mxu0 %v212
  %v1303 = vpop.f32.mrf.mxu0
  %v1304 = vadd.f32 %v73, %v1303
  %v1305 = vpop.f32.mrf.mxu0
  %1306 = vmatprep.mubr.f32.mxu0 0.0
  %1307 = vmatmul.mubr.f32.gmra.mxu0 %v215
  %v1308 = vpop.f32.mrf.mxu0
  %v1309 = vadd.f32 %v73, %v1308
  %v1310 = vpop.f32.mrf.mxu0
  %1311 = vmatprep.mubr.f32.mxu0 0.0
  %1312 = vmatmul.mubr.f32.gmra.mxu0 %v218
  %v1313 = vpop.f32.mrf.mxu0
  %v1314 = vadd.f32 %v73, %v1313
  %v1315 = vpop.f32.mrf.mxu0
  %1316 = vmatprep.mubr.f32.mxu0 0.0
  %1317 = vmatmul.mubr.f32.gmra.mxu0 %v221
  %v1318 = vpop.f32.mrf.mxu0
  %v1319 = vadd.f32 %v73, %v1318
  %v1320 = vpop.f32.mrf.mxu0
  %1321 = vdwg.mxu0
  %v1322 = vmax.f32 %v1079, 0.0
  %v1323 = vmax.f32 %v1084, 0.0
  %v1324 = vmax.f32 %v1089, 0.0
  %v1325 = vmax.f32 %v1094, 0.0
  %v1326 = vmax.f32 %v1099, 0.0
  %v1327 = vmax.f32 %v1104, 0.0
  %v1328 = vmax.f32 %v1109, 0.0
  %v1329 = vmax.f32 %v1114, 0.0
  %v1330 = vmax.f32 %v1119, 0.0
  %v1331 = vmax.f32 %v1124, 0.0
  %v1332 = vmax.f32 %v1129, 0.0
  %v1333 = vmax.f32 %v1134, 0.0
  %v1334 = vmax.f32 %v1139, 0.0
  %v1335 = vmax.f32 %v1144, 0.0
  %v1336 = vmax.f32 %v1149, 0.0
  %v1337 = vmax.f32 %v1154, 0.0
  %v1338 = vmax.f32 %v1159, 0.0
  %v1339 = vmax.f32 %v1164, 0.0
  %v1340 = vmax.f32 %v1169, 0.0
  %v1341 = vmax.f32 %v1174, 0.0
  %v1342 = vmax.f32 %v1179, 0.0
  %v1343 = vmax.f32 %v1184, 0.0
  %v1344 = vmax.f32 %v1189, 0.0
  %v1345 = vmax.f32 %v1194, 0.0
  %v1346 = vmax.f32 %v1199, 0.0
  %v1347 = vmax.f32 %v1204, 0.0
  %v1348 = vmax.f32 %v1209, 0.0
  %v1349 = vmax.f32 %v1214, 0.0
  %v1350 = vmax.f32 %v1219, 0.0
  %v1351 = vmax.f32 %v1224, 0.0
  %v1352 = vmax.f32 %v1229, 0.0
  %v1353 = vmax.f32 %v1234, 0.0
  %v1354 = vmax.f32 %v1239, 0.0
  %v1355 = vmax.f32 %v1244, 0.0
  %v1356 = vmax.f32 %v1249, 0.0
  %v1357 = vmax.f32 %v1254, 0.0
  %v1358 = vmax.f32 %v1259, 0.0
  %v1359 = vmax.f32 %v1264, 0.0
  %v1360 = vmax.f32 %v1269, 0.0
  %v1361 = vmax.f32 %v1274, 0.0
  %v1362 = vmax.f32 %v1279, 0.0
  %v1363 = vmax.f32 %v1284, 0.0
  %v1364 = vmax.f32 %v1289, 0.0
  %v1365 = vmax.f32 %v1294, 0.0
  %v1366 = vmax.f32 %v1299, 0.0
  %v1367 = vmax.f32 %v1304, 0.0
  %v1368 = vmax.f32 %v1309, 0.0
  %v1369 = vmax.f32 %v1314, 0.0
  %v1370 = vmax.f32 %v1319, 0.0
  %s1371 = scalar_lea.vmem %s1, 120
  %v1372 = vld [vmem:[%s1371] sm:$0xff]
  %v1373 = vld [vmem:[%s1371 + $0x8] sm:$0xff]
  %v1374 = vld [vmem:[%s1371 + $0x10] sm:$0xff]
  %v1375 = vld [vmem:[%s1371 + $0x18] sm:$0xff]
  %v1376 = vld [vmem:[%s1371 + $0x20] sm:$0xf]
  %v1378 = vsel %vm223, %v1376, 0
  %1380 = vmatprep.subr.mxu0 0.0
  %1381 = vmatpush1.msra.mxu0 0.0
  %1382 = vmatprep.subr.mxu0 0.0
  %1383 = vmatpush1.msra.mxu0 0.0
  %1384 = vmatprep.subr.mxu0 0.0
  %1385 = vmatpush1.msra.mxu0 0.0
  %1386 = vmatprep.subr.mxu0 0.0
  %1387 = vmatpush1.msra.mxu0 0.0
  %1388 = vmatprep.subr.mxu0 0.0
  %1389 = vmatpush1.msra.mxu0 0.0
  %1390 = vmatprep.subr.mxu0 0.0
  %1391 = vmatpush1.msra.mxu0 0.0
  %1392 = vmatprep.subr.mxu0 0.0
  %1393 = vmatpush1.msra.mxu0 0.0
  %1394 = vmatprep.subr.mxu0 0.0
  %1395 = vmatpush1.msra.mxu0 0.0
  %1396 = vmatprep.subr.mxu0 0.0
  %1397 = vmatpush1.msra.mxu0 0.0
  %1398 = vmatprep.subr.mxu0 0.0
  %1399 = vmatpush1.msra.mxu0 0.0
  %1400 = vmatprep.subr.mxu0 0.0
  %1401 = vmatpush1.msra.mxu0 0.0
  %1402 = vmatprep.subr.mxu0 0.0
  %1403 = vmatpush1.msra.mxu0 %v1378
  %1404 = vmatprep.subr.mxu0 0.0
  %1405 = vmatpush1.msra.mxu0 %v1375
  %1406 = vmatprep.subr.mxu0 0.0
  %1407 = vmatpush1.msra.mxu0 %v1374
  %1408 = vmatprep.subr.mxu0 0.0
  %1409 = vmatpush1.msra.mxu0 %v1373
  %1410 = vmatprep.subr.mxu0 0.0
  %1411 = vmatpush1.msra.mxu0 %v1372
  %1412 = vmatprep.subr.mxu0 0.0
  %1413 = vmatpush2.msra.mxu0 0.0
  %1414 = vmatprep.subr.mxu0 0.0
  %1415 = vmatpush2.msra.mxu0 0.0
  %1416 = vmatprep.subr.mxu0 0.0
  %1417 = vmatpush2.msra.mxu0 0.0
  %1418 = vmatprep.subr.mxu0 0.0
  %1419 = vmatpush2.msra.mxu0 0.0
  %1420 = vmatprep.subr.mxu0 0.0
  %1421 = vmatpush2.msra.mxu0 0.0
  %1422 = vmatprep.subr.mxu0 0.0
  %1423 = vmatpush2.msra.mxu0 0.0
  %1424 = vmatprep.subr.mxu0 0.0
  %1425 = vmatpush2.msra.mxu0 0.0
  %1426 = vmatprep.subr.mxu0 0.0
  %1427 = vmatpush2.msra.mxu0 0.0
  %1428 = vmatprep.subr.mxu0 0.0
  %1429 = vmatpush2.msra.mxu0 0.0
  %1430 = vmatprep.subr.mxu0 0.0
  %1431 = vmatpush2.msra.mxu0 0.0
  %1432 = vmatprep.subr.mxu0 0.0
  %1433 = vmatpush2.msra.mxu0 0.0
  %1434 = vmatprep.subr.mxu0 0.0
  %1435 = vmatpush2.msra.mxu0 0.0
  %1436 = vmatprep.subr.mxu0 0.0
  %1437 = vmatpush2.msra.mxu0 0.0
  %1438 = vmatprep.subr.mxu0 0.0
  %1439 = vmatpush2.msra.mxu0 0.0
  %1440 = vmatprep.subr.mxu0 0.0
  %1441 = vmatpush2.msra.mxu0 0.0
  %1442 = vmatprep.subr.mxu0 0.0
  %1443 = vmatpush2.msra.mxu0 0.0
  %1444 = vmatprep.mubr.f32.mxu0 0.0
  %1445 = vmatmul.mubr.f32.gmra.mxu0 %v77
  %v1446 = vpop.f32.mrf.mxu0
  %v1447 = vadd.f32 %v73, %v1446
  %v1448 = vpop.f32.mrf.mxu0
  %1449 = vmatprep.mubr.f32.mxu0 0.0
  %1450 = vmatmul.mubr.f32.gmra.mxu0 %v80
  %v1451 = vpop.f32.mrf.mxu0
  %v1452 = vadd.f32 %v73, %v1451
  %v1453 = vpop.f32.mrf.mxu0
  %1454 = vmatprep.mubr.f32.mxu0 0.0
  %1455 = vmatmul.mubr.f32.gmra.mxu0 %v83
  %v1456 = vpop.f32.mrf.mxu0
  %v1457 = vadd.f32 %v73, %v1456
  %v1458 = vpop.f32.mrf.mxu0
  %1459 = vmatprep.mubr.f32.mxu0 0.0
  %1460 = vmatmul.mubr.f32.gmra.mxu0 %v86
  %v1461 = vpop.f32.mrf.mxu0
  %v1462 = vadd.f32 %v73, %v1461
  %v1463 = vpop.f32.mrf.mxu0
  %1464 = vmatprep.mubr.f32.mxu0 0.0
  %1465 = vmatmul.mubr.f32.gmra.mxu0 %v89
  %v1466 = vpop.f32.mrf.mxu0
  %v1467 = vadd.f32 %v73, %v1466
  %v1468 = vpop.f32.mrf.mxu0
  %1469 = vmatprep.mubr.f32.mxu0 0.0
  %1470 = vmatmul.mubr.f32.gmra.mxu0 %v92
  %v1471 = vpop.f32.mrf.mxu0
  %v1472 = vadd.f32 %v73, %v1471
  %v1473 = vpop.f32.mrf.mxu0
  %1474 = vmatprep.mubr.f32.mxu0 0.0
  %1475 = vmatmul.mubr.f32.gmra.mxu0 %v95
  %v1476 = vpop.f32.mrf.mxu0
  %v1477 = vadd.f32 %v73, %v1476
  %v1478 = vpop.f32.mrf.mxu0
  %1479 = vmatprep.mubr.f32.mxu0 0.0
  %1480 = vmatmul.mubr.f32.gmra.mxu0 %v98
  %v1481 = vpop.f32.mrf.mxu0
  %v1482 = vadd.f32 %v73, %v1481
  %v1483 = vpop.f32.mrf.mxu0
  %1484 = vmatprep.mubr.f32.mxu0 0.0
  %1485 = vmatmul.mubr.f32.gmra.mxu0 %v101
  %v1486 = vpop.f32.mrf.mxu0
  %v1487 = vadd.f32 %v73, %v1486
  %v1488 = vpop.f32.mrf.mxu0
  %1489 = vmatprep.mubr.f32.mxu0 0.0
  %1490 = vmatmul.mubr.f32.gmra.mxu0 %v104
  %v1491 = vpop.f32.mrf.mxu0
  %v1492 = vadd.f32 %v73, %v1491
  %v1493 = vpop.f32.mrf.mxu0
  %1494 = vmatprep.mubr.f32.mxu0 0.0
  %1495 = vmatmul.mubr.f32.gmra.mxu0 %v107
  %v1496 = vpop.f32.mrf.mxu0
  %v1497 = vadd.f32 %v73, %v1496
  %v1498 = vpop.f32.mrf.mxu0
  %1499 = vmatprep.mubr.f32.mxu0 0.0
  %1500 = vmatmul.mubr.f32.gmra.mxu0 %v110
  %v1501 = vpop.f32.mrf.mxu0
  %v1502 = vadd.f32 %v73, %v1501
  %v1503 = vpop.f32.mrf.mxu0
  %1504 = vmatprep.mubr.f32.mxu0 0.0
  %1505 = vmatmul.mubr.f32.gmra.mxu0 %v113
  %v1506 = vpop.f32.mrf.mxu0
  %v1507 = vadd.f32 %v73, %v1506
  %v1508 = vpop.f32.mrf.mxu0
  %1509 = vmatprep.mubr.f32.mxu0 0.0
  %1510 = vmatmul.mubr.f32.gmra.mxu0 %v116
  %v1511 = vpop.f32.mrf.mxu0
  %v1512 = vadd.f32 %v73, %v1511
  %v1513 = vpop.f32.mrf.mxu0
  %1514 = vmatprep.mubr.f32.mxu0 0.0
  %1515 = vmatmul.mubr.f32.gmra.mxu0 %v119
  %v1516 = vpop.f32.mrf.mxu0
  %v1517 = vadd.f32 %v73, %v1516
  %v1518 = vpop.f32.mrf.mxu0
  %1519 = vmatprep.mubr.f32.mxu0 0.0
  %1520 = vmatmul.mubr.f32.gmra.mxu0 %v122
  %v1521 = vpop.f32.mrf.mxu0
  %v1522 = vadd.f32 %v73, %v1521
  %v1523 = vpop.f32.mrf.mxu0
  %1524 = vmatprep.mubr.f32.mxu0 0.0
  %1525 = vmatmul.mubr.f32.gmra.mxu0 %v125
  %v1526 = vpop.f32.mrf.mxu0
  %v1527 = vadd.f32 %v73, %v1526
  %v1528 = vpop.f32.mrf.mxu0
  %1529 = vmatprep.mubr.f32.mxu0 0.0
  %1530 = vmatmul.mubr.f32.gmra.mxu0 %v128
  %v1531 = vpop.f32.mrf.mxu0
  %v1532 = vadd.f32 %v73, %v1531
  %v1533 = vpop.f32.mrf.mxu0
  %1534 = vmatprep.mubr.f32.mxu0 0.0
  %1535 = vmatmul.mubr.f32.gmra.mxu0 %v131
  %v1536 = vpop.f32.mrf.mxu0
  %v1537 = vadd.f32 %v73, %v1536
  %v1538 = vpop.f32.mrf.mxu0
  %1539 = vmatprep.mubr.f32.mxu0 0.0
  %1540 = vmatmul.mubr.f32.gmra.mxu0 %v134
  %v1541 = vpop.f32.mrf.mxu0
  %v1542 = vadd.f32 %v73, %v1541
  %v1543 = vpop.f32.mrf.mxu0
  %1544 = vmatprep.mubr.f32.mxu0 0.0
  %1545 = vmatmul.mubr.f32.gmra.mxu0 %v137
  %v1546 = vpop.f32.mrf.mxu0
  %v1547 = vadd.f32 %v73, %v1546
  %v1548 = vpop.f32.mrf.mxu0
  %1549 = vmatprep.mubr.f32.mxu0 0.0
  %1550 = vmatmul.mubr.f32.gmra.mxu0 %v140
  %v1551 = vpop.f32.mrf.mxu0
  %v1552 = vadd.f32 %v73, %v1551
  %v1553 = vpop.f32.mrf.mxu0
  %1554 = vmatprep.mubr.f32.mxu0 0.0
  %1555 = vmatmul.mubr.f32.gmra.mxu0 %v143
  %v1556 = vpop.f32.mrf.mxu0
  %v1557 = vadd.f32 %v73, %v1556
  %v1558 = vpop.f32.mrf.mxu0
  %1559 = vmatprep.mubr.f32.mxu0 0.0
  %1560 = vmatmul.mubr.f32.gmra.mxu0 %v146
  %v1561 = vpop.f32.mrf.mxu0
  %v1562 = vadd.f32 %v73, %v1561
  %v1563 = vpop.f32.mrf.mxu0
  %1564 = vmatprep.mubr.f32.mxu0 0.0
  %1565 = vmatmul.mubr.f32.gmra.mxu0 %v149
  %v1566 = vpop.f32.mrf.mxu0
  %v1567 = vadd.f32 %v73, %v1566
  %v1568 = vpop.f32.mrf.mxu0
  %1569 = vmatprep.mubr.f32.mxu0 0.0
  %1570 = vmatmul.mubr.f32.gmra.mxu0 %v152
  %v1571 = vpop.f32.mrf.mxu0
  %v1572 = vadd.f32 %v73, %v1571
  %v1573 = vpop.f32.mrf.mxu0
  %1574 = vmatprep.mubr.f32.mxu0 0.0
  %1575 = vmatmul.mubr.f32.gmra.mxu0 %v155
  %v1576 = vpop.f32.mrf.mxu0
  %v1577 = vadd.f32 %v73, %v1576
  %v1578 = vpop.f32.mrf.mxu0
  %1579 = vmatprep.mubr.f32.mxu0 0.0
  %1580 = vmatmul.mubr.f32.gmra.mxu0 %v158
  %v1581 = vpop.f32.mrf.mxu0
  %v1582 = vadd.f32 %v73, %v1581
  %v1583 = vpop.f32.mrf.mxu0
  %1584 = vmatprep.mubr.f32.mxu0 0.0
  %1585 = vmatmul.mubr.f32.gmra.mxu0 %v161
  %v1586 = vpop.f32.mrf.mxu0
  %v1587 = vadd.f32 %v73, %v1586
  %v1588 = vpop.f32.mrf.mxu0
  %1589 = vmatprep.mubr.f32.mxu0 0.0
  %1590 = vmatmul.mubr.f32.gmra.mxu0 %v164
  %v1591 = vpop.f32.mrf.mxu0
  %v1592 = vadd.f32 %v73, %v1591
  %v1593 = vpop.f32.mrf.mxu0
  %1594 = vmatprep.mubr.f32.mxu0 0.0
  %1595 = vmatmul.mubr.f32.gmra.mxu0 %v167
  %v1596 = vpop.f32.mrf.mxu0
  %v1597 = vadd.f32 %v73, %v1596
  %v1598 = vpop.f32.mrf.mxu0
  %1599 = vmatprep.mubr.f32.mxu0 0.0
  %1600 = vmatmul.mubr.f32.gmra.mxu0 %v170
  %v1601 = vpop.f32.mrf.mxu0
  %v1602 = vadd.f32 %v73, %v1601
  %v1603 = vpop.f32.mrf.mxu0
  %1604 = vmatprep.mubr.f32.mxu0 0.0
  %1605 = vmatmul.mubr.f32.gmra.mxu0 %v173
  %v1606 = vpop.f32.mrf.mxu0
  %v1607 = vadd.f32 %v73, %v1606
  %v1608 = vpop.f32.mrf.mxu0
  %1609 = vmatprep.mubr.f32.mxu0 0.0
  %1610 = vmatmul.mubr.f32.gmra.mxu0 %v176
  %v1611 = vpop.f32.mrf.mxu0
  %v1612 = vadd.f32 %v73, %v1611
  %v1613 = vpop.f32.mrf.mxu0
  %1614 = vmatprep.mubr.f32.mxu0 0.0
  %1615 = vmatmul.mubr.f32.gmra.mxu0 %v179
  %v1616 = vpop.f32.mrf.mxu0
  %v1617 = vadd.f32 %v73, %v1616
  %v1618 = vpop.f32.mrf.mxu0
  %1619 = vmatprep.mubr.f32.mxu0 0.0
  %1620 = vmatmul.mubr.f32.gmra.mxu0 %v182
  %v1621 = vpop.f32.mrf.mxu0
  %v1622 = vadd.f32 %v73, %v1621
  %v1623 = vpop.f32.mrf.mxu0
  %1624 = vmatprep.mubr.f32.mxu0 0.0
  %1625 = vmatmul.mubr.f32.gmra.mxu0 %v185
  %v1626 = vpop.f32.mrf.mxu0
  %v1627 = vadd.f32 %v73, %v1626
  %v1628 = vpop.f32.mrf.mxu0
  %1629 = vmatprep.mubr.f32.mxu0 0.0
  %1630 = vmatmul.mubr.f32.gmra.mxu0 %v188
  %v1631 = vpop.f32.mrf.mxu0
  %v1632 = vadd.f32 %v73, %v1631
  %v1633 = vpop.f32.mrf.mxu0
  %1634 = vmatprep.mubr.f32.mxu0 0.0
  %1635 = vmatmul.mubr.f32.gmra.mxu0 %v191
  %v1636 = vpop.f32.mrf.mxu0
  %v1637 = vadd.f32 %v73, %v1636
  %v1638 = vpop.f32.mrf.mxu0
  %1639 = vmatprep.mubr.f32.mxu0 0.0
  %1640 = vmatmul.mubr.f32.gmra.mxu0 %v194
  %v1641 = vpop.f32.mrf.mxu0
  %v1642 = vadd.f32 %v73, %v1641
  %v1643 = vpop.f32.mrf.mxu0
  %1644 = vmatprep.mubr.f32.mxu0 0.0
  %1645 = vmatmul.mubr.f32.gmra.mxu0 %v197
  %v1646 = vpop.f32.mrf.mxu0
  %v1647 = vadd.f32 %v73, %v1646
  %v1648 = vpop.f32.mrf.mxu0
  %1649 = vmatprep.mubr.f32.mxu0 0.0
  %1650 = vmatmul.mubr.f32.gmra.mxu0 %v200
  %v1651 = vpop.f32.mrf.mxu0
  %v1652 = vadd.f32 %v73, %v1651
  %v1653 = vpop.f32.mrf.mxu0
  %1654 = vmatprep.mubr.f32.mxu0 0.0
  %1655 = vmatmul.mubr.f32.gmra.mxu0 %v203
  %v1656 = vpop.f32.mrf.mxu0
  %v1657 = vadd.f32 %v73, %v1656
  %v1658 = vpop.f32.mrf.mxu0
  %1659 = vmatprep.mubr.f32.mxu0 0.0
  %1660 = vmatmul.mubr.f32.gmra.mxu0 %v206
  %v1661 = vpop.f32.mrf.mxu0
  %v1662 = vadd.f32 %v73, %v1661
  %v1663 = vpop.f32.mrf.mxu0
  %1664 = vmatprep.mubr.f32.mxu0 0.0
  %1665 = vmatmul.mubr.f32.gmra.mxu0 %v209
  %v1666 = vpop.f32.mrf.mxu0
  %v1667 = vadd.f32 %v73, %v1666
  %v1668 = vpop.f32.mrf.mxu0
  %1669 = vmatprep.mubr.f32.mxu0 0.0
  %1670 = vmatmul.mubr.f32.gmra.mxu0 %v212
  %v1671 = vpop.f32.mrf.mxu0
  %v1672 = vadd.f32 %v73, %v1671
  %v1673 = vpop.f32.mrf.mxu0
  %1674 = vmatprep.mubr.f32.mxu0 0.0
  %1675 = vmatmul.mubr.f32.gmra.mxu0 %v215
  %v1676 = vpop.f32.mrf.mxu0
  %v1677 = vadd.f32 %v73, %v1676
  %v1678 = vpop.f32.mrf.mxu0
  %1679 = vmatprep.mubr.f32.mxu0 0.0
  %1680 = vmatmul.mubr.f32.gmra.mxu0 %v218
  %v1681 = vpop.f32.mrf.mxu0
  %v1682 = vadd.f32 %v73, %v1681
  %v1683 = vpop.f32.mrf.mxu0
  %1684 = vmatprep.mubr.f32.mxu0 0.0
  %1685 = vmatmul.mubr.f32.gmra.mxu0 %v221
  %v1686 = vpop.f32.mrf.mxu0
  %v1687 = vadd.f32 %v73, %v1686
  %v1688 = vpop.f32.mrf.mxu0
  %1689 = vdwg.mxu0
  %v1690 = vmax.f32 %v1447, 0.0
  %v1691 = vmax.f32 %v1452, 0.0
  %v1692 = vmax.f32 %v1457, 0.0
  %v1693 = vmax.f32 %v1462, 0.0
  %v1694 = vmax.f32 %v1467, 0.0
  %v1695 = vmax.f32 %v1472, 0.0
  %v1696 = vmax.f32 %v1477, 0.0
  %v1697 = vmax.f32 %v1482, 0.0
  %v1698 = vmax.f32 %v1487, 0.0
  %v1699 = vmax.f32 %v1492, 0.0
  %v1700 = vmax.f32 %v1497, 0.0
  %v1701 = vmax.f32 %v1502, 0.0
  %v1702 = vmax.f32 %v1507, 0.0
  %v1703 = vmax.f32 %v1512, 0.0
  %v1704 = vmax.f32 %v1517, 0.0
  %v1705 = vmax.f32 %v1522, 0.0
  %v1706 = vmax.f32 %v1527, 0.0
  %v1707 = vmax.f32 %v1532, 0.0
  %v1708 = vmax.f32 %v1537, 0.0
  %v1709 = vmax.f32 %v1542, 0.0
  %v1710 = vmax.f32 %v1547, 0.0
  %v1711 = vmax.f32 %v1552, 0.0
  %v1712 = vmax.f32 %v1557, 0.0
  %v1713 = vmax.f32 %v1562, 0.0
  %v1714 = vmax.f32 %v1567, 0.0
  %v1715 = vmax.f32 %v1572, 0.0
  %v1716 = vmax.f32 %v1577, 0.0
  %v1717 = vmax.f32 %v1582, 0.0
  %v1718 = vmax.f32 %v1587, 0.0
  %v1719 = vmax.f32 %v1592, 0.0
  %v1720 = vmax.f32 %v1597, 0.0
  %v1721 = vmax.f32 %v1602, 0.0
  %v1722 = vmax.f32 %v1607, 0.0
  %v1723 = vmax.f32 %v1612, 0.0
  %v1724 = vmax.f32 %v1617, 0.0
  %v1725 = vmax.f32 %v1622, 0.0
  %v1726 = vmax.f32 %v1627, 0.0
  %v1727 = vmax.f32 %v1632, 0.0
  %v1728 = vmax.f32 %v1637, 0.0
  %v1729 = vmax.f32 %v1642, 0.0
  %v1730 = vmax.f32 %v1647, 0.0
  %v1731 = vmax.f32 %v1652, 0.0
  %v1732 = vmax.f32 %v1657, 0.0
  %v1733 = vmax.f32 %v1662, 0.0
  %v1734 = vmax.f32 %v1667, 0.0
  %v1735 = vmax.f32 %v1672, 0.0
  %v1736 = vmax.f32 %v1677, 0.0
  %v1737 = vmax.f32 %v1682, 0.0
  %v1738 = vmax.f32 %v1687, 0.0
  %v1739 = vmax.f32 %v1322, %v1690
  %v1740 = vmax.f32 %v1323, %v1691
  %v1741 = vmax.f32 %v1324, %v1692
  %v1742 = vmax.f32 %v1325, %v1693
  %v1743 = vmax.f32 %v1326, %v1694
  %v1744 = vmax.f32 %v1327, %v1695
  %v1745 = vmax.f32 %v1328, %v1696
  %v1746 = vmax.f32 %v1329, %v1697
  %v1747 = vmax.f32 %v1330, %v1698
  %v1748 = vmax.f32 %v1331, %v1699
  %v1749 = vmax.f32 %v1332, %v1700
  %v1750 = vmax.f32 %v1333, %v1701
  %v1751 = vmax.f32 %v1334, %v1702
  %v1752 = vmax.f32 %v1335, %v1703
  %v1753 = vmax.f32 %v1336, %v1704
  %v1754 = vmax.f32 %v1337, %v1705
  %v1755 = vmax.f32 %v1338, %v1706
  %v1756 = vmax.f32 %v1339, %v1707
  %v1757 = vmax.f32 %v1340, %v1708
  %v1758 = vmax.f32 %v1341, %v1709
  %v1759 = vmax.f32 %v1342, %v1710
  %v1760 = vmax.f32 %v1343, %v1711
  %v1761 = vmax.f32 %v1344, %v1712
  %v1762 = vmax.f32 %v1345, %v1713
  %v1763 = vmax.f32 %v1346, %v1714
  %v1764 = vmax.f32 %v1347, %v1715
  %v1765 = vmax.f32 %v1348, %v1716
  %v1766 = vmax.f32 %v1349, %v1717
  %v1767 = vmax.f32 %v1350, %v1718
  %v1768 = vmax.f32 %v1351, %v1719
  %v1769 = vmax.f32 %v1352, %v1720
  %v1770 = vmax.f32 %v1353, %v1721
  %v1771 = vmax.f32 %v1354, %v1722
  %v1772 = vmax.f32 %v1355, %v1723
  %v1773 = vmax.f32 %v1356, %v1724
  %v1774 = vmax.f32 %v1357, %v1725
  %v1775 = vmax.f32 %v1358, %v1726
  %v1776 = vmax.f32 %v1359, %v1727
  %v1777 = vmax.f32 %v1360, %v1728
  %v1778 = vmax.f32 %v1361, %v1729
  %v1779 = vmax.f32 %v1362, %v1730
  %v1780 = vmax.f32 %v1363, %v1731
  %v1781 = vmax.f32 %v1364, %v1732
  %v1782 = vmax.f32 %v1365, %v1733
  %v1783 = vmax.f32 %v1366, %v1734
  %v1784 = vmax.f32 %v1367, %v1735
  %v1785 = vmax.f32 %v1368, %v1736
  %v1786 = vmax.f32 %v1369, %v1737
  %v1787 = vmax.f32 %v1370, %v1738
  %v1788 = vmax.f32 %v954, %v1739
  %v1789 = vmax.f32 %v955, %v1740
  %v1790 = vmax.f32 %v956, %v1741
  %v1791 = vmax.f32 %v957, %v1742
  %v1792 = vmax.f32 %v958, %v1743
  %v1793 = vmax.f32 %v959, %v1744
  %v1794 = vmax.f32 %v960, %v1745
  %v1795 = vmax.f32 %v961, %v1746
  %v1796 = vmax.f32 %v962, %v1747
  %v1797 = vmax.f32 %v963, %v1748
  %v1798 = vmax.f32 %v964, %v1749
  %v1799 = vmax.f32 %v965, %v1750
  %v1800 = vmax.f32 %v966, %v1751
  %v1801 = vmax.f32 %v967, %v1752
  %v1802 = vmax.f32 %v968, %v1753
  %v1803 = vmax.f32 %v969, %v1754
  %v1804 = vmax.f32 %v970, %v1755
  %v1805 = vmax.f32 %v971, %v1756
  %v1806 = vmax.f32 %v972, %v1757
  %v1807 = vmax.f32 %v973, %v1758
  %v1808 = vmax.f32 %v974, %v1759
  %v1809 = vmax.f32 %v975, %v1760
  %v1810 = vmax.f32 %v976, %v1761
  %v1811 = vmax.f32 %v977, %v1762
  %v1812 = vmax.f32 %v978, %v1763
  %v1813 = vmax.f32 %v979, %v1764
  %v1814 = vmax.f32 %v980, %v1765
  %v1815 = vmax.f32 %v981, %v1766
  %v1816 = vmax.f32 %v982, %v1767
  %v1817 = vmax.f32 %v983, %v1768
  %v1818 = vmax.f32 %v984, %v1769
  %v1819 = vmax.f32 %v985, %v1770
  %v1820 = vmax.f32 %v986, %v1771
  %v1821 = vmax.f32 %v987, %v1772
  %v1822 = vmax.f32 %v988, %v1773
  %v1823 = vmax.f32 %v989, %v1774
  %v1824 = vmax.f32 %v990, %v1775
  %v1825 = vmax.f32 %v991, %v1776
  %v1826 = vmax.f32 %v992, %v1777
  %v1827 = vmax.f32 %v993, %v1778
  %v1828 = vmax.f32 %v994, %v1779
  %v1829 = vmax.f32 %v995, %v1780
  %v1830 = vmax.f32 %v996, %v1781
  %v1831 = vmax.f32 %v997, %v1782
  %v1832 = vmax.f32 %v998, %v1783
  %v1833 = vmax.f32 %v999, %v1784
  %v1834 = vmax.f32 %v1000, %v1785
  %v1835 = vmax.f32 %v1001, %v1786
  %v1836 = vmax.f32 %v1002, %v1787
  %vm1837 = vcmask 48128
  %1838 = vst.msk [vmem:[%s3] sm:$0xff] %vm1837, %v1788
  %1839 = vst.msk [vmem:[%s3 + $0x8] sm:$0xff] %vm1837, %v1789
  %1840 = vst.msk [vmem:[%s3 + $0x10] sm:$0xff] %vm1837, %v1790
  %1841 = vst.msk [vmem:[%s3 + $0x18] sm:$0xff] %vm1837, %v1791
  %1842 = vst.msk [vmem:[%s3 + $0x20] sm:$0xff] %vm1837, %v1792
  %1843 = vst.msk [vmem:[%s3 + $0x28] sm:$0xff] %vm1837, %v1793
  %1844 = vst.msk [vmem:[%s3 + $0x30] sm:$0xff] %vm1837, %v1794
  %1845 = vst.msk [vmem:[%s3 + $0x38] sm:$0xff] %vm1837, %v1795
  %1846 = vst.msk [vmem:[%s3 + $0x40] sm:$0xff] %vm1837, %v1796
  %1847 = vst.msk [vmem:[%s3 + $0x48] sm:$0xff] %vm1837, %v1797
  %1848 = vst.msk [vmem:[%s3 + $0x50] sm:$0xff] %vm1837, %v1798
  %1849 = vst.msk [vmem:[%s3 + $0x58] sm:$0xff] %vm1837, %v1799
  %1850 = vst.msk [vmem:[%s3 + $0x60] sm:$0xff] %vm1837, %v1800
  %1851 = vst.msk [vmem:[%s3 + $0x68] sm:$0xff] %vm1837, %v1801
  %1852 = vst.msk [vmem:[%s3 + $0x70] sm:$0xff] %vm1837, %v1802
  %1853 = vst.msk [vmem:[%s3 + $0x78] sm:$0xff] %vm1837, %v1803
  %1854 = vst.msk [vmem:[%s3 + $0x80] sm:$0xff] %vm1837, %v1804
  %1855 = vst.msk [vmem:[%s3 + $0x88] sm:$0xff] %vm1837, %v1805
  %1856 = vst.msk [vmem:[%s3 + $0x90] sm:$0xff] %vm1837, %v1806
  %1857 = vst.msk [vmem:[%s3 + $0x98] sm:$0xff] %vm1837, %v1807
  %1858 = vst.msk [vmem:[%s3 + $0xa0] sm:$0xff] %vm1837, %v1808
  %1859 = vst.msk [vmem:[%s3 + $0xa8] sm:$0xff] %vm1837, %v1809
  %1860 = vst.msk [vmem:[%s3 + $0xb0] sm:$0xff] %vm1837, %v1810
  %1861 = vst.msk [vmem:[%s3 + $0xb8] sm:$0xff] %vm1837, %v1811
  %1862 = vst.msk [vmem:[%s3 + $0xc0] sm:$0xff] %vm1837, %v1812
  %1863 = vst.msk [vmem:[%s3 + $0xc8] sm:$0xff] %vm1837, %v1813
  %1864 = vst.msk [vmem:[%s3 + $0xd0] sm:$0xff] %vm1837, %v1814
  %1865 = vst.msk [vmem:[%s3 + $0xd8] sm:$0xff] %vm1837, %v1815
  %1866 = vst.msk [vmem:[%s3 + $0xe0] sm:$0xff] %vm1837, %v1816
  %1867 = vst.msk [vmem:[%s3 + $0xe8] sm:$0xff] %vm1837, %v1817
  %1868 = vst.msk [vmem:[%s3 + $0xf0] sm:$0xff] %vm1837, %v1818
  %1869 = vst.msk [vmem:[%s3 + $0xf8] sm:$0xff] %vm1837, %v1819
  %1870 = vst.msk [vmem:[%s3 + $0x100] sm:$0xff] %vm1837, %v1820
  %1871 = vst.msk [vmem:[%s3 + $0x108] sm:$0xff] %vm1837, %v1821
  %1872 = vst.msk [vmem:[%s3 + $0x110] sm:$0xff] %vm1837, %v1822
  %1873 = vst.msk [vmem:[%s3 + $0x118] sm:$0xff] %vm1837, %v1823
  %1874 = vst.msk [vmem:[%s3 + $0x120] sm:$0xff] %vm1837, %v1824
  %1875 = vst.msk [vmem:[%s3 + $0x128] sm:$0xff] %vm1837, %v1825
  %1876 = vst.msk [vmem:[%s3 + $0x130] sm:$0xff] %vm1837, %v1826
  %1877 = vst.msk [vmem:[%s3 + $0x138] sm:$0xff] %vm1837, %v1827
  %1878 = vst.msk [vmem:[%s3 + $0x140] sm:$0xff] %vm1837, %v1828
  %1879 = vst.msk [vmem:[%s3 + $0x148] sm:$0xff] %vm1837, %v1829
  %1880 = vst.msk [vmem:[%s3 + $0x150] sm:$0xff] %vm1837, %v1830
  %1881 = vst.msk [vmem:[%s3 + $0x158] sm:$0xff] %vm1837, %v1831
  %1882 = vst.msk [vmem:[%s3 + $0x160] sm:$0xff] %vm1837, %v1832
  %1883 = vst.msk [vmem:[%s3 + $0x168] sm:$0xff] %vm1837, %v1833
  %1884 = vst.msk [vmem:[%s3 + $0x170] sm:$0xff] %vm1837, %v1834
  %1885 = vst.msk [vmem:[%s3 + $0x178] sm:$0xff] %vm1837, %v1835
  %1886 = vst.msk [vmem:[%s3 + $0x180] sm:$0xff] %vm1837, %v1836
  // Predicated region
  $region14: #{net_forward.3} parent=0 // pred_check
    _
  $region15: #{net_forward.3} parent=0 // pred_check_branch
    %1888 = sbr.rel (0) target = $region17
  $region16: #{net_forward.3} parent=0 // pred_region
    _
  $region17: #{net_forward.3} parent=0 // pred_fallthru
    _
  // Predicated region
  $region18: #{net_forward.3} parent=0 // pred_check
    _
  $region19: #{net_forward.3} parent=0 // pred_check_branch
    %1890 = sbr.rel (0) target = $region21
  $region20: #{net_forward.3} parent=0 // pred_region
    _
  $region21: #{net_forward.3} parent=0 // pred_fallthru
    _

// kernel: net_forward.4
$region0: #{net_forward.4}
  #allocation0 [shape = 'u32[]', space=smem, size = 0x4, offset = 0x4, fixed_abs, tag = 'smem constant byte address 0x4 - core index']
  #allocation1 [shape = 'u32[144,128]{1,0:T(1,128)}', space=vmem, size = 0x12000, scoped, tag = 'internal scratch']
  %s0 = inlined_call_operand.vmem [shape: f32[56,216], index: 0, kind: input, shape index: {}]
  %s1 = inlined_call_operand.vmem [shape: f32[4,216,16], index: 1, kind: input, shape index: {}]
  %s2 = inlined_call_operand.vmem [shape: f32[1,16], index: 2, kind: input, shape index: {}]
  %s3 = inlined_call_operand.vmem [shape: f32[56,16], index: 3, kind: output, shape index: {}]
  %s4 = sld [smem:[#allocation0]]
  $region22: #{net_forward.4} parent=0
    _
  %s6 = ssub.s32 1, %s4
  %s7 = scalar_select 0, %s6, %s4
  // Predicated region
  $region2: #{net_forward.4} parent=0 // pred_check
    _
  $region3: #{net_forward.4} parent=0 // pred_check_branch
    %9 = sbr.rel (0) target = $region5
  $region4: #{net_forward.4} parent=0 // pred_region
    _
  $region5: #{net_forward.4} parent=0 // pred_fallthru
    _
  // Predicated region
  $region6: #{net_forward.4} parent=0 // pred_check
    _
  $region7: #{net_forward.4} parent=0 // pred_check_branch
    %11 = sbr.rel (0) target = $region9
  $region8: #{net_forward.4} parent=0 // pred_region
    _
  $region9: #{net_forward.4} parent=0 // pred_fallthru
    _
  // Predicated region
  $region10: #{net_forward.4} parent=0 // pred_check
    _
  $region11: #{net_forward.4} parent=0 // pred_check_branch
    %13 = sbr.rel (0) target = $region13
  $region12: #{net_forward.4} parent=0 // pred_region
    _
  $region13: #{net_forward.4} parent=0 // pred_fallthru
    _
  %v14 = vld [vmem:[%s0] sm:$0xff]
  %v15 = vld [vmem:[%s0 + $0x8] sm:$0xff]
  %v16 = vld [vmem:[%s0 + $0x10] sm:$0xff]
  %v17 = vld [vmem:[%s0 + $0x18] sm:$0xff]
  %v18 = vld [vmem:[%s0 + $0x20] sm:$0xff]
  %v19 = vld [vmem:[%s0 + $0x28] sm:$0xff]
  %v20 = vld [vmem:[%s0 + $0x30] sm:$0xff]
  %v21 = vld [vmem:[%s0 + $0x38] sm:$0xff]
  %v22 = vld [vmem:[%s0 + $0x40] sm:$0xff]
  %v23 = vld [vmem:[%s0 + $0x48] sm:$0xff]
  %v24 = vld [vmem:[%s0 + $0x50] sm:$0xff]
  %v25 = vld [vmem:[%s0 + $0x58] sm:$0xff]
  %v26 = vld [vmem:[%s0 + $0x60] sm:$0xff]
  %v27 = vld [vmem:[%s0 + $0x68] sm:$0xff]
  %v28 = vld [vmem:[%s2] sm:$0x1]
  %v29 = vld [vmem:[%s1] sm:$0xff]
  %v30 = vld [vmem:[%s1 + $0x8] sm:$0xff]
  %v31 = vld [vmem:[%s1 + $0x10] sm:$0xff]
  %v32 = vld [vmem:[%s1 + $0x18] sm:$0xff]
  %v33 = vld [vmem:[%s1 + $0x20] sm:$0xff]
  %v34 = vld [vmem:[%s1 + $0x28] sm:$0xff]
  %v35 = vld [vmem:[%s1 + $0x30] sm:$0xff]
  %v36 = vld [vmem:[%s1 + $0x38] sm:$0xff]
  %v37 = vld [vmem:[%s1 + $0x40] sm:$0xff]
  %v38 = vld [vmem:[%s1 + $0x48] sm:$0xff]
  %v39 = vld [vmem:[%s1 + $0x50] sm:$0xff]
  %v40 = vld [vmem:[%s1 + $0x58] sm:$0xff]
  %v41 = vld [vmem:[%s1 + $0x60] sm:$0xff]
  %v42 = vld [vmem:[%s1 + $0x68] sm:$0xff]
  %v43 = vld [vmem:[%s1 + $0x70] sm:$0xff]
  %v44 = vld [vmem:[%s1 + $0x78] sm:$0xff]
  %v45 = vld [vmem:[%s1 + $0x80] sm:$0xff]
  %v46 = vld [vmem:[%s1 + $0x88] sm:$0xff]
  %v47 = vld [vmem:[%s1 + $0x90] sm:$0xff]
  %v48 = vld [vmem:[%s1 + $0x98] sm:$0xff]
  %v49 = vld [vmem:[%s1 + $0xa0] sm:$0xff]
  %v50 = vld [vmem:[%s1 + $0xa8] sm:$0xff]
  %v51 = vld [vmem:[%s1 + $0xb0] sm:$0xff]
  %v52 = vld [vmem:[%s1 + $0xb8] sm:$0xff]
  %v53 = vld [vmem:[%s1 + $0xc0] sm:$0xff]
  %v54 = vld [vmem:[%s1 + $0xc8] sm:$0xff]
  %v55 = vld [vmem:[%s1 + $0xd0] sm:$0xff]
  %v57 = vlaneseq
  %v58 = vshrl.u32 %v57, 7
  %v59 = vsub.s32 0, %v58
  %v60 = vrot.slane %v28, %v59
  %vm62 = vcmask 719872
  %v64 = vsel %vm62, %v15, 0
  %v67 = vsel %vm62, %v17, 0
  %v70 = vsel %vm62, %v19, 0
  %v73 = vsel %vm62, %v21, 0
  %v76 = vsel %vm62, %v23, 0
  %v79 = vsel %vm62, %v25, 0
  %v82 = vsel %vm62, %v27, 0
  %84 = vmatprep.subr.mxu0 0.0
  %85 = vmatpush1.msra.mxu0 %v44
  %86 = vmatprep.subr.mxu0 0.0
  %87 = vmatpush1.msra.mxu0 %v43
  %88 = vmatprep.subr.mxu0 0.0
  %89 = vmatpush1.msra.mxu0 %v42
  %90 = vmatprep.subr.mxu0 0.0
  %91 = vmatpush1.msra.mxu0 %v41
  %92 = vmatprep.subr.mxu0 0.0
  %93 = vmatpush1.msra.mxu0 %v40
  %94 = vmatprep.subr.mxu0 0.0
  %95 = vmatpush1.msra.mxu0 %v39
  %96 = vmatprep.subr.mxu0 0.0
  %97 = vmatpush1.msra.mxu0 %v38
  %98 = vmatprep.subr.mxu0 0.0
  %99 = vmatpush1.msra.mxu0 %v37
  %100 = vmatprep.subr.mxu0 0.0
  %101 = vmatpush1.msra.mxu0 %v36
  %102 = vmatprep.subr.mxu0 0.0
  %103 = vmatpush1.msra.mxu0 %v35
  %104 = vmatprep.subr.mxu0 0.0
  %105 = vmatpush1.msra.mxu0 %v34
  %106 = vmatprep.subr.mxu0 0.0
  %107 = vmatpush1.msra.mxu0 %v33
  %108 = vmatprep.subr.mxu0 0.0
  %109 = vmatpush1.msra.mxu0 %v32
  %110 = vmatprep.subr.mxu0 0.0
  %111 = vmatpush1.msra.mxu0 %v31
  %112 = vmatprep.subr.mxu0 0.0
  %113 = vmatpush1.msra.mxu0 %v30
  %114 = vmatprep.subr.mxu0 0.0
  %115 = vmatpush1.msra.mxu0 %v29
  %116 = vmatprep.subr.mxu0 0.0
  %117 = vmatpush2.msra.mxu0 0.0
  %118 = vmatprep.subr.mxu0 0.0
  %119 = vmatpush2.msra.mxu0 0.0
  %120 = vmatprep.subr.mxu0 0.0
  %121 = vmatpush2.msra.mxu0 0.0
  %122 = vmatprep.subr.mxu0 0.0
  %123 = vmatpush2.msra.mxu0 0.0
  %124 = vmatprep.subr.mxu0 0.0
  %125 = vmatpush2.msra.mxu0 0.0
  %126 = vmatprep.subr.mxu0 0.0
  %127 = vmatpush2.msra.mxu0 %v55
  %128 = vmatprep.subr.mxu0 0.0
  %129 = vmatpush2.msra.mxu0 %v54
  %130 = vmatprep.subr.mxu0 0.0
  %131 = vmatpush2.msra.mxu0 %v53
  %132 = vmatprep.subr.mxu0 0.0
  %133 = vmatpush2.msra.mxu0 %v52
  %134 = vmatprep.subr.mxu0 0.0
  %135 = vmatpush2.msra.mxu0 %v51
  %136 = vmatprep.subr.mxu0 0.0
  %137 = vmatpush2.msra.mxu0 %v50
  %138 = vmatprep.subr.mxu0 0.0
  %139 = vmatpush2.msra.mxu0 %v49
  %140 = vmatprep.subr.mxu0 0.0
  %141 = vmatpush2.msra.mxu0 %v48
  %142 = vmatprep.subr.mxu0 0.0
  %143 = vmatpush2.msra.mxu0 %v47
  %144 = vmatprep.subr.mxu0 0.0
  %145 = vmatpush2.msra.mxu0 %v46
  %146 = vmatprep.subr.mxu0 0.0
  %147 = vmatpush2.msra.mxu0 %v45
  %148 = vmatprep.mubr.f32.mxu0 %v64
  %149 = vmatmul.mubr.f32.gmra.mxu0 %v14
  %v150 = vpop.f32.mrf.mxu0
  %v151 = vadd.f32 %v60, %v150
  %v152 = vpop.f32.mrf.mxu0
  %153 = vmatprep.mubr.f32.mxu0 %v67
  %154 = vmatmul.mubr.f32.gmra.mxu0 %v16
  %v155 = vpop.f32.mrf.mxu0
  %v156 = vadd.f32 %v60, %v155
  %v157 = vpop.f32.mrf.mxu0
  %158 = vmatprep.mubr.f32.mxu0 %v70
  %159 = vmatmul.mubr.f32.gmra.mxu0 %v18
  %v160 = vpop.f32.mrf.mxu0
  %v161 = vadd.f32 %v60, %v160
  %v162 = vpop.f32.mrf.mxu0
  %163 = vmatprep.mubr.f32.mxu0 %v73
  %164 = vmatmul.mubr.f32.gmra.mxu0 %v20
  %v165 = vpop.f32.mrf.mxu0
  %v166 = vadd.f32 %v60, %v165
  %v167 = vpop.f32.mrf.mxu0
  %168 = vmatprep.mubr.f32.mxu0 %v76
  %169 = vmatmul.mubr.f32.gmra.mxu0 %v22
  %v170 = vpop.f32.mrf.mxu0
  %v171 = vadd.f32 %v60, %v170
  %v172 = vpop.f32.mrf.mxu0
  %173 = vmatprep.mubr.f32.mxu0 %v79
  %174 = vmatmul.mubr.f32.gmra.mxu0 %v24
  %v175 = vpop.f32.mrf.mxu0
  %v176 = vadd.f32 %v60, %v175
  %v177 = vpop.f32.mrf.mxu0
  %178 = vmatprep.mubr.f32.mxu0 %v82
  %179 = vmatmul.mubr.f32.gmra.mxu0 %v26
  %v180 = vpop.f32.mrf.mxu0
  %v181 = vadd.f32 %v60, %v180
  %v182 = vpop.f32.mrf.mxu0
  %183 = vdwg.mxu0
  %v184 = vmax.f32 %v151, 0.0
  %v185 = vmax.f32 %v156, 0.0
  %v186 = vmax.f32 %v161, 0.0
  %v187 = vmax.f32 %v166, 0.0
  %v188 = vmax.f32 %v171, 0.0
  %v189 = vmax.f32 %v176, 0.0
  %v190 = vmax.f32 %v181, 0.0
  %s191 = scalar_lea.vmem %s1, 216
  %v192 = vld [vmem:[%s191] sm:$0xff]
  %v193 = vld [vmem:[%s191 + $0x8] sm:$0xff]
  %v194 = vld [vmem:[%s191 + $0x10] sm:$0xff]
  %v195 = vld [vmem:[%s191 + $0x18] sm:$0xff]
  %v196 = vld [vmem:[%s191 + $0x20] sm:$0xff]
  %v197 = vld [vmem:[%s191 + $0x28] sm:$0xff]
  %v198 = vld [vmem:[%s191 + $0x30] sm:$0xff]
  %v199 = vld [vmem:[%s191 + $0x38] sm:$0xff]
  %v200 = vld [vmem:[%s191 + $0x40] sm:$0xff]
  %v201 = vld [vmem:[%s191 + $0x48] sm:$0xff]
  %v202 = vld [vmem:[%s191 + $0x50] sm:$0xff]
  %v203 = vld [vmem:[%s191 + $0x58] sm:$0xff]
  %v204 = vld [vmem:[%s191 + $0x60] sm:$0xff]
  %v205 = vld [vmem:[%s191 + $0x68] sm:$0xff]
  %v206 = vld [vmem:[%s191 + $0x70] sm:$0xff]
  %v207 = vld [vmem:[%s191 + $0x78] sm:$0xff]
  %v208 = vld [vmem:[%s191 + $0x80] sm:$0xff]
  %v209 = vld [vmem:[%s191 + $0x88] sm:$0xff]
  %v210 = vld [vmem:[%s191 + $0x90] sm:$0xff]
  %v211 = vld [vmem:[%s191 + $0x98] sm:$0xff]
  %v212 = vld [vmem:[%s191 + $0xa0] sm:$0xff]
  %v213 = vld [vmem:[%s191 + $0xa8] sm:$0xff]
  %v214 = vld [vmem:[%s191 + $0xb0] sm:$0xff]
  %v215 = vld [vmem:[%s191 + $0xb8] sm:$0xff]
  %v216 = vld [vmem:[%s191 + $0xc0] sm:$0xff]
  %v217 = vld [vmem:[%s191 + $0xc8] sm:$0xff]
  %v218 = vld [vmem:[%s191 + $0xd0] sm:$0xff]
  %219 = vmatprep.subr.mxu0 0.0
  %220 = vmatpush1.msra.mxu0 %v207
  %221 = vmatprep.subr.mxu0 0.0
  %222 = vmatpush1.msra.mxu0 %v206
  %223 = vmatprep.subr.mxu0 0.0
  %224 = vmatpush1.msra.mxu0 %v205
  %225 = vmatprep.subr.mxu0 0.0
  %226 = vmatpush1.msra.mxu0 %v204
  %227 = vmatprep.subr.mxu0 0.0
  %228 = vmatpush1.msra.mxu0 %v203
  %229 = vmatprep.subr.mxu0 0.0
  %230 = vmatpush1.msra.mxu0 %v202
  %231 = vmatprep.subr.mxu0 0.0
  %232 = vmatpush1.msra.mxu0 %v201
  %233 = vmatprep.subr.mxu0 0.0
  %234 = vmatpush1.msra.mxu0 %v200
  %235 = vmatprep.subr.mxu0 0.0
  %236 = vmatpush1.msra.mxu0 %v199
  %237 = vmatprep.subr.mxu0 0.0
  %238 = vmatpush1.msra.mxu0 %v198
  %239 = vmatprep.subr.mxu0 0.0
  %240 = vmatpush1.msra.mxu0 %v197
  %241 = vmatprep.subr.mxu0 0.0
  %242 = vmatpush1.msra.mxu0 %v196
  %243 = vmatprep.subr.mxu0 0.0
  %244 = vmatpush1.msra.mxu0 %v195
  %245 = vmatprep.subr.mxu0 0.0
  %246 = vmatpush1.msra.mxu0 %v194
  %247 = vmatprep.subr.mxu0 0.0
  %248 = vmatpush1.msra.mxu0 %v193
  %249 = vmatprep.subr.mxu0 0.0
  %250 = vmatpush1.msra.mxu0 %v192
  %251 = vmatprep.subr.mxu0 0.0
  %252 = vmatpush2.msra.mxu0 0.0
  %253 = vmatprep.subr.mxu0 0.0
  %254 = vmatpush2.msra.mxu0 0.0
  %255 = vmatprep.subr.mxu0 0.0
  %256 = vmatpush2.msra.mxu0 0.0
  %257 = vmatprep.subr.mxu0 0.0
  %258 = vmatpush2.msra.mxu0 0.0
  %259 = vmatprep.subr.mxu0 0.0
  %260 = vmatpush2.msra.mxu0 0.0
  %261 = vmatprep.subr.mxu0 0.0
  %262 = vmatpush2.msra.mxu0 %v218
  %263 = vmatprep.subr.mxu0 0.0
  %264 = vmatpush2.msra.mxu0 %v217
  %265 = vmatprep.subr.mxu0 0.0
  %266 = vmatpush2.msra.mxu0 %v216
  %267 = vmatprep.subr.mxu0 0.0
  %268 = vmatpush2.msra.mxu0 %v215
  %269 = vmatprep.subr.mxu0 0.0
  %270 = vmatpush2.msra.mxu0 %v214
  %271 = vmatprep.subr.mxu0 0.0
  %272 = vmatpush2.msra.mxu0 %v213
  %273 = vmatprep.subr.mxu0 0.0
  %274 = vmatpush2.msra.mxu0 %v212
  %275 = vmatprep.subr.mxu0 0.0
  %276 = vmatpush2.msra.mxu0 %v211
  %277 = vmatprep.subr.mxu0 0.0
  %278 = vmatpush2.msra.mxu0 %v210
  %279 = vmatprep.subr.mxu0 0.0
  %280 = vmatpush2.msra.mxu0 %v209
  %281 = vmatprep.subr.mxu0 0.0
  %282 = vmatpush2.msra.mxu0 %v208
  %283 = vmatprep.mubr.f32.mxu0 %v64
  %284 = vmatmul.mubr.f32.gmra.mxu0 %v14
  %v285 = vpop.f32.mrf.mxu0
  %v286 = vadd.f32 %v60, %v285
  %v287 = vpop.f32.mrf.mxu0
  %288 = vmatprep.mubr.f32.mxu0 %v67
  %289 = vmatmul.mubr.f32.gmra.mxu0 %v16
  %v290 = vpop.f32.mrf.mxu0
  %v291 = vadd.f32 %v60, %v290
  %v292 = vpop.f32.mrf.mxu0
  %293 = vmatprep.mubr.f32.mxu0 %v70
  %294 = vmatmul.mubr.f32.gmra.mxu0 %v18
  %v295 = vpop.f32.mrf.mxu0
  %v296 = vadd.f32 %v60, %v295
  %v297 = vpop.f32.mrf.mxu0
  %298 = vmatprep.mubr.f32.mxu0 %v73
  %299 = vmatmul.mubr.f32.gmra.mxu0 %v20
  %v300 = vpop.f32.mrf.mxu0
  %v301 = vadd.f32 %v60, %v300
  %v302 = vpop.f32.mrf.mxu0
  %303 = vmatprep.mubr.f32.mxu0 %v76
  %304 = vmatmul.mubr.f32.gmra.mxu0 %v22
  %v305 = vpop.f32.mrf.mxu0
  %v306 = vadd.f32 %v60, %v305
  %v307 = vpop.f32.mrf.mxu0
  %308 = vmatprep.mubr.f32.mxu0 %v79
  %309 = vmatmul.mubr.f32.gmra.mxu0 %v24
  %v310 = vpop.f32.mrf.mxu0
  %v311 = vadd.f32 %v60, %v310
  %v312 = vpop.f32.mrf.mxu0
  %313 = vmatprep.mubr.f32.mxu0 %v82
  %314 = vmatmul.mubr.f32.gmra.mxu0 %v26
  %v315 = vpop.f32.mrf.mxu0
  %v316 = vadd.f32 %v60, %v315
  %v317 = vpop.f32.mrf.mxu0
  %318 = vdwg.mxu0
  %v319 = vmax.f32 %v286, 0.0
  %v320 = vmax.f32 %v291, 0.0
  %v321 = vmax.f32 %v296, 0.0
  %v322 = vmax.f32 %v301, 0.0
  %v323 = vmax.f32 %v306, 0.0
  %v324 = vmax.f32 %v311, 0.0
  %v325 = vmax.f32 %v316, 0.0
  %v326 = vmax.f32 %v184, %v319
  %v327 = vmax.f32 %v185, %v320
  %v328 = vmax.f32 %v186, %v321
  %v329 = vmax.f32 %v187, %v322
  %v330 = vmax.f32 %v188, %v323
  %v331 = vmax.f32 %v189, %v324
  %v332 = vmax.f32 %v190, %v325
  %s333 = scalar_lea.vmem %s1, 432
  %v334 = vld [vmem:[%s333] sm:$0xff]
  %v335 = vld [vmem:[%s333 + $0x8] sm:$0xff]
  %v336 = vld [vmem:[%s333 + $0x10] sm:$0xff]
  %v337 = vld [vmem:[%s333 + $0x18] sm:$0xff]
  %v338 = vld [vmem:[%s333 + $0x20] sm:$0xff]
  %v339 = vld [vmem:[%s333 + $0x28] sm:$0xff]
  %v340 = vld [vmem:[%s333 + $0x30] sm:$0xff]
  %v341 = vld [vmem:[%s333 + $0x38] sm:$0xff]
  %v342 = vld [vmem:[%s333 + $0x40] sm:$0xff]
  %v343 = vld [vmem:[%s333 + $0x48] sm:$0xff]
  %v344 = vld [vmem:[%s333 + $0x50] sm:$0xff]
  %v345 = vld [vmem:[%s333 + $0x58] sm:$0xff]
  %v346 = vld [vmem:[%s333 + $0x60] sm:$0xff]
  %v347 = vld [vmem:[%s333 + $0x68] sm:$0xff]
  %v348 = vld [vmem:[%s333 + $0x70] sm:$0xff]
  %v349 = vld [vmem:[%s333 + $0x78] sm:$0xff]
  %v350 = vld [vmem:[%s333 + $0x80] sm:$0xff]
  %v351 = vld [vmem:[%s333 + $0x88] sm:$0xff]
  %v352 = vld [vmem:[%s333 + $0x90] sm:$0xff]
  %v353 = vld [vmem:[%s333 + $0x98] sm:$0xff]
  %v354 = vld [vmem:[%s333 + $0xa0] sm:$0xff]
  %v355 = vld [vmem:[%s333 + $0xa8] sm:$0xff]
  %v356 = vld [vmem:[%s333 + $0xb0] sm:$0xff]
  %v357 = vld [vmem:[%s333 + $0xb8] sm:$0xff]
  %v358 = vld [vmem:[%s333 + $0xc0] sm:$0xff]
  %v359 = vld [vmem:[%s333 + $0xc8] sm:$0xff]
  %v360 = vld [vmem:[%s333 + $0xd0] sm:$0xff]
  %361 = vmatprep.subr.mxu0 0.0
  %362 = vmatpush1.msra.mxu0 %v349
  %363 = vmatprep.subr.mxu0 0.0
  %364 = vmatpush1.msra.mxu0 %v348
  %365 = vmatprep.subr.mxu0 0.0
  %366 = vmatpush1.msra.mxu0 %v347
  %367 = vmatprep.subr.mxu0 0.0
  %368 = vmatpush1.msra.mxu0 %v346
  %369 = vmatprep.subr.mxu0 0.0
  %370 = vmatpush1.msra.mxu0 %v345
  %371 = vmatprep.subr.mxu0 0.0
  %372 = vmatpush1.msra.mxu0 %v344
  %373 = vmatprep.subr.mxu0 0.0
  %374 = vmatpush1.msra.mxu0 %v343
  %375 = vmatprep.subr.mxu0 0.0
  %376 = vmatpush1.msra.mxu0 %v342
  %377 = vmatprep.subr.mxu0 0.0
  %378 = vmatpush1.msra.mxu0 %v341
  %379 = vmatprep.subr.mxu0 0.0
  %380 = vmatpush1.msra.mxu0 %v340
  %381 = vmatprep.subr.mxu0 0.0
  %382 = vmatpush1.msra.mxu0 %v339
  %383 = vmatprep.subr.mxu0 0.0
  %384 = vmatpush1.msra.mxu0 %v338
  %385 = vmatprep.subr.mxu0 0.0
  %386 = vmatpush1.msra.mxu0 %v337
  %387 = vmatprep.subr.mxu0 0.0
  %388 = vmatpush1.msra.mxu0 %v336
  %389 = vmatprep.subr.mxu0 0.0
  %390 = vmatpush1.msra.mxu0 %v335
  %391 = vmatprep.subr.mxu0 0.0
  %392 = vmatpush1.msra.mxu0 %v334
  %393 = vmatprep.subr.mxu0 0.0
  %394 = vmatpush2.msra.mxu0 0.0
  %395 = vmatprep.subr.mxu0 0.0
  %396 = vmatpush2.msra.mxu0 0.0
  %397 = vmatprep.subr.mxu0 0.0
  %398 = vmatpush2.msra.mxu0 0.0
  %399 = vmatprep.subr.mxu0 0.0
  %400 = vmatpush2.msra.mxu0 0.0
  %401 = vmatprep.subr.mxu0 0.0
  %402 = vmatpush2.msra.mxu0 0.0
  %403 = vmatprep.subr.mxu0 0.0
  %404 = vmatpush2.msra.mxu0 %v360
  %405 = vmatprep.subr.mxu0 0.0
  %406 = vmatpush2.msra.mxu0 %v359
  %407 = vmatprep.subr.mxu0 0.0
  %408 = vmatpush2.msra.mxu0 %v358
  %409 = vmatprep.subr.mxu0 0.0
  %410 = vmatpush2.msra.mxu0 %v357
  %411 = vmatprep.subr.mxu0 0.0
  %412 = vmatpush2.msra.mxu0 %v356
  %413 = vmatprep.subr.mxu0 0.0
  %414 = vmatpush2.msra.mxu0 %v355
  %415 = vmatprep.subr.mxu0 0.0
  %416 = vmatpush2.msra.mxu0 %v354
  %417 = vmatprep.subr.mxu0 0.0
  %418 = vmatpush2.msra.mxu0 %v353
  %419 = vmatprep.subr.mxu0 0.0
  %420 = vmatpush2.msra.mxu0 %v352
  %421 = vmatprep.subr.mxu0 0.0
  %422 = vmatpush2.msra.mxu0 %v351
  %423 = vmatprep.subr.mxu0 0.0
  %424 = vmatpush2.msra.mxu0 %v350
  %425 = vmatprep.mubr.f32.mxu0 %v64
  %426 = vmatmul.mubr.f32.gmra.mxu0 %v14
  %v427 = vpop.f32.mrf.mxu0
  %v428 = vadd.f32 %v60, %v427
  %v429 = vpop.f32.mrf.mxu0
  %430 = vmatprep.mubr.f32.mxu0 %v67
  %431 = vmatmul.mubr.f32.gmra.mxu0 %v16
  %v432 = vpop.f32.mrf.mxu0
  %v433 = vadd.f32 %v60, %v432
  %v434 = vpop.f32.mrf.mxu0
  %435 = vmatprep.mubr.f32.mxu0 %v70
  %436 = vmatmul.mubr.f32.gmra.mxu0 %v18
  %v437 = vpop.f32.mrf.mxu0
  %v438 = vadd.f32 %v60, %v437
  %v439 = vpop.f32.mrf.mxu0
  %440 = vmatprep.mubr.f32.mxu0 %v73
  %441 = vmatmul.mubr.f32.gmra.mxu0 %v20
  %v442 = vpop.f32.mrf.mxu0
  %v443 = vadd.f32 %v60, %v442
  %v444 = vpop.f32.mrf.mxu0
  %445 = vmatprep.mubr.f32.mxu0 %v76
  %446 = vmatmul.mubr.f32.gmra.mxu0 %v22
  %v447 = vpop.f32.mrf.mxu0
  %v448 = vadd.f32 %v60, %v447
  %v449 = vpop.f32.mrf.mxu0
  %450 = vmatprep.mubr.f32.mxu0 %v79
  %451 = vmatmul.mubr.f32.gmra.mxu0 %v24
  %v452 = vpop.f32.mrf.mxu0
  %v453 = vadd.f32 %v60, %v452
  %v454 = vpop.f32.mrf.mxu0
  %455 = vmatprep.mubr.f32.mxu0 %v82
  %456 = vmatmul.mubr.f32.gmra.mxu0 %v26
  %v457 = vpop.f32.mrf.mxu0
  %v458 = vadd.f32 %v60, %v457
  %v459 = vpop.f32.mrf.mxu0
  %460 = vdwg.mxu0
  %v461 = vmax.f32 %v428, 0.0
  %v462 = vmax.f32 %v433, 0.0
  %v463 = vmax.f32 %v438, 0.0
  %v464 = vmax.f32 %v443, 0.0
  %v465 = vmax.f32 %v448, 0.0
  %v466 = vmax.f32 %v453, 0.0
  %v467 = vmax.f32 %v458, 0.0
  %s468 = scalar_lea.vmem %s1, 648
  %v469 = vld [vmem:[%s468] sm:$0xff]
  %v470 = vld [vmem:[%s468 + $0x8] sm:$0xff]
  %v471 = vld [vmem:[%s468 + $0x10] sm:$0xff]
  %v472 = vld [vmem:[%s468 + $0x18] sm:$0xff]
  %v473 = vld [vmem:[%s468 + $0x20] sm:$0xff]
  %v474 = vld [vmem:[%s468 + $0x28] sm:$0xff]
  %v475 = vld [vmem:[%s468 + $0x30] sm:$0xff]
  %v476 = vld [vmem:[%s468 + $0x38] sm:$0xff]
  %v477 = vld [vmem:[%s468 + $0x40] sm:$0xff]
  %v478 = vld [vmem:[%s468 + $0x48] sm:$0xff]
  %v479 = vld [vmem:[%s468 + $0x50] sm:$0xff]
  %v480 = vld [vmem:[%s468 + $0x58] sm:$0xff]
  %v481 = vld [vmem:[%s468 + $0x60] sm:$0xff]
  %v482 = vld [vmem:[%s468 + $0x68] sm:$0xff]
  %v483 = vld [vmem:[%s468 + $0x70] sm:$0xff]
  %v484 = vld [vmem:[%s468 + $0x78] sm:$0xff]
  %v485 = vld [vmem:[%s468 + $0x80] sm:$0xff]
  %v486 = vld [vmem:[%s468 + $0x88] sm:$0xff]
  %v487 = vld [vmem:[%s468 + $0x90] sm:$0xff]
  %v488 = vld [vmem:[%s468 + $0x98] sm:$0xff]
  %v489 = vld [vmem:[%s468 + $0xa0] sm:$0xff]
  %v490 = vld [vmem:[%s468 + $0xa8] sm:$0xff]
  %v491 = vld [vmem:[%s468 + $0xb0] sm:$0xff]
  %v492 = vld [vmem:[%s468 + $0xb8] sm:$0xff]
  %v493 = vld [vmem:[%s468 + $0xc0] sm:$0xff]
  %v494 = vld [vmem:[%s468 + $0xc8] sm:$0xff]
  %v495 = vld [vmem:[%s468 + $0xd0] sm:$0xff]
  %496 = vmatprep.subr.mxu0 0.0
  %497 = vmatpush1.msra.mxu0 %v484
  %498 = vmatprep.subr.mxu0 0.0
  %499 = vmatpush1.msra.mxu0 %v483
  %500 = vmatprep.subr.mxu0 0.0
  %501 = vmatpush1.msra.mxu0 %v482
  %502 = vmatprep.subr.mxu0 0.0
  %503 = vmatpush1.msra.mxu0 %v481
  %504 = vmatprep.subr.mxu0 0.0
  %505 = vmatpush1.msra.mxu0 %v480
  %506 = vmatprep.subr.mxu0 0.0
  %507 = vmatpush1.msra.mxu0 %v479
  %508 = vmatprep.subr.mxu0 0.0
  %509 = vmatpush1.msra.mxu0 %v478
  %510 = vmatprep.subr.mxu0 0.0
  %511 = vmatpush1.msra.mxu0 %v477
  %512 = vmatprep.subr.mxu0 0.0
  %513 = vmatpush1.msra.mxu0 %v476
  %514 = vmatprep.subr.mxu0 0.0
  %515 = vmatpush1.msra.mxu0 %v475
  %516 = vmatprep.subr.mxu0 0.0
  %517 = vmatpush1.msra.mxu0 %v474
  %518 = vmatprep.subr.mxu0 0.0
  %519 = vmatpush1.msra.mxu0 %v473
  %520 = vmatprep.subr.mxu0 0.0
  %521 = vmatpush1.msra.mxu0 %v472
  %522 = vmatprep.subr.mxu0 0.0
  %523 = vmatpush1.msra.mxu0 %v471
  %524 = vmatprep.subr.mxu0 0.0
  %525 = vmatpush1.msra.mxu0 %v470
  %526 = vmatprep.subr.mxu0 0.0
  %527 = vmatpush1.msra.mxu0 %v469
  %528 = vmatprep.subr.mxu0 0.0
  %529 = vmatpush2.msra.mxu0 0.0
  %530 = vmatprep.subr.mxu0 0.0
  %531 = vmatpush2.msra.mxu0 0.0
  %532 = vmatprep.subr.mxu0 0.0
  %533 = vmatpush2.msra.mxu0 0.0
  %534 = vmatprep.subr.mxu0 0.0
  %535 = vmatpush2.msra.mxu0 0.0
  %536 = vmatprep.subr.mxu0 0.0
  %537 = vmatpush2.msra.mxu0 0.0
  %538 = vmatprep.subr.mxu0 0.0
  %539 = vmatpush2.msra.mxu0 %v495
  %540 = vmatprep.subr.mxu0 0.0
  %541 = vmatpush2.msra.mxu0 %v494
  %542 = vmatprep.subr.mxu0 0.0
  %543 = vmatpush2.msra.mxu0 %v493
  %544 = vmatprep.subr.mxu0 0.0
  %545 = vmatpush2.msra.mxu0 %v492
  %546 = vmatprep.subr.mxu0 0.0
  %547 = vmatpush2.msra.mxu0 %v491
  %548 = vmatprep.subr.mxu0 0.0
  %549 = vmatpush2.msra.mxu0 %v490
  %550 = vmatprep.subr.mxu0 0.0
  %551 = vmatpush2.msra.mxu0 %v489
  %552 = vmatprep.subr.mxu0 0.0
  %553 = vmatpush2.msra.mxu0 %v488
  %554 = vmatprep.subr.mxu0 0.0
  %555 = vmatpush2.msra.mxu0 %v487
  %556 = vmatprep.subr.mxu0 0.0
  %557 = vmatpush2.msra.mxu0 %v486
  %558 = vmatprep.subr.mxu0 0.0
  %559 = vmatpush2.msra.mxu0 %v485
  %560 = vmatprep.mubr.f32.mxu0 %v64
  %561 = vmatmul.mubr.f32.gmra.mxu0 %v14
  %v562 = vpop.f32.mrf.mxu0
  %v563 = vadd.f32 %v60, %v562
  %v564 = vpop.f32.mrf.mxu0
  %565 = vmatprep.mubr.f32.mxu0 %v67
  %566 = vmatmul.mubr.f32.gmra.mxu0 %v16
  %v567 = vpop.f32.mrf.mxu0
  %v568 = vadd.f32 %v60, %v567
  %v569 = vpop.f32.mrf.mxu0
  %570 = vmatprep.mubr.f32.mxu0 %v70
  %571 = vmatmul.mubr.f32.gmra.mxu0 %v18
  %v572 = vpop.f32.mrf.mxu0
  %v573 = vadd.f32 %v60, %v572
  %v574 = vpop.f32.mrf.mxu0
  %575 = vmatprep.mubr.f32.mxu0 %v73
  %576 = vmatmul.mubr.f32.gmra.mxu0 %v20
  %v577 = vpop.f32.mrf.mxu0
  %v578 = vadd.f32 %v60, %v577
  %v579 = vpop.f32.mrf.mxu0
  %580 = vmatprep.mubr.f32.mxu0 %v76
  %581 = vmatmul.mubr.f32.gmra.mxu0 %v22
  %v582 = vpop.f32.mrf.mxu0
  %v583 = vadd.f32 %v60, %v582
  %v584 = vpop.f32.mrf.mxu0
  %585 = vmatprep.mubr.f32.mxu0 %v79
  %586 = vmatmul.mubr.f32.gmra.mxu0 %v24
  %v587 = vpop.f32.mrf.mxu0
  %v588 = vadd.f32 %v60, %v587
  %v589 = vpop.f32.mrf.mxu0
  %590 = vmatprep.mubr.f32.mxu0 %v82
  %591 = vmatmul.mubr.f32.gmra.mxu0 %v26
  %v592 = vpop.f32.mrf.mxu0
  %v593 = vadd.f32 %v60, %v592
  %v594 = vpop.f32.mrf.mxu0
  %595 = vdwg.mxu0
  %v596 = vmax.f32 %v563, 0.0
  %v597 = vmax.f32 %v568, 0.0
  %v598 = vmax.f32 %v573, 0.0
  %v599 = vmax.f32 %v578, 0.0
  %v600 = vmax.f32 %v583, 0.0
  %v601 = vmax.f32 %v588, 0.0
  %v602 = vmax.f32 %v593, 0.0
  %v603 = vmax.f32 %v461, %v596
  %v604 = vmax.f32 %v462, %v597
  %v605 = vmax.f32 %v463, %v598
  %v606 = vmax.f32 %v464, %v599
  %v607 = vmax.f32 %v465, %v600
  %v608 = vmax.f32 %v466, %v601
  %v609 = vmax.f32 %v467, %v602
  %v610 = vmax.f32 %v326, %v603
  %v611 = vmax.f32 %v327, %v604
  %v612 = vmax.f32 %v328, %v605
  %v613 = vmax.f32 %v329, %v606
  %v614 = vmax.f32 %v330, %v607
  %v615 = vmax.f32 %v331, %v608
  %v616 = vmax.f32 %v332, %v609
  %vm617 = vcmask 130048
  %618 = vst.msk [vmem:[%s3] sm:$0xff] %vm617, %v610
  %619 = vst.msk [vmem:[%s3 + $0x8] sm:$0xff] %vm617, %v611
  %620 = vst.msk [vmem:[%s3 + $0x10] sm:$0xff] %vm617, %v612
  %621 = vst.msk [vmem:[%s3 + $0x18] sm:$0xff] %vm617, %v613
  %622 = vst.msk [vmem:[%s3 + $0x20] sm:$0xff] %vm617, %v614
  %623 = vst.msk [vmem:[%s3 + $0x28] sm:$0xff] %vm617, %v615
  %624 = vst.msk [vmem:[%s3 + $0x30] sm:$0xff] %vm617, %v616
  // Predicated region
  $region14: #{net_forward.4} parent=0 // pred_check
    _
  $region15: #{net_forward.4} parent=0 // pred_check_branch
    %626 = sbr.rel (0) target = $region17
  $region16: #{net_forward.4} parent=0 // pred_region
    _
  $region17: #{net_forward.4} parent=0 // pred_fallthru
    _
  // Predicated region
  $region18: #{net_forward.4} parent=0 // pred_check
    _
  $region19: #{net_forward.4} parent=0 // pred_check_branch
    %628 = sbr.rel (0) target = $region21
  $region20: #{net_forward.4} parent=0 // pred_region
    _
  $region21: #{net_forward.4} parent=0 // pred_fallthru
    _

// kernel: net_forward.5
$region0: #{net_forward.5}
  #allocation0 [shape = 'u32[]', space=smem, size = 0x4, offset = 0x4, fixed_abs, tag = 'smem constant byte address 0x4 - core index']
  #allocation1 [shape = 'u32[144,128]{1,0:T(1,128)}', space=vmem, size = 0x12000, scoped, tag = 'internal scratch']
  %s0 = inlined_call_operand.vmem [shape: f32[8,400], index: 0, kind: input, shape index: {}]
  %s1 = inlined_call_operand.vmem [shape: f32[400,128], index: 1, kind: input, shape index: {}]
  %s2 = inlined_call_operand.vmem [shape: f32[1,128], index: 2, kind: input, shape index: {}]
  %s3 = inlined_call_operand.vmem [shape: f32[128,128], index: 3, kind: input, shape index: {}]
  %s4 = inlined_call_operand.vmem [shape: f32[1,128], index: 4, kind: input, shape index: {}]
  %s5 = inlined_call_operand.vmem [shape: f32[128,128], index: 5, kind: input, shape index: {}]
  %s6 = inlined_call_operand.vmem [shape: f32[1,128], index: 6, kind: input, shape index: {}]
  %s7 = inlined_call_operand.vmem [shape: f32[8,128], index: 7, kind: output, shape index: {}]
  %s8 = sld [smem:[#allocation0]]
  $region38: #{net_forward.5} parent=0
    _
  %s10 = ssub.s32 1, %s8
  %s11 = scalar_select 0, %s10, %s8
  // Predicated region
  $region2: #{net_forward.5} parent=0 // pred_check
    _
  $region3: #{net_forward.5} parent=0 // pred_check_branch
    %13 = sbr.rel (0) target = $region5
  $region4: #{net_forward.5} parent=0 // pred_region
    _
  $region5: #{net_forward.5} parent=0 // pred_fallthru
    _
  // Predicated region
  $region6: #{net_forward.5} parent=0 // pred_check
    _
  $region7: #{net_forward.5} parent=0 // pred_check_branch
    %15 = sbr.rel (0) target = $region9
  $region8: #{net_forward.5} parent=0 // pred_region
    _
  $region9: #{net_forward.5} parent=0 // pred_fallthru
    _
  // Predicated region
  $region10: #{net_forward.5} parent=0 // pred_check
    _
  $region11: #{net_forward.5} parent=0 // pred_check_branch
    %17 = sbr.rel (0) target = $region13
  $region12: #{net_forward.5} parent=0 // pred_region
    _
  $region13: #{net_forward.5} parent=0 // pred_fallthru
    _
  // Predicated region
  $region14: #{net_forward.5} parent=0 // pred_check
    _
  $region15: #{net_forward.5} parent=0 // pred_check_branch
    %19 = sbr.rel (0) target = $region17
  $region16: #{net_forward.5} parent=0 // pred_region
    _
  $region17: #{net_forward.5} parent=0 // pred_fallthru
    _
  // Predicated region
  $region18: #{net_forward.5} parent=0 // pred_check
    _
  $region19: #{net_forward.5} parent=0 // pred_check_branch
    %21 = sbr.rel (0) target = $region21
  $region20: #{net_forward.5} parent=0 // pred_region
    _
  $region21: #{net_forward.5} parent=0 // pred_fallthru
    _
  // Predicated region
  $region22: #{net_forward.5} parent=0 // pred_check
    _
  $region23: #{net_forward.5} parent=0 // pred_check_branch
    %23 = sbr.rel (0) target = $region25
  $region24: #{net_forward.5} parent=0 // pred_region
    _
  $region25: #{net_forward.5} parent=0 // pred_fallthru
    _
  // Predicated region
  $region26: #{net_forward.5} parent=0 // pred_check
    _
  $region27: #{net_forward.5} parent=0 // pred_check_branch
    %25 = sbr.rel (0) target = $region29
  $region28: #{net_forward.5} parent=0 // pred_region
    _
  $region29: #{net_forward.5} parent=0 // pred_fallthru
    _
  %v26 = vld [vmem:[%s0] sm:$0xff]
  %v27 = vld [vmem:[%s0 + $0x8] sm:$0xff]
  %v28 = vld [vmem:[%s0 + $0x10] sm:$0xff]
  %v29 = vld [vmem:[%s0 + $0x18] sm:$0xff]
  %v30 = vld [vmem:[%s1] sm:$0xff]
  %v31 = vld [vmem:[%s1 + $0x8] sm:$0xff]
  %v32 = vld [vmem:[%s1 + $0x10] sm:$0xff]
  %v33 = vld [vmem:[%s1 + $0x18] sm:$0xff]
  %v34 = vld [vmem:[%s1 + $0x20] sm:$0xff]
  %v35 = vld [vmem:[%s1 + $0x28] sm:$0xff]
  %v36 = vld [vmem:[%s1 + $0x30] sm:$0xff]
  %v37 = vld [vmem:[%s1 + $0x38] sm:$0xff]
  %v38 = vld [vmem:[%s1 + $0x40] sm:$0xff]
  %v39 = vld [vmem:[%s1 + $0x48] sm:$0xff]
  %v40 = vld [vmem:[%s1 + $0x50] sm:$0xff]
  %v41 = vld [vmem:[%s1 + $0x58] sm:$0xff]
  %v42 = vld [vmem:[%s1 + $0x60] sm:$0xff]
  %v43 = vld [vmem:[%s1 + $0x68] sm:$0xff]
  %v44 = vld [vmem:[%s1 + $0x70] sm:$0xff]
  %v45 = vld [vmem:[%s1 + $0x78] sm:$0xff]
  %v46 = vld [vmem:[%s1 + $0x80] sm:$0xff]
  %v47 = vld [vmem:[%s1 + $0x88] sm:$0xff]
  %v48 = vld [vmem:[%s1 + $0x90] sm:$0xff]
  %v49 = vld [vmem:[%s1 + $0x98] sm:$0xff]
  %v50 = vld [vmem:[%s1 + $0xa0] sm:$0xff]
  %v51 = vld [vmem:[%s1 + $0xa8] sm:$0xff]
  %v52 = vld [vmem:[%s1 + $0xb0] sm:$0xff]
  %v53 = vld [vmem:[%s1 + $0xb8] sm:$0xff]
  %v54 = vld [vmem:[%s1 + $0xc0] sm:$0xff]
  %v55 = vld [vmem:[%s1 + $0xc8] sm:$0xff]
  %v56 = vld [vmem:[%s1 + $0xd0] sm:$0xff]
  %v57 = vld [vmem:[%s1 + $0xd8] sm:$0xff]
  %v58 = vld [vmem:[%s1 + $0xe0] sm:$0xff]
  %v59 = vld [vmem:[%s1 + $0xe8] sm:$0xff]
  %v60 = vld [vmem:[%s1 + $0xf0] sm:$0xff]
  %v61 = vld [vmem:[%s1 + $0xf8] sm:$0xff]
  %v62 = vld [vmem:[%s1 + $0x100] sm:$0xff]
  %v63 = vld [vmem:[%s1 + $0x108] sm:$0xff]
  %v64 = vld [vmem:[%s1 + $0x110] sm:$0xff]
  %v65 = vld [vmem:[%s1 + $0x118] sm:$0xff]
  %v66 = vld [vmem:[%s1 + $0x120] sm:$0xff]
  %v67 = vld [vmem:[%s1 + $0x128] sm:$0xff]
  %v68 = vld [vmem:[%s1 + $0x130] sm:$0xff]
  %v69 = vld [vmem:[%s1 + $0x138] sm:$0xff]
  %v70 = vld [vmem:[%s1 + $0x140] sm:$0xff]
  %v71 = vld [vmem:[%s1 + $0x148] sm:$0xff]
  %v72 = vld [vmem:[%s1 + $0x150] sm:$0xff]
  %v73 = vld [vmem:[%s1 + $0x158] sm:$0xff]
  %v74 = vld [vmem:[%s1 + $0x160] sm:$0xff]
  %v75 = vld [vmem:[%s1 + $0x168] sm:$0xff]
  %v76 = vld [vmem:[%s1 + $0x170] sm:$0xff]
  %v77 = vld [vmem:[%s1 + $0x178] sm:$0xff]
  %v78 = vld [vmem:[%s1 + $0x180] sm:$0xff]
  %v79 = vld [vmem:[%s1 + $0x188] sm:$0xff]
  %v80 = vld [vmem:[%s2] sm:$0x1]
  %v82 = vlaneseq
  %v83 = vshrl.u32 %v82, 7
  %v84 = vsub.s32 0, %v83
  %v85 = vrot.slane %v80, %v84
  %vm87 = vcmask 130048
  %v89 = vsel %vm87, %v29, 0
  %91 = vmatprep.subr.mxu0 0.0
  %92 = vmatpush1.msra.mxu0 %v45
  %93 = vmatprep.subr.mxu0 0.0
  %94 = vmatpush1.msra.mxu0 %v44
  %95 = vmatprep.subr.mxu0 0.0
  %96 = vmatpush1.msra.mxu0 %v43
  %97 = vmatprep.subr.mxu0 0.0
  %98 = vmatpush1.msra.mxu0 %v42
  %99 = vmatprep.subr.mxu0 0.0
  %100 = vmatpush1.msra.mxu0 %v41
  %101 = vmatprep.subr.mxu0 0.0
  %102 = vmatpush1.msra.mxu0 %v40
  %103 = vmatprep.subr.mxu0 0.0
  %104 = vmatpush1.msra.mxu0 %v39
  %105 = vmatprep.subr.mxu0 0.0
  %106 = vmatpush1.msra.mxu0 %v38
  %107 = vmatprep.subr.mxu0 0.0
  %108 = vmatpush1.msra.mxu0 %v37
  %109 = vmatprep.subr.mxu0 0.0
  %110 = vmatpush1.msra.mxu0 %v36
  %111 = vmatprep.subr.mxu0 0.0
  %112 = vmatpush1.msra.mxu0 %v35
  %113 = vmatprep.subr.mxu0 0.0
  %114 = vmatpush1.msra.mxu0 %v34
  %115 = vmatprep.subr.mxu0 0.0
  %116 = vmatpush1.msra.mxu0 %v33
  %117 = vmatprep.subr.mxu0 0.0
  %118 = vmatpush1.msra.mxu0 %v32
  %119 = vmatprep.subr.mxu0 0.0
  %120 = vmatpush1.msra.mxu0 %v31
  %121 = vmatprep.subr.mxu0 0.0
  %122 = vmatpush1.msra.mxu0 %v30
  %123 = vmatprep.subr.mxu0 0.0
  %124 = vmatpush2.msra.mxu0 %v61
  %125 = vmatprep.subr.mxu0 0.0
  %126 = vmatpush2.msra.mxu0 %v60
  %127 = vmatprep.subr.mxu0 0.0
  %128 = vmatpush2.msra.mxu0 %v59
  %129 = vmatprep.subr.mxu0 0.0
  %130 = vmatpush2.msra.mxu0 %v58
  %131 = vmatprep.subr.mxu0 0.0
  %132 = vmatpush2.msra.mxu0 %v57
  %133 = vmatprep.subr.mxu0 0.0
  %134 = vmatpush2.msra.mxu0 %v56
  %135 = vmatprep.subr.mxu0 0.0
  %136 = vmatpush2.msra.mxu0 %v55
  %137 = vmatprep.subr.mxu0 0.0
  %138 = vmatpush2.msra.mxu0 %v54
  %139 = vmatprep.subr.mxu0 0.0
  %140 = vmatpush2.msra.mxu0 %v53
  %141 = vmatprep.subr.mxu0 0.0
  %142 = vmatpush2.msra.mxu0 %v52
  %143 = vmatprep.subr.mxu0 0.0
  %144 = vmatpush2.msra.mxu0 %v51
  %145 = vmatprep.subr.mxu0 0.0
  %146 = vmatpush2.msra.mxu0 %v50
  %147 = vmatprep.subr.mxu0 0.0
  %148 = vmatpush2.msra.mxu0 %v49
  %149 = vmatprep.subr.mxu0 0.0
  %150 = vmatpush2.msra.mxu0 %v48
  %151 = vmatprep.subr.mxu0 0.0
  %152 = vmatpush2.msra.mxu0 %v47
  %153 = vmatprep.subr.mxu0 0.0
  %154 = vmatpush2.msra.mxu0 %v46
  %155 = vmatprep.mubr.f32.mxu0 %v27
  %156 = vmatmul.mubr.f32.gmra.mxu0 %v26
  %v157 = vpop.f32.mrf.mxu0
  %v158 = vadd.f32 %v85, %v157
  %v159 = vpop.f32.mrf.mxu0
  %160 = vdwg.mxu0
  %161 = vmatprep.subr.mxu0 0.0
  %162 = vmatpush1.msra.mxu0 %v77
  %163 = vmatprep.subr.mxu0 0.0
  %164 = vmatpush1.msra.mxu0 %v76
  %165 = vmatprep.subr.mxu0 0.0
  %166 = vmatpush1.msra.mxu0 %v75
  %167 = vmatprep.subr.mxu0 0.0
  %168 = vmatpush1.msra.mxu0 %v74
  %169 = vmatprep.subr.mxu0 0.0
  %170 = vmatpush1.msra.mxu0 %v73
  %171 = vmatprep.subr.mxu0 0.0
  %172 = vmatpush1.msra.mxu0 %v72
  %173 = vmatprep.subr.mxu0 0.0
  %174 = vmatpush1.msra.mxu0 %v71
  %175 = vmatprep.subr.mxu0 0.0
  %176 = vmatpush1.msra.mxu0 %v70
  %177 = vmatprep.subr.mxu0 0.0
  %178 = vmatpush1.msra.mxu0 %v69
  %179 = vmatprep.subr.mxu0 0.0
  %180 = vmatpush1.msra.mxu0 %v68
  %181 = vmatprep.subr.mxu0 0.0
  %182 = vmatpush1.msra.mxu0 %v67
  %183 = vmatprep.subr.mxu0 0.0
  %184 = vmatpush1.msra.mxu0 %v66
  %185 = vmatprep.subr.mxu0 0.0
  %186 = vmatpush1.msra.mxu0 %v65
  %187 = vmatprep.subr.mxu0 0.0
  %188 = vmatpush1.msra.mxu0 %v64
  %189 = vmatprep.subr.mxu0 0.0
  %190 = vmatpush1.msra.mxu0 %v63
  %191 = vmatprep.subr.mxu0 0.0
  %192 = vmatpush1.msra.mxu0 %v62
  %193 = vmatprep.subr.mxu0 0.0
  %194 = vmatpush2.msra.mxu0 0.0
  %195 = vmatprep.subr.mxu0 0.0
  %196 = vmatpush2.msra.mxu0 0.0
  %197 = vmatprep.subr.mxu0 0.0
  %198 = vmatpush2.msra.mxu0 0.0
  %199 = vmatprep.subr.mxu0 0.0
  %200 = vmatpush2.msra.mxu0 0.0
  %201 = vmatprep.subr.mxu0 0.0
  %202 = vmatpush2.msra.mxu0 0.0
  %203 = vmatprep.subr.mxu0 0.0
  %204 = vmatpush2.msra.mxu0 0.0
  %205 = vmatprep.subr.mxu0 0.0
  %206 = vmatpush2.msra.mxu0 0.0
  %207 = vmatprep.subr.mxu0 0.0
  %208 = vmatpush2.msra.mxu0 0.0
  %209 = vmatprep.subr.mxu0 0.0
  %210 = vmatpush2.msra.mxu0 0.0
  %211 = vmatprep.subr.mxu0 0.0
  %212 = vmatpush2.msra.mxu0 0.0
  %213 = vmatprep.subr.mxu0 0.0
  %214 = vmatpush2.msra.mxu0 0.0
  %215 = vmatprep.subr.mxu0 0.0
  %216 = vmatpush2.msra.mxu0 0.0
  %217 = vmatprep.subr.mxu0 0.0
  %218 = vmatpush2.msra.mxu0 0.0
  %219 = vmatprep.subr.mxu0 0.0
  %220 = vmatpush2.msra.mxu0 0.0
  %221 = vmatprep.subr.mxu0 0.0
  %222 = vmatpush2.msra.mxu0 %v79
  %223 = vmatprep.subr.mxu0 0.0
  %224 = vmatpush2.msra.mxu0 %v78
  %225 = vmatprep.mubr.f32.mxu0 %v89
  %226 = vmatmul.mubr.f32.gmra.mxu0 %v28
  %v227 = vpop.f32.mrf.mxu0
  %v228 = vadd.f32 %v158, %v227
  %v229 = vpop.f32.mrf.mxu0
  %230 = vdwg.mxu0
  %v231 = vmax.f32 %v228, 0.0
  %v232 = vld [vmem:[%s3] sm:$0xff]
  %v233 = vld [vmem:[%s3 + $0x8] sm:$0xff]
  %v234 = vld [vmem:[%s3 + $0x10] sm:$0xff]
  %v235 = vld [vmem:[%s3 + $0x18] sm:$0xff]
  %v236 = vld [vmem:[%s3 + $0x20] sm:$0xff]
  %v237 = vld [vmem:[%s3 + $0x28] sm:$0xff]
  %v238 = vld [vmem:[%s3 + $0x30] sm:$0xff]
  %v239 = vld [vmem:[%s3 + $0x38] sm:$0xff]
  %v240 = vld [vmem:[%s3 + $0x40] sm:$0xff]
  %v241 = vld [vmem:[%s3 + $0x48] sm:$0xff]
  %v242 = vld [vmem:[%s3 + $0x50] sm:$0xff]
  %v243 = vld [vmem:[%s3 + $0x58] sm:$0xff]
  %v244 = vld [vmem:[%s3 + $0x60] sm:$0xff]
  %v245 = vld [vmem:[%s3 + $0x68] sm:$0xff]
  %v246 = vld [vmem:[%s3 + $0x70] sm:$0xff]
  %v247 = vld [vmem:[%s3 + $0x78] sm:$0xff]
  %v248 = vld [vmem:[%s4] sm:$0x1]
  %v250 = vlaneseq
  %v251 = vshrl.u32 %v250, 7
  %v252 = vsub.s32 0, %v251
  %v253 = vrot.slane %v248, %v252
  %255 = vmatprep.subr.mxu0 0.0
  %256 = vmatpush1.msra.mxu0 %v247
  %257 = vmatprep.subr.mxu0 0.0
  %258 = vmatpush1.msra.mxu0 %v246
  %259 = vmatprep.subr.mxu0 0.0
  %260 = vmatpush1.msra.mxu0 %v245
  %261 = vmatprep.subr.mxu0 0.0
  %262 = vmatpush1.msra.mxu0 %v244
  %263 = vmatprep.subr.mxu0 0.0
  %264 = vmatpush1.msra.mxu0 %v243
  %265 = vmatprep.subr.mxu0 0.0
  %266 = vmatpush1.msra.mxu0 %v242
  %267 = vmatprep.subr.mxu0 0.0
  %268 = vmatpush1.msra.mxu0 %v241
  %269 = vmatprep.subr.mxu0 0.0
  %270 = vmatpush1.msra.mxu0 %v240
  %271 = vmatprep.subr.mxu0 0.0
  %272 = vmatpush1.msra.mxu0 %v239
  %273 = vmatprep.subr.mxu0 0.0
  %274 = vmatpush1.msra.mxu0 %v238
  %275 = vmatprep.subr.mxu0 0.0
  %276 = vmatpush1.msra.mxu0 %v237
  %277 = vmatprep.subr.mxu0 0.0
  %278 = vmatpush1.msra.mxu0 %v236
  %279 = vmatprep.subr.mxu0 0.0
  %280 = vmatpush1.msra.mxu0 %v235
  %281 = vmatprep.subr.mxu0 0.0
  %282 = vmatpush1.msra.mxu0 %v234
  %283 = vmatprep.subr.mxu0 0.0
  %284 = vmatpush1.msra.mxu0 %v233
  %285 = vmatprep.subr.mxu0 0.0
  %286 = vmatpush1.msra.mxu0 %v232
  %287 = vmatprep.subr.mxu0 0.0
  %288 = vmatpush2.msra.mxu0 0.0
  %289 = vmatprep.subr.mxu0 0.0
  %290 = vmatpush2.msra.mxu0 0.0
  %291 = vmatprep.subr.mxu0 0.0
  %292 = vmatpush2.msra.mxu0 0.0
  %293 = vmatprep.subr.mxu0 0.0
  %294 = vmatpush2.msra.mxu0 0.0
  %295 = vmatprep.subr.mxu0 0.0
  %296 = vmatpush2.msra.mxu0 0.0
  %297 = vmatprep.subr.mxu0 0.0
  %298 = vmatpush2.msra.mxu0 0.0
  %299 = vmatprep.subr.mxu0 0.0
  %300 = vmatpush2.msra.mxu0 0.0
  %301 = vmatprep.subr.mxu0 0.0
  %302 = vmatpush2.msra.mxu0 0.0
  %303 = vmatprep.subr.mxu0 0.0
  %304 = vmatpush2.msra.mxu0 0.0
  %305 = vmatprep.subr.mxu0 0.0
  %306 = vmatpush2.msra.mxu0 0.0
  %307 = vmatprep.subr.mxu0 0.0
  %308 = vmatpush2.msra.mxu0 0.0
  %309 = vmatprep.subr.mxu0 0.0
  %310 = vmatpush2.msra.mxu0 0.0
  %311 = vmatprep.subr.mxu0 0.0
  %312 = vmatpush2.msra.mxu0 0.0
  %313 = vmatprep.subr.mxu0 0.0
  %314 = vmatpush2.msra.mxu0 0.0
  %315 = vmatprep.subr.mxu0 0.0
  %316 = vmatpush2.msra.mxu0 0.0
  %317 = vmatprep.subr.mxu0 0.0
  %318 = vmatpush2.msra.mxu0 0.0
  %319 = vmatprep.mubr.f32.mxu0 0.0
  %320 = vmatmul.mubr.f32.gmra.mxu0 %v231
  %v321 = vpop.f32.mrf.mxu0
  %v322 = vadd.f32 %v253, %v321
  %v323 = vpop.f32.mrf.mxu0
  %324 = vdwg.mxu0
  %v325 = vmax.f32 %v322, 0.0
  %v326 = vld [vmem:[%s5] sm:$0xff]
  %v327 = vld [vmem:[%s5 + $0x8] sm:$0xff]
  %v328 = vld [vmem:[%s5 + $0x10] sm:$0xff]
  %v329 = vld [vmem:[%s5 + $0x18] sm:$0xff]
  %v330 = vld [vmem:[%s5 + $0x20] sm:$0xff]
  %v331 = vld [vmem:[%s5 + $0x28] sm:$0xff]
  %v332 = vld [vmem:[%s5 + $0x30] sm:$0xff]
  %v333 = vld [vmem:[%s5 + $0x38] sm:$0xff]
  %v334 = vld [vmem:[%s5 + $0x40] sm:$0xff]
  %v335 = vld [vmem:[%s5 + $0x48] sm:$0xff]
  %v336 = vld [vmem:[%s5 + $0x50] sm:$0xff]
  %v337 = vld [vmem:[%s5 + $0x58] sm:$0xff]
  %v338 = vld [vmem:[%s5 + $0x60] sm:$0xff]
  %v339 = vld [vmem:[%s5 + $0x68] sm:$0xff]
  %v340 = vld [vmem:[%s5 + $0x70] sm:$0xff]
  %v341 = vld [vmem:[%s5 + $0x78] sm:$0xff]
  %v342 = vld [vmem:[%s6] sm:$0x1]
  %v344 = vlaneseq
  %v345 = vshrl.u32 %v344, 7
  %v346 = vsub.s32 0, %v345
  %v347 = vrot.slane %v342, %v346
  %349 = vmatprep.subr.mxu0 0.0
  %350 = vmatpush1.msra.mxu0 %v341
  %351 = vmatprep.subr.mxu0 0.0
  %352 = vmatpush1.msra.mxu0 %v340
  %353 = vmatprep.subr.mxu0 0.0
  %354 = vmatpush1.msra.mxu0 %v339
  %355 = vmatprep.subr.mxu0 0.0
  %356 = vmatpush1.msra.mxu0 %v338
  %357 = vmatprep.subr.mxu0 0.0
  %358 = vmatpush1.msra.mxu0 %v337
  %359 = vmatprep.subr.mxu0 0.0
  %360 = vmatpush1.msra.mxu0 %v336
  %361 = vmatprep.subr.mxu0 0.0
  %362 = vmatpush1.msra.mxu0 %v335
  %363 = vmatprep.subr.mxu0 0.0
  %364 = vmatpush1.msra.mxu0 %v334
  %365 = vmatprep.subr.mxu0 0.0
  %366 = vmatpush1.msra.mxu0 %v333
  %367 = vmatprep.subr.mxu0 0.0
  %368 = vmatpush1.msra.mxu0 %v332
  %369 = vmatprep.subr.mxu0 0.0
  %370 = vmatpush1.msra.mxu0 %v331
  %371 = vmatprep.subr.mxu0 0.0
  %372 = vmatpush1.msra.mxu0 %v330
  %373 = vmatprep.subr.mxu0 0.0
  %374 = vmatpush1.msra.mxu0 %v329
  %375 = vmatprep.subr.mxu0 0.0
  %376 = vmatpush1.msra.mxu0 %v328
  %377 = vmatprep.subr.mxu0 0.0
  %378 = vmatpush1.msra.mxu0 %v327
  %379 = vmatprep.subr.mxu0 0.0
  %380 = vmatpush1.msra.mxu0 %v326
  %381 = vmatprep.subr.mxu0 0.0
  %382 = vmatpush2.msra.mxu0 0.0
  %383 = vmatprep.subr.mxu0 0.0
  %384 = vmatpush2.msra.mxu0 0.0
  %385 = vmatprep.subr.mxu0 0.0
  %386 = vmatpush2.msra.mxu0 0.0
  %387 = vmatprep.subr.mxu0 0.0
  %388 = vmatpush2.msra.mxu0 0.0
  %389 = vmatprep.subr.mxu0 0.0
  %390 = vmatpush2.msra.mxu0 0.0
  %391 = vmatprep.subr.mxu0 0.0
  %392 = vmatpush2.msra.mxu0 0.0
  %393 = vmatprep.subr.mxu0 0.0
  %394 = vmatpush2.msra.mxu0 0.0
  %395 = vmatprep.subr.mxu0 0.0
  %396 = vmatpush2.msra.mxu0 0.0
  %397 = vmatprep.subr.mxu0 0.0
  %398 = vmatpush2.msra.mxu0 0.0
  %399 = vmatprep.subr.mxu0 0.0
  %400 = vmatpush2.msra.mxu0 0.0
  %401 = vmatprep.subr.mxu0 0.0
  %402 = vmatpush2.msra.mxu0 0.0
  %403 = vmatprep.subr.mxu0 0.0
  %404 = vmatpush2.msra.mxu0 0.0
  %405 = vmatprep.subr.mxu0 0.0
  %406 = vmatpush2.msra.mxu0 0.0
  %407 = vmatprep.subr.mxu0 0.0
  %408 = vmatpush2.msra.mxu0 0.0
  %409 = vmatprep.subr.mxu0 0.0
  %410 = vmatpush2.msra.mxu0 0.0
  %411 = vmatprep.subr.mxu0 0.0
  %412 = vmatpush2.msra.mxu0 0.0
  %413 = vmatprep.mubr.f32.mxu0 0.0
  %414 = vmatmul.mubr.f32.gmra.mxu0 %v325
  %v415 = vpop.f32.mrf.mxu0
  %v416 = vadd.f32 %v347, %v415
  %v417 = vpop.f32.mrf.mxu0
  %418 = vdwg.mxu0
  %419 = vst [vmem:[%s7] sm:$0xff] %v416
  // Predicated region
  $region30: #{net_forward.5} parent=0 // pred_check
    _
  $region31: #{net_forward.5} parent=0 // pred_check_branch
    %421 = sbr.rel (0) target = $region33
  $region32: #{net_forward.5} parent=0 // pred_region
    _
  $region33: #{net_forward.5} parent=0 // pred_fallthru
    _
  // Predicated region
  $region34: #{net_forward.5} parent=0 // pred_check
    _
  $region35: #{net_forward.5} parent=0 // pred_check_branch
    %423 = sbr.rel (0) target = $region37
  $region36: #{net_forward.5} parent=0 // pred_region
    _
  $region37: #{net_forward.5} parent=0 // pred_fallthru
    _

</llo_original>
